<compile_context>
chip_gen: v5e
topology: v5e:2x2
jax: 0.10.0
libtpu: 0.0.40
codegen_flags: <defaults>
</compile_context>

<pallas_src>
import jax
import jax.numpy as jnp
from jax import lax
from jax.experimental import pallas as pl
from jax.experimental.pallas import tpu as pltpu


# ----------------------------------------------------------------------------
# Pallas kernel: whole forward pass for one batch tile of tb samples.
#   x_ref   : (48*tb, Cin)   time-major rows (row = t*tb + s), channels-last
#   w1..w3  : (3*Cin, Cout)  tap-major fused conv weights
#   b1..b3  : (1, Cout)      f32 biases
#   wf1_ref : (6*128, 128)   time-major fc1 weight, output padded to 128
#   bf1_ref : (1, 128)       f32, zero-padded
#   wf2_ref : (128, 128)     fc2 weight, both dims padded to 128
#   bf2_ref : (1, 128)       f32, zero-padded
#   out_ref : (tb, 128)      lane-dense padded logits
# ----------------------------------------------------------------------------
def cnn_forward_kernel(x_ref, w1_ref, b1_ref, w2_ref, b2_ref, w3_ref, b3_ref,
                       wf1_ref, bf1_ref, wf2_ref, bf2_ref, out_ref):
    tb = out_ref.shape[0]
    cdt = x_ref.dtype

    def conv_relu(h, w_ref_, b_ref_):
        # h: (L*tb, Cin) time-major.  Conv1d(k=3, padding=1) along time is one
        # matmul of the [prev | cur | next] im2col LHS against the tap-major
        # fused weight; prev/next are contiguous sublane shifts by tb rows
        # with a zero block at the t=0 / t=L-1 borders.
        M, Cin = h.shape
        zpad = jnp.zeros((tb, Cin), h.dtype)
        prev = jnp.concatenate([zpad, h[:M - tb]], axis=0)   # time t-1
        nxt = jnp.concatenate([h[tb:], zpad], axis=0)        # time t+1
        lhs = jnp.concatenate([prev, h, nxt], axis=1)        # (M, 3*Cin)
        y = jnp.dot(lhs, w_ref_[...], preferred_element_type=jnp.float32)
        y = jnp.maximum(y + b_ref_[...], 0.0)
        return y.astype(cdt)

    def maxpool2(h):
        # MaxPool1d(kernel=2, stride=2) along time.  Time-major rows make each
        # pooling pair two adjacent tb-row blocks -> O(M) slices + max + concat
        # (no selection matmul).  Computes exactly M/2 maxima, no wasted VPU work.
        M, C = h.shape
        nt = M // (2 * tb)
        parts = [jnp.maximum(h[(2 * t) * tb:(2 * t + 1) * tb],
                             h[(2 * t + 1) * tb:(2 * t + 2) * tb])
                 for t in range(nt)]
        return jnp.concatenate(parts, axis=0)                # (M//2, C)

    x = x_ref[...]                                           # (48*tb, Cin)
    h = maxpool2(conv_relu(x, w1_ref, b1_ref))               # (24*tb, 32)
    h = maxpool2(conv_relu(h, w2_ref, b2_ref))               # (12*tb, 64)
    h = maxpool2(conv_relu(h, w3_ref, b3_ref))               # (6*tb, 128)

    # dropout(p=0.5): identity at inference time.

    # fc1: flatten(128*6) @ Wf1^T == sum over the 6 time blocks of
    # (tb,128) @ (128,128) against the time-major weight blocks (the single
    # K=768 matmul split along K — same MACs, no gather/flatten/relayout).
    acc = jnp.zeros((tb, wf1_ref.shape[1]), jnp.float32)
    for t in range(6):                                       # static, tiny
        acc = acc + jnp.dot(h[t * tb:(t + 1) * tb],
                            wf1_ref[t * 128:(t + 1) * 128, :],
                            preferred_element_type=jnp.float32)
    z = jnp.maximum(acc + bf1_ref[...], 0.0).astype(cdt)     # relu(fc1), (tb, 128)
    y = jnp.dot(z, wf2_ref[...], preferred_element_type=jnp.float32) + bf2_ref[...]
    out_ref[...] = y.astype(out_ref.dtype)                   # (tb, 128) lane-dense


# ----------------------------------------------------------------------------
# Wrapper: parameter re-layout, batch-tile grid, lane-dense padded output.
# ----------------------------------------------------------------------------
def multichannel_cnn_forward(x, params, *, tb=128, compute_dtype=jnp.float32,
                             vmem_limit_bytes=48 * 1024 * 1024):
    (W1, b1, W2, b2, W3, b3, Wf1, bf1, Wf2, bf2) = params
    B, T, C = x.shape
    H = Wf1.shape[0]
    NC = Wf2.shape[0]
    assert T == 48, "fc1 expects 128*6 features -> seq_len must be 48"
    assert Wf1.shape[1] == 128 * 6
    assert H <= 128 and NC <= 128

    f32 = jnp.float32
    cdt = jnp.dtype(compute_dtype)

    # Native sublane tile: 8 rows for 32-bit, 16 for bf16 (packed sublanes).
    sub = 16 if cdt.itemsize == 2 else 8

    def rup(a, m):
        return ((a + m - 1) // m) * m

    # Batch tile: multiple of the sublane tile; don't over-pad tiny batches.
    # (On v7x, pick tb so that ceil(B/tb) >= 2 and both TensorCores get work.)
    tb = max(sub, min(rup(tb, sub), rup(B, sub)))

    # Conv weights: torch (Cout, Cin, 3) -> (3*Cin, Cout), tap-major row blocks
    # so they contract against the [prev | cur | next] im2col LHS.
    def conv_w(W):
        co, ci, k = W.shape
        return jnp.transpose(W.astype(f32), (2, 1, 0)).reshape(k * ci, co).astype(cdt)

    w1k, w2k, w3k = conv_w(W1), conv_w(W2), conv_w(W3)
    b1r = b1.reshape(1, -1).astype(f32)
    b2r = b2.reshape(1, -1).astype(f32)
    b3r = b3.reshape(1, -1).astype(f32)

    # fc1: torch (H, 768) with flattened feature index = c*6 + t (channel-major).
    # Re-lay out time-major: wf1k[t*128 + c, h] = Wf1[h, c*6 + t]; pad H -> 128.
    HP, NCP = 128, 128
    wf1_t = jnp.transpose(jnp.reshape(Wf1.T.astype(f32), (128, 6, H)), (1, 0, 2))
    wf1_t = jnp.reshape(wf1_t, (6 * 128, H))
    wf1k = jnp.zeros((6 * 128, HP), f32).at[:, :H].set(wf1_t).astype(cdt)
    bf1r = jnp.zeros((1, HP), f32).at[0, :H].set(bf1.astype(f32))
    wf2k = jnp.zeros((HP, NCP), f32).at[:H, :NC].set(Wf2.T.astype(f32)).astype(cdt)
    bf2r = jnp.zeros((1, NCP), f32).at[0, :NC].set(bf2.astype(f32))

    # Pad batch to a tile multiple and pre-tile into (nb, T*tb, C) contiguous
    # time-major slabs: xr[i, t*tb + s, :] = x[i*tb + s, t, :].  Each grid step
    # then DMAs one contiguous 2-D block and the kernel needs no reshapes.
    nb = pl.cdiv(B, tb)
    Bp = nb * tb
    xp = jnp.zeros((Bp, T, C), cdt).at[:B].set(x.astype(cdt))
    xr = jnp.transpose(xp.reshape(nb, tb, T, C), (0, 2, 1, 3)).reshape(nb, T * tb, C)

    def resident_spec(a):
        nd = a.ndim
        return pl.BlockSpec(a.shape, lambda i, _n=nd: (0,) * _n)  # VMEM-resident

    weights = (w1k, b1r, w2k, b2r, w3k, b3r, wf1k, bf1r, wf2k, bf2r)

    out = pl.pallas_call(
        cnn_forward_kernel,
        out_shape=jax.ShapeDtypeStruct((Bp, NCP), f32),
        grid_spec=pltpu.PrefetchScalarGridSpec(
            num_scalar_prefetch=0,
            grid=(nb,),
            in_specs=[pl.BlockSpec((None, T * tb, C), lambda i: (i, 0, 0))]
                     + [resident_spec(w) for w in weights],
            out_specs=pl.BlockSpec((tb, NCP), lambda i: (i, 0)),
        ),
        compiler_params=pltpu.CompilerParams(
            dimension_semantics=("parallel",),   # megacore-shardable batch axis
            vmem_limit_bytes=vmem_limit_bytes,   # <= 48 MiB: headroom on v7x's 64 MiB
        ),
    )(xr, *weights)
    return out[:B, :NC]


# ----------------------------------------------------------------------------
# Pure-JAX reference (mirrors the PyTorch forward exactly) for verification.
# ----------------------------------------------------------------------------
def reference_forward(x, params):
    (W1, b1, W2, b2, W3, b3, Wf1, bf1, Wf2, bf2) = params
    B = x.shape[0]
    xc = jnp.transpose(x, (0, 2, 1))                        # (B, C, T)  (NCW)

    def conv(h, w, b):
        y = lax.conv_general_dilated(h, w, window_strides=(1,), padding=((1, 1),),
                                     dimension_numbers=('NCH', 'OIH', 'NCH'))
        return y + b[None, :, None]

    def pool(h):
        b_, c_, l_ = h.shape
        return jnp.max(h.reshape(b_, c_, l_ // 2, 2), axis=-1)

    h = pool(jnp.maximum(conv(xc, W1, b1), 0.0))
    h = pool(jnp.maximum(conv(h, W2, b2), 0.0))
    h = pool(jnp.maximum(conv(h, W3, b3), 0.0))
    flat = h.reshape(B, -1)                                 # (B, 128*6), channel-major
    h1 = jnp.maximum(flat @ Wf1.T + bf1, 0.0)
    return h1 @ Wf2.T + bf2


if __name__ == "__main__":
    B, T, C, NC = 24, 48, 4, 10                             # seq_len=48 forced by fc1
    key = jax.random.PRNGKey(0)
    ks = jax.random.split(key, 11)
    f32 = jnp.float32

    x = jax.random.normal(ks[0], (B, T, C), f32)
    params = (
        jax.random.normal(ks[1], (32, C, 3), f32) * 0.10,   # conv1.weight
        jax.random.normal(ks[2], (32,), f32) * 0.10,        # conv1.bias
        jax.random.normal(ks[3], (64, 32, 3), f32) * 0.05,  # conv2.weight
        jax.random.normal(ks[4], (64,), f32) * 0.05,        # conv2.bias
        jax.random.normal(ks[5], (128, 64, 3), f32) * 0.05, # conv3.weight
        jax.random.normal(ks[6], (128,), f32) * 0.05,       # conv3.bias
        jax.random.normal(ks[7], (100, 128 * 6), f32) * 0.02,  # fc1.weight
        jax.random.normal(ks[8], (100,), f32) * 0.02,       # fc1.bias
        jax.random.normal(ks[9], (NC, 100), f32) * 0.05,    # fc2.weight
        jax.random.normal(ks[10], (NC,), f32) * 0.05,       # fc2.bias
    )

    # f32 path, default (clamped) batch tile.
    ref = reference_forward(x, params)
    out = jax.block_until_ready(multichannel_cnn_forward(x, params))
    assert out.shape == (B, NC), out.shape
    err = jnp.max(jnp.abs(out - ref))
    assert jnp.allclose(out, ref, rtol=2e-3, atol=2e-3), f"f32 max abs diff {err}"

    # bf16 compute path (f32 accumulation), small tile -> multi-step grid and
    # batch padding are exercised (B=20 pads to 32 with tb=16).
    xs = x[:20]
    refs = reference_forward(xs, params)
    outb = jax.block_until_ready(
        multichannel_cnn_forward(xs, params, tb=16, compute_dtype=jnp.bfloat16))
    assert outb.shape == (20, NC), outb.shape
    errb = jnp.max(jnp.abs(outb - refs))
    assert jnp.allclose(outb, refs, rtol=3e-2, atol=3e-2), f"bf16 max abs diff {errb}"

    print("KERNEL_OK")
</pallas_src>

<mosaic_0001>
module attributes {stable_mosaic.version = 11 : i64} {
  func.func @cnn_forward_kernel(%arg0: i32, %arg1: memref<1x1152x4xf32, #tpu.memory_space<vmem>>, %arg2: memref<12x32xf32, #tpu.memory_space<vmem>>, %arg3: memref<1x32xf32, #tpu.memory_space<vmem>>, %arg4: memref<96x64xf32, #tpu.memory_space<vmem>>, %arg5: memref<1x64xf32, #tpu.memory_space<vmem>>, %arg6: memref<192x128xf32, #tpu.memory_space<vmem>>, %arg7: memref<1x128xf32, #tpu.memory_space<vmem>>, %arg8: memref<768x128xf32, #tpu.memory_space<vmem>>, %arg9: memref<1x128xf32, #tpu.memory_space<vmem>>, %arg10: memref<128x128xf32, #tpu.memory_space<vmem>>, %arg11: memref<1x128xf32, #tpu.memory_space<vmem>>, %arg12: memref<24x128xf32, #tpu.memory_space<vmem>>) attributes {dimension_semantics = [#tpu.dimension_semantics<parallel>], iteration_bounds = array<i64: 1>, scalar_prefetch = 0 : i64, scratch_operands = 0 : i64, tpu.core_type = #tpu.core_type<tc>, window_params = [{transform_indices = @transform_0, window_bounds = array<i64: 1, 1152, 4>}, {pipeline_mode = #tpu.pipeline_mode<synchronous>, transform_indices = @transform_1, window_bounds = array<i64: 12, 32>}, {pipeline_mode = #tpu.pipeline_mode<synchronous>, transform_indices = @transform_2, window_bounds = array<i64: 1, 32>}, {pipeline_mode = #tpu.pipeline_mode<synchronous>, transform_indices = @transform_3, window_bounds = array<i64: 96, 64>}, {pipeline_mode = #tpu.pipeline_mode<synchronous>, transform_indices = @transform_4, window_bounds = array<i64: 1, 64>}, {pipeline_mode = #tpu.pipeline_mode<synchronous>, transform_indices = @transform_5, window_bounds = array<i64: 192, 128>}, {pipeline_mode = #tpu.pipeline_mode<synchronous>, transform_indices = @transform_6, window_bounds = array<i64: 1, 128>}, {pipeline_mode = #tpu.pipeline_mode<synchronous>, transform_indices = @transform_7, window_bounds = array<i64: 768, 128>}, {pipeline_mode = #tpu.pipeline_mode<synchronous>, transform_indices = @transform_8, window_bounds = array<i64: 1, 128>}, {pipeline_mode = #tpu.pipeline_mode<synchronous>, transform_indices = @transform_9, window_bounds = array<i64: 128, 128>}, {pipeline_mode = #tpu.pipeline_mode<synchronous>, transform_indices = @transform_10, window_bounds = array<i64: 1, 128>}, {transform_indices = @transform_11, window_bounds = array<i64: 24, 128>}]} {
    %c0 = arith.constant 0 : index
    %c0_0 = arith.constant 0 : index
    %c0_1 = arith.constant 0 : index
    %0 = vector.load %arg1[%c0, %c0_0, %c0_1] : memref<1x1152x4xf32, #tpu.memory_space<vmem>>, vector<1x1152x4xf32>
    %1 = vector.shape_cast %0 : vector<1x1152x4xf32> to vector<1152x4xf32>
    %cst = arith.constant 0.000000e+00 : f32
    %2 = vector.broadcast %cst : f32 to vector<24x4xf32>
    %3 = vector.extract_strided_slice %1 {offsets = [0, 0], sizes = [1128, 4], strides = [1, 1]} : vector<1152x4xf32> to vector<1128x4xf32>
    %4 = tpu.concatenate %2, %3 in 0 : vector<24x4xf32>, vector<1128x4xf32> -> vector<1152x4xf32>
    %5 = vector.extract_strided_slice %1 {offsets = [24, 0], sizes = [1128, 4], strides = [1, 1]} : vector<1152x4xf32> to vector<1128x4xf32>
    %6 = tpu.concatenate %5, %2 in 0 : vector<1128x4xf32>, vector<24x4xf32> -> vector<1152x4xf32>
    %7 = tpu.concatenate %4, %1, %6 in 1 : vector<1152x4xf32>, vector<1152x4xf32>, vector<1152x4xf32> -> vector<1152x12xf32>
    %c0_2 = arith.constant 0 : index
    %c0_3 = arith.constant 0 : index
    %8 = vector.load %arg2[%c0_2, %c0_3] : memref<12x32xf32, #tpu.memory_space<vmem>>, vector<12x32xf32>
    %cst_4 = arith.constant dense<0.000000e+00> : vector<1152x32xf32>
    %9 = tpu.matmul %7, %8, %cst_4 {dimension_numbers = #tpu.dot_dimension_numbers<[1], [0], [0], [1], [0, 0, 1, 1], [], []>} : vector<1152x12xf32>, vector<12x32xf32>, vector<1152x32xf32> -> vector<1152x32xf32>
    %c0_5 = arith.constant 0 : index
    %c0_6 = arith.constant 0 : index
    %10 = vector.load %arg3[%c0_5, %c0_6] : memref<1x32xf32, #tpu.memory_space<vmem>>, vector<1x32xf32>
    %11 = vector.broadcast %10 : vector<1x32xf32> to vector<1152x32xf32>
    %12 = arith.addf %9, %11 : vector<1152x32xf32>
    %cst_7 = arith.constant 0.000000e+00 : f32
    %13 = vector.broadcast %cst_7 : f32 to vector<1152x32xf32>
    %14 = arith.maximumf %12, %13 : vector<1152x32xf32>
    %15 = vector.extract_strided_slice %14 {offsets = [0, 0], sizes = [24, 32], strides = [1, 1]} : vector<1152x32xf32> to vector<24x32xf32>
    %16 = vector.extract_strided_slice %14 {offsets = [24, 0], sizes = [24, 32], strides = [1, 1]} : vector<1152x32xf32> to vector<24x32xf32>
    %17 = arith.maximumf %15, %16 : vector<24x32xf32>
    %18 = vector.extract_strided_slice %14 {offsets = [48, 0], sizes = [24, 32], strides = [1, 1]} : vector<1152x32xf32> to vector<24x32xf32>
    %19 = vector.extract_strided_slice %14 {offsets = [72, 0], sizes = [24, 32], strides = [1, 1]} : vector<1152x32xf32> to vector<24x32xf32>
    %20 = arith.maximumf %18, %19 : vector<24x32xf32>
    %21 = vector.extract_strided_slice %14 {offsets = [96, 0], sizes = [24, 32], strides = [1, 1]} : vector<1152x32xf32> to vector<24x32xf32>
    %22 = vector.extract_strided_slice %14 {offsets = [120, 0], sizes = [24, 32], strides = [1, 1]} : vector<1152x32xf32> to vector<24x32xf32>
    %23 = arith.maximumf %21, %22 : vector<24x32xf32>
    %24 = vector.extract_strided_slice %14 {offsets = [144, 0], sizes = [24, 32], strides = [1, 1]} : vector<1152x32xf32> to vector<24x32xf32>
    %25 = vector.extract_strided_slice %14 {offsets = [168, 0], sizes = [24, 32], strides = [1, 1]} : vector<1152x32xf32> to vector<24x32xf32>
    %26 = arith.maximumf %24, %25 : vector<24x32xf32>
    %27 = vector.extract_strided_slice %14 {offsets = [192, 0], sizes = [24, 32], strides = [1, 1]} : vector<1152x32xf32> to vector<24x32xf32>
    %28 = vector.extract_strided_slice %14 {offsets = [216, 0], sizes = [24, 32], strides = [1, 1]} : vector<1152x32xf32> to vector<24x32xf32>
    %29 = arith.maximumf %27, %28 : vector<24x32xf32>
    %30 = vector.extract_strided_slice %14 {offsets = [240, 0], sizes = [24, 32], strides = [1, 1]} : vector<1152x32xf32> to vector<24x32xf32>
    %31 = vector.extract_strided_slice %14 {offsets = [264, 0], sizes = [24, 32], strides = [1, 1]} : vector<1152x32xf32> to vector<24x32xf32>
    %32 = arith.maximumf %30, %31 : vector<24x32xf32>
    %33 = vector.extract_strided_slice %14 {offsets = [288, 0], sizes = [24, 32], strides = [1, 1]} : vector<1152x32xf32> to vector<24x32xf32>
    %34 = vector.extract_strided_slice %14 {offsets = [312, 0], sizes = [24, 32], strides = [1, 1]} : vector<1152x32xf32> to vector<24x32xf32>
    %35 = arith.maximumf %33, %34 : vector<24x32xf32>
    %36 = vector.extract_strided_slice %14 {offsets = [336, 0], sizes = [24, 32], strides = [1, 1]} : vector<1152x32xf32> to vector<24x32xf32>
    %37 = vector.extract_strided_slice %14 {offsets = [360, 0], sizes = [24, 32], strides = [1, 1]} : vector<1152x32xf32> to vector<24x32xf32>
    %38 = arith.maximumf %36, %37 : vector<24x32xf32>
    %39 = vector.extract_strided_slice %14 {offsets = [384, 0], sizes = [24, 32], strides = [1, 1]} : vector<1152x32xf32> to vector<24x32xf32>
    %40 = vector.extract_strided_slice %14 {offsets = [408, 0], sizes = [24, 32], strides = [1, 1]} : vector<1152x32xf32> to vector<24x32xf32>
    %41 = arith.maximumf %39, %40 : vector<24x32xf32>
    %42 = vector.extract_strided_slice %14 {offsets = [432, 0], sizes = [24, 32], strides = [1, 1]} : vector<1152x32xf32> to vector<24x32xf32>
    %43 = vector.extract_strided_slice %14 {offsets = [456, 0], sizes = [24, 32], strides = [1, 1]} : vector<1152x32xf32> to vector<24x32xf32>
    %44 = arith.maximumf %42, %43 : vector<24x32xf32>
    %45 = vector.extract_strided_slice %14 {offsets = [480, 0], sizes = [24, 32], strides = [1, 1]} : vector<1152x32xf32> to vector<24x32xf32>
    %46 = vector.extract_strided_slice %14 {offsets = [504, 0], sizes = [24, 32], strides = [1, 1]} : vector<1152x32xf32> to vector<24x32xf32>
    %47 = arith.maximumf %45, %46 : vector<24x32xf32>
    %48 = vector.extract_strided_slice %14 {offsets = [528, 0], sizes = [24, 32], strides = [1, 1]} : vector<1152x32xf32> to vector<24x32xf32>
    %49 = vector.extract_strided_slice %14 {offsets = [552, 0], sizes = [24, 32], strides = [1, 1]} : vector<1152x32xf32> to vector<24x32xf32>
    %50 = arith.maximumf %48, %49 : vector<24x32xf32>
    %51 = vector.extract_strided_slice %14 {offsets = [576, 0], sizes = [24, 32], strides = [1, 1]} : vector<1152x32xf32> to vector<24x32xf32>
    %52 = vector.extract_strided_slice %14 {offsets = [600, 0], sizes = [24, 32], strides = [1, 1]} : vector<1152x32xf32> to vector<24x32xf32>
    %53 = arith.maximumf %51, %52 : vector<24x32xf32>
    %54 = vector.extract_strided_slice %14 {offsets = [624, 0], sizes = [24, 32], strides = [1, 1]} : vector<1152x32xf32> to vector<24x32xf32>
    %55 = vector.extract_strided_slice %14 {offsets = [648, 0], sizes = [24, 32], strides = [1, 1]} : vector<1152x32xf32> to vector<24x32xf32>
    %56 = arith.maximumf %54, %55 : vector<24x32xf32>
    %57 = vector.extract_strided_slice %14 {offsets = [672, 0], sizes = [24, 32], strides = [1, 1]} : vector<1152x32xf32> to vector<24x32xf32>
    %58 = vector.extract_strided_slice %14 {offsets = [696, 0], sizes = [24, 32], strides = [1, 1]} : vector<1152x32xf32> to vector<24x32xf32>
    %59 = arith.maximumf %57, %58 : vector<24x32xf32>
    %60 = vector.extract_strided_slice %14 {offsets = [720, 0], sizes = [24, 32], strides = [1, 1]} : vector<1152x32xf32> to vector<24x32xf32>
    %61 = vector.extract_strided_slice %14 {offsets = [744, 0], sizes = [24, 32], strides = [1, 1]} : vector<1152x32xf32> to vector<24x32xf32>
    %62 = arith.maximumf %60, %61 : vector<24x32xf32>
    %63 = vector.extract_strided_slice %14 {offsets = [768, 0], sizes = [24, 32], strides = [1, 1]} : vector<1152x32xf32> to vector<24x32xf32>
    %64 = vector.extract_strided_slice %14 {offsets = [792, 0], sizes = [24, 32], strides = [1, 1]} : vector<1152x32xf32> to vector<24x32xf32>
    %65 = arith.maximumf %63, %64 : vector<24x32xf32>
    %66 = vector.extract_strided_slice %14 {offsets = [816, 0], sizes = [24, 32], strides = [1, 1]} : vector<1152x32xf32> to vector<24x32xf32>
    %67 = vector.extract_strided_slice %14 {offsets = [840, 0], sizes = [24, 32], strides = [1, 1]} : vector<1152x32xf32> to vector<24x32xf32>
    %68 = arith.maximumf %66, %67 : vector<24x32xf32>
    %69 = vector.extract_strided_slice %14 {offsets = [864, 0], sizes = [24, 32], strides = [1, 1]} : vector<1152x32xf32> to vector<24x32xf32>
    %70 = vector.extract_strided_slice %14 {offsets = [888, 0], sizes = [24, 32], strides = [1, 1]} : vector<1152x32xf32> to vector<24x32xf32>
    %71 = arith.maximumf %69, %70 : vector<24x32xf32>
    %72 = vector.extract_strided_slice %14 {offsets = [912, 0], sizes = [24, 32], strides = [1, 1]} : vector<1152x32xf32> to vector<24x32xf32>
    %73 = vector.extract_strided_slice %14 {offsets = [936, 0], sizes = [24, 32], strides = [1, 1]} : vector<1152x32xf32> to vector<24x32xf32>
    %74 = arith.maximumf %72, %73 : vector<24x32xf32>
    %75 = vector.extract_strided_slice %14 {offsets = [960, 0], sizes = [24, 32], strides = [1, 1]} : vector<1152x32xf32> to vector<24x32xf32>
    %76 = vector.extract_strided_slice %14 {offsets = [984, 0], sizes = [24, 32], strides = [1, 1]} : vector<1152x32xf32> to vector<24x32xf32>
    %77 = arith.maximumf %75, %76 : vector<24x32xf32>
    %78 = vector.extract_strided_slice %14 {offsets = [1008, 0], sizes = [24, 32], strides = [1, 1]} : vector<1152x32xf32> to vector<24x32xf32>
    %79 = vector.extract_strided_slice %14 {offsets = [1032, 0], sizes = [24, 32], strides = [1, 1]} : vector<1152x32xf32> to vector<24x32xf32>
    %80 = arith.maximumf %78, %79 : vector<24x32xf32>
    %81 = vector.extract_strided_slice %14 {offsets = [1056, 0], sizes = [24, 32], strides = [1, 1]} : vector<1152x32xf32> to vector<24x32xf32>
    %82 = vector.extract_strided_slice %14 {offsets = [1080, 0], sizes = [24, 32], strides = [1, 1]} : vector<1152x32xf32> to vector<24x32xf32>
    %83 = arith.maximumf %81, %82 : vector<24x32xf32>
    %84 = vector.extract_strided_slice %14 {offsets = [1104, 0], sizes = [24, 32], strides = [1, 1]} : vector<1152x32xf32> to vector<24x32xf32>
    %85 = vector.extract_strided_slice %14 {offsets = [1128, 0], sizes = [24, 32], strides = [1, 1]} : vector<1152x32xf32> to vector<24x32xf32>
    %86 = arith.maximumf %84, %85 : vector<24x32xf32>
    %87 = tpu.concatenate %17, %20, %23, %26, %29, %32, %35, %38, %41, %44, %47, %50, %53, %56, %59, %62 in 0 : vector<24x32xf32>, vector<24x32xf32>, vector<24x32xf32>, vector<24x32xf32>, vector<24x32xf32>, vector<24x32xf32>, vector<24x32xf32>, vector<24x32xf32>, vector<24x32xf32>, vector<24x32xf32>, vector<24x32xf32>, vector<24x32xf32>, vector<24x32xf32>, vector<24x32xf32>, vector<24x32xf32>, vector<24x32xf32> -> vector<384x32xf32>
    %88 = tpu.concatenate %65, %68, %71, %74, %77, %80, %83, %86 in 0 : vector<24x32xf32>, vector<24x32xf32>, vector<24x32xf32>, vector<24x32xf32>, vector<24x32xf32>, vector<24x32xf32>, vector<24x32xf32>, vector<24x32xf32> -> vector<192x32xf32>
    %89 = tpu.concatenate %87, %88 in 0 : vector<384x32xf32>, vector<192x32xf32> -> vector<576x32xf32>
    %cst_8 = arith.constant 0.000000e+00 : f32
    %90 = vector.broadcast %cst_8 : f32 to vector<24x32xf32>
    %91 = vector.extract_strided_slice %89 {offsets = [0, 0], sizes = [552, 32], strides = [1, 1]} : vector<576x32xf32> to vector<552x32xf32>
    %92 = tpu.concatenate %90, %91 in 0 : vector<24x32xf32>, vector<552x32xf32> -> vector<576x32xf32>
    %93 = vector.extract_strided_slice %89 {offsets = [24, 0], sizes = [552, 32], strides = [1, 1]} : vector<576x32xf32> to vector<552x32xf32>
    %94 = tpu.concatenate %93, %90 in 0 : vector<552x32xf32>, vector<24x32xf32> -> vector<576x32xf32>
    %95 = tpu.concatenate %92, %89, %94 in 1 : vector<576x32xf32>, vector<576x32xf32>, vector<576x32xf32> -> vector<576x96xf32>
    %c0_9 = arith.constant 0 : index
    %c0_10 = arith.constant 0 : index
    %96 = vector.load %arg4[%c0_9, %c0_10] : memref<96x64xf32, #tpu.memory_space<vmem>>, vector<96x64xf32>
    %cst_11 = arith.constant dense<0.000000e+00> : vector<576x64xf32>
    %97 = tpu.matmul %95, %96, %cst_11 {dimension_numbers = #tpu.dot_dimension_numbers<[1], [0], [0], [1], [0, 0, 1, 1], [], []>} : vector<576x96xf32>, vector<96x64xf32>, vector<576x64xf32> -> vector<576x64xf32>
    %c0_12 = arith.constant 0 : index
    %c0_13 = arith.constant 0 : index
    %98 = vector.load %arg5[%c0_12, %c0_13] : memref<1x64xf32, #tpu.memory_space<vmem>>, vector<1x64xf32>
    %99 = vector.broadcast %98 : vector<1x64xf32> to vector<576x64xf32>
    %100 = arith.addf %97, %99 : vector<576x64xf32>
    %cst_14 = arith.constant 0.000000e+00 : f32
    %101 = vector.broadcast %cst_14 : f32 to vector<576x64xf32>
    %102 = arith.maximumf %100, %101 : vector<576x64xf32>
    %103 = vector.extract_strided_slice %102 {offsets = [0, 0], sizes = [24, 64], strides = [1, 1]} : vector<576x64xf32> to vector<24x64xf32>
    %104 = vector.extract_strided_slice %102 {offsets = [24, 0], sizes = [24, 64], strides = [1, 1]} : vector<576x64xf32> to vector<24x64xf32>
    %105 = arith.maximumf %103, %104 : vector<24x64xf32>
    %106 = vector.extract_strided_slice %102 {offsets = [48, 0], sizes = [24, 64], strides = [1, 1]} : vector<576x64xf32> to vector<24x64xf32>
    %107 = vector.extract_strided_slice %102 {offsets = [72, 0], sizes = [24, 64], strides = [1, 1]} : vector<576x64xf32> to vector<24x64xf32>
    %108 = arith.maximumf %106, %107 : vector<24x64xf32>
    %109 = vector.extract_strided_slice %102 {offsets = [96, 0], sizes = [24, 64], strides = [1, 1]} : vector<576x64xf32> to vector<24x64xf32>
    %110 = vector.extract_strided_slice %102 {offsets = [120, 0], sizes = [24, 64], strides = [1, 1]} : vector<576x64xf32> to vector<24x64xf32>
    %111 = arith.maximumf %109, %110 : vector<24x64xf32>
    %112 = vector.extract_strided_slice %102 {offsets = [144, 0], sizes = [24, 64], strides = [1, 1]} : vector<576x64xf32> to vector<24x64xf32>
    %113 = vector.extract_strided_slice %102 {offsets = [168, 0], sizes = [24, 64], strides = [1, 1]} : vector<576x64xf32> to vector<24x64xf32>
    %114 = arith.maximumf %112, %113 : vector<24x64xf32>
    %115 = vector.extract_strided_slice %102 {offsets = [192, 0], sizes = [24, 64], strides = [1, 1]} : vector<576x64xf32> to vector<24x64xf32>
    %116 = vector.extract_strided_slice %102 {offsets = [216, 0], sizes = [24, 64], strides = [1, 1]} : vector<576x64xf32> to vector<24x64xf32>
    %117 = arith.maximumf %115, %116 : vector<24x64xf32>
    %118 = vector.extract_strided_slice %102 {offsets = [240, 0], sizes = [24, 64], strides = [1, 1]} : vector<576x64xf32> to vector<24x64xf32>
    %119 = vector.extract_strided_slice %102 {offsets = [264, 0], sizes = [24, 64], strides = [1, 1]} : vector<576x64xf32> to vector<24x64xf32>
    %120 = arith.maximumf %118, %119 : vector<24x64xf32>
    %121 = vector.extract_strided_slice %102 {offsets = [288, 0], sizes = [24, 64], strides = [1, 1]} : vector<576x64xf32> to vector<24x64xf32>
    %122 = vector.extract_strided_slice %102 {offsets = [312, 0], sizes = [24, 64], strides = [1, 1]} : vector<576x64xf32> to vector<24x64xf32>
    %123 = arith.maximumf %121, %122 : vector<24x64xf32>
    %124 = vector.extract_strided_slice %102 {offsets = [336, 0], sizes = [24, 64], strides = [1, 1]} : vector<576x64xf32> to vector<24x64xf32>
    %125 = vector.extract_strided_slice %102 {offsets = [360, 0], sizes = [24, 64], strides = [1, 1]} : vector<576x64xf32> to vector<24x64xf32>
    %126 = arith.maximumf %124, %125 : vector<24x64xf32>
    %127 = vector.extract_strided_slice %102 {offsets = [384, 0], sizes = [24, 64], strides = [1, 1]} : vector<576x64xf32> to vector<24x64xf32>
    %128 = vector.extract_strided_slice %102 {offsets = [408, 0], sizes = [24, 64], strides = [1, 1]} : vector<576x64xf32> to vector<24x64xf32>
    %129 = arith.maximumf %127, %128 : vector<24x64xf32>
    %130 = vector.extract_strided_slice %102 {offsets = [432, 0], sizes = [24, 64], strides = [1, 1]} : vector<576x64xf32> to vector<24x64xf32>
    %131 = vector.extract_strided_slice %102 {offsets = [456, 0], sizes = [24, 64], strides = [1, 1]} : vector<576x64xf32> to vector<24x64xf32>
    %132 = arith.maximumf %130, %131 : vector<24x64xf32>
    %133 = vector.extract_strided_slice %102 {offsets = [480, 0], sizes = [24, 64], strides = [1, 1]} : vector<576x64xf32> to vector<24x64xf32>
    %134 = vector.extract_strided_slice %102 {offsets = [504, 0], sizes = [24, 64], strides = [1, 1]} : vector<576x64xf32> to vector<24x64xf32>
    %135 = arith.maximumf %133, %134 : vector<24x64xf32>
    %136 = vector.extract_strided_slice %102 {offsets = [528, 0], sizes = [24, 64], strides = [1, 1]} : vector<576x64xf32> to vector<24x64xf32>
    %137 = vector.extract_strided_slice %102 {offsets = [552, 0], sizes = [24, 64], strides = [1, 1]} : vector<576x64xf32> to vector<24x64xf32>
    %138 = arith.maximumf %136, %137 : vector<24x64xf32>
    %139 = tpu.concatenate %105, %108, %111, %114, %117, %120, %123, %126, %129, %132, %135, %138 in 0 : vector<24x64xf32>, vector<24x64xf32>, vector<24x64xf32>, vector<24x64xf32>, vector<24x64xf32>, vector<24x64xf32>, vector<24x64xf32>, vector<24x64xf32>, vector<24x64xf32>, vector<24x64xf32>, vector<24x64xf32>, vector<24x64xf32> -> vector<288x64xf32>
    %cst_15 = arith.constant 0.000000e+00 : f32
    %140 = vector.broadcast %cst_15 : f32 to vector<24x64xf32>
    %141 = vector.extract_strided_slice %139 {offsets = [0, 0], sizes = [264, 64], strides = [1, 1]} : vector<288x64xf32> to vector<264x64xf32>
    %142 = tpu.concatenate %140, %141 in 0 : vector<24x64xf32>, vector<264x64xf32> -> vector<288x64xf32>
    %143 = vector.extract_strided_slice %139 {offsets = [24, 0], sizes = [264, 64], strides = [1, 1]} : vector<288x64xf32> to vector<264x64xf32>
    %144 = tpu.concatenate %143, %140 in 0 : vector<264x64xf32>, vector<24x64xf32> -> vector<288x64xf32>
    %145 = tpu.concatenate %142, %139, %144 in 1 : vector<288x64xf32>, vector<288x64xf32>, vector<288x64xf32> -> vector<288x192xf32>
    %c0_16 = arith.constant 0 : index
    %c0_17 = arith.constant 0 : index
    %146 = vector.load %arg6[%c0_16, %c0_17] : memref<192x128xf32, #tpu.memory_space<vmem>>, vector<192x128xf32>
    %cst_18 = arith.constant dense<0.000000e+00> : vector<288x128xf32>
    %147 = tpu.matmul %145, %146, %cst_18 {dimension_numbers = #tpu.dot_dimension_numbers<[1], [0], [0], [1], [0, 0, 1, 1], [], []>} : vector<288x192xf32>, vector<192x128xf32>, vector<288x128xf32> -> vector<288x128xf32>
    %c0_19 = arith.constant 0 : index
    %c0_20 = arith.constant 0 : index
    %148 = vector.load %arg7[%c0_19, %c0_20] : memref<1x128xf32, #tpu.memory_space<vmem>>, vector<1x128xf32>
    %149 = vector.broadcast %148 : vector<1x128xf32> to vector<288x128xf32>
    %150 = arith.addf %147, %149 : vector<288x128xf32>
    %cst_21 = arith.constant 0.000000e+00 : f32
    %151 = vector.broadcast %cst_21 : f32 to vector<288x128xf32>
    %152 = arith.maximumf %150, %151 : vector<288x128xf32>
    %153 = vector.extract_strided_slice %152 {offsets = [0, 0], sizes = [24, 128], strides = [1, 1]} : vector<288x128xf32> to vector<24x128xf32>
    %154 = vector.extract_strided_slice %152 {offsets = [24, 0], sizes = [24, 128], strides = [1, 1]} : vector<288x128xf32> to vector<24x128xf32>
    %155 = arith.maximumf %153, %154 : vector<24x128xf32>
    %156 = vector.extract_strided_slice %152 {offsets = [48, 0], sizes = [24, 128], strides = [1, 1]} : vector<288x128xf32> to vector<24x128xf32>
    %157 = vector.extract_strided_slice %152 {offsets = [72, 0], sizes = [24, 128], strides = [1, 1]} : vector<288x128xf32> to vector<24x128xf32>
    %158 = arith.maximumf %156, %157 : vector<24x128xf32>
    %159 = vector.extract_strided_slice %152 {offsets = [96, 0], sizes = [24, 128], strides = [1, 1]} : vector<288x128xf32> to vector<24x128xf32>
    %160 = vector.extract_strided_slice %152 {offsets = [120, 0], sizes = [24, 128], strides = [1, 1]} : vector<288x128xf32> to vector<24x128xf32>
    %161 = arith.maximumf %159, %160 : vector<24x128xf32>
    %162 = vector.extract_strided_slice %152 {offsets = [144, 0], sizes = [24, 128], strides = [1, 1]} : vector<288x128xf32> to vector<24x128xf32>
    %163 = vector.extract_strided_slice %152 {offsets = [168, 0], sizes = [24, 128], strides = [1, 1]} : vector<288x128xf32> to vector<24x128xf32>
    %164 = arith.maximumf %162, %163 : vector<24x128xf32>
    %165 = vector.extract_strided_slice %152 {offsets = [192, 0], sizes = [24, 128], strides = [1, 1]} : vector<288x128xf32> to vector<24x128xf32>
    %166 = vector.extract_strided_slice %152 {offsets = [216, 0], sizes = [24, 128], strides = [1, 1]} : vector<288x128xf32> to vector<24x128xf32>
    %167 = arith.maximumf %165, %166 : vector<24x128xf32>
    %168 = vector.extract_strided_slice %152 {offsets = [240, 0], sizes = [24, 128], strides = [1, 1]} : vector<288x128xf32> to vector<24x128xf32>
    %169 = vector.extract_strided_slice %152 {offsets = [264, 0], sizes = [24, 128], strides = [1, 1]} : vector<288x128xf32> to vector<24x128xf32>
    %170 = arith.maximumf %168, %169 : vector<24x128xf32>
    %171 = tpu.concatenate %155, %158, %161, %164, %167, %170 in 0 : vector<24x128xf32>, vector<24x128xf32>, vector<24x128xf32>, vector<24x128xf32>, vector<24x128xf32>, vector<24x128xf32> -> vector<144x128xf32>
    %cst_22 = arith.constant 0.000000e+00 : f32
    %172 = vector.broadcast %cst_22 : f32 to vector<24x128xf32>
    %173 = vector.extract_strided_slice %171 {offsets = [0, 0], sizes = [24, 128], strides = [1, 1]} : vector<144x128xf32> to vector<24x128xf32>
    %c0_23 = arith.constant 0 : index
    %c0_24 = arith.constant 0 : index
    %174 = vector.load %arg8[%c0_23, %c0_24] : memref<768x128xf32, #tpu.memory_space<vmem>>, vector<128x128xf32>
    %cst_25 = arith.constant dense<0.000000e+00> : vector<24x128xf32>
    %175 = tpu.matmul %173, %174, %cst_25 {dimension_numbers = #tpu.dot_dimension_numbers<[1], [0], [0], [1], [0, 0, 1, 1], [], []>} : vector<24x128xf32>, vector<128x128xf32>, vector<24x128xf32> -> vector<24x128xf32>
    %176 = arith.addf %172, %175 : vector<24x128xf32>
    %177 = vector.extract_strided_slice %171 {offsets = [24, 0], sizes = [24, 128], strides = [1, 1]} : vector<144x128xf32> to vector<24x128xf32>
    %c128 = arith.constant 128 : index
    %c0_26 = arith.constant 0 : index
    %178 = vector.load %arg8[%c128, %c0_26] : memref<768x128xf32, #tpu.memory_space<vmem>>, vector<128x128xf32>
    %cst_27 = arith.constant dense<0.000000e+00> : vector<24x128xf32>
    %179 = tpu.matmul %177, %178, %cst_27 {dimension_numbers = #tpu.dot_dimension_numbers<[1], [0], [0], [1], [0, 0, 1, 1], [], []>} : vector<24x128xf32>, vector<128x128xf32>, vector<24x128xf32> -> vector<24x128xf32>
    %180 = arith.addf %176, %179 : vector<24x128xf32>
    %181 = vector.extract_strided_slice %171 {offsets = [48, 0], sizes = [24, 128], strides = [1, 1]} : vector<144x128xf32> to vector<24x128xf32>
    %c256 = arith.constant 256 : index
    %c0_28 = arith.constant 0 : index
    %182 = vector.load %arg8[%c256, %c0_28] : memref<768x128xf32, #tpu.memory_space<vmem>>, vector<128x128xf32>
    %cst_29 = arith.constant dense<0.000000e+00> : vector<24x128xf32>
    %183 = tpu.matmul %181, %182, %cst_29 {dimension_numbers = #tpu.dot_dimension_numbers<[1], [0], [0], [1], [0, 0, 1, 1], [], []>} : vector<24x128xf32>, vector<128x128xf32>, vector<24x128xf32> -> vector<24x128xf32>
    %184 = arith.addf %180, %183 : vector<24x128xf32>
    %185 = vector.extract_strided_slice %171 {offsets = [72, 0], sizes = [24, 128], strides = [1, 1]} : vector<144x128xf32> to vector<24x128xf32>
    %c384 = arith.constant 384 : index
    %c0_30 = arith.constant 0 : index
    %186 = vector.load %arg8[%c384, %c0_30] : memref<768x128xf32, #tpu.memory_space<vmem>>, vector<128x128xf32>
    %cst_31 = arith.constant dense<0.000000e+00> : vector<24x128xf32>
    %187 = tpu.matmul %185, %186, %cst_31 {dimension_numbers = #tpu.dot_dimension_numbers<[1], [0], [0], [1], [0, 0, 1, 1], [], []>} : vector<24x128xf32>, vector<128x128xf32>, vector<24x128xf32> -> vector<24x128xf32>
    %188 = arith.addf %184, %187 : vector<24x128xf32>
    %189 = vector.extract_strided_slice %171 {offsets = [96, 0], sizes = [24, 128], strides = [1, 1]} : vector<144x128xf32> to vector<24x128xf32>
    %c512 = arith.constant 512 : index
    %c0_32 = arith.constant 0 : index
    %190 = vector.load %arg8[%c512, %c0_32] : memref<768x128xf32, #tpu.memory_space<vmem>>, vector<128x128xf32>
    %cst_33 = arith.constant dense<0.000000e+00> : vector<24x128xf32>
    %191 = tpu.matmul %189, %190, %cst_33 {dimension_numbers = #tpu.dot_dimension_numbers<[1], [0], [0], [1], [0, 0, 1, 1], [], []>} : vector<24x128xf32>, vector<128x128xf32>, vector<24x128xf32> -> vector<24x128xf32>
    %192 = arith.addf %188, %191 : vector<24x128xf32>
    %193 = vector.extract_strided_slice %171 {offsets = [120, 0], sizes = [24, 128], strides = [1, 1]} : vector<144x128xf32> to vector<24x128xf32>
    %c640 = arith.constant 640 : index
    %c0_34 = arith.constant 0 : index
    %194 = vector.load %arg8[%c640, %c0_34] : memref<768x128xf32, #tpu.memory_space<vmem>>, vector<128x128xf32>
    %cst_35 = arith.constant dense<0.000000e+00> : vector<24x128xf32>
    %195 = tpu.matmul %193, %194, %cst_35 {dimension_numbers = #tpu.dot_dimension_numbers<[1], [0], [0], [1], [0, 0, 1, 1], [], []>} : vector<24x128xf32>, vector<128x128xf32>, vector<24x128xf32> -> vector<24x128xf32>
    %196 = arith.addf %192, %195 : vector<24x128xf32>
    %c0_36 = arith.constant 0 : index
    %c0_37 = arith.constant 0 : index
    %197 = vector.load %arg9[%c0_36, %c0_37] : memref<1x128xf32, #tpu.memory_space<vmem>>, vector<1x128xf32>
    %198 = vector.broadcast %197 : vector<1x128xf32> to vector<24x128xf32>
    %199 = arith.addf %196, %198 : vector<24x128xf32>
    %cst_38 = arith.constant 0.000000e+00 : f32
    %200 = vector.broadcast %cst_38 : f32 to vector<24x128xf32>
    %201 = arith.maximumf %199, %200 : vector<24x128xf32>
    %c0_39 = arith.constant 0 : index
    %c0_40 = arith.constant 0 : index
    %202 = vector.load %arg10[%c0_39, %c0_40] : memref<128x128xf32, #tpu.memory_space<vmem>>, vector<128x128xf32>
    %cst_41 = arith.constant dense<0.000000e+00> : vector<24x128xf32>
    %203 = tpu.matmul %201, %202, %cst_41 {dimension_numbers = #tpu.dot_dimension_numbers<[1], [0], [0], [1], [0, 0, 1, 1], [], []>} : vector<24x128xf32>, vector<128x128xf32>, vector<24x128xf32> -> vector<24x128xf32>
    %c0_42 = arith.constant 0 : index
    %c0_43 = arith.constant 0 : index
    %204 = vector.load %arg11[%c0_42, %c0_43] : memref<1x128xf32, #tpu.memory_space<vmem>>, vector<1x128xf32>
    %205 = vector.broadcast %204 : vector<1x128xf32> to vector<24x128xf32>
    %206 = arith.addf %203, %205 : vector<24x128xf32>
    %c0_44 = arith.constant 0 : index
    %c0_45 = arith.constant 0 : index
    %207 = vector.load %arg12[%c0_44, %c0_45] : memref<24x128xf32, #tpu.memory_space<vmem>>, vector<24x128xf32>
    tpu.vector_store %arg12[%c0_44, %c0_45], %206 {strides = array<i32>} : memref<24x128xf32, #tpu.memory_space<vmem>>, vector<24x128xf32>,
    return
  }
  func.func @transform_0(%arg0: i32) -> (i32, i32, i32) {
    %c0_i32 = arith.constant 0 : i32
    %c0_i32_0 = arith.constant 0 : i32
    %c0_i32_1 = arith.constant 0 : i32
    return %arg0, %c0_i32, %c0_i32_0 : i32, i32, i32
  }
  func.func @transform_1(%arg0: i32) -> (i32, i32) {
    %c0_i32 = arith.constant 0 : i32
    %c0_i32_0 = arith.constant 0 : i32
    %c0_i32_1 = arith.constant 0 : i32
    return %c0_i32, %c0_i32_0 : i32, i32
  }
  func.func @transform_2(%arg0: i32) -> (i32, i32) {
    %c0_i32 = arith.constant 0 : i32
    %c0_i32_0 = arith.constant 0 : i32
    %c0_i32_1 = arith.constant 0 : i32
    return %c0_i32, %c0_i32_0 : i32, i32
  }
  func.func @transform_3(%arg0: i32) -> (i32, i32) {
    %c0_i32 = arith.constant 0 : i32
    %c0_i32_0 = arith.constant 0 : i32
    %c0_i32_1 = arith.constant 0 : i32
    return %c0_i32, %c0_i32_0 : i32, i32
  }
  func.func @transform_4(%arg0: i32) -> (i32, i32) {
    %c0_i32 = arith.constant 0 : i32
    %c0_i32_0 = arith.constant 0 : i32
    %c0_i32_1 = arith.constant 0 : i32
    return %c0_i32, %c0_i32_0 : i32, i32
  }
  func.func @transform_5(%arg0: i32) -> (i32, i32) {
    %c0_i32 = arith.constant 0 : i32
    %c0_i32_0 = arith.constant 0 : i32
    %c0_i32_1 = arith.constant 0 : i32
    return %c0_i32, %c0_i32_0 : i32, i32
  }
  func.func @transform_6(%arg0: i32) -> (i32, i32) {
    %c0_i32 = arith.constant 0 : i32
    %c0_i32_0 = arith.constant 0 : i32
    %c0_i32_1 = arith.constant 0 : i32
    return %c0_i32, %c0_i32_0 : i32, i32
  }
  func.func @transform_7(%arg0: i32) -> (i32, i32) {
    %c0_i32 = arith.constant 0 : i32
    %c0_i32_0 = arith.constant 0 : i32
    %c0_i32_1 = arith.constant 0 : i32
    return %c0_i32, %c0_i32_0 : i32, i32
  }
  func.func @transform_8(%arg0: i32) -> (i32, i32) {
    %c0_i32 = arith.constant 0 : i32
    %c0_i32_0 = arith.constant 0 : i32
    %c0_i32_1 = arith.constant 0 : i32
    return %c0_i32, %c0_i32_0 : i32, i32
  }
  func.func @transform_9(%arg0: i32) -> (i32, i32) {
    %c0_i32 = arith.constant 0 : i32
    %c0_i32_0 = arith.constant 0 : i32
    %c0_i32_1 = arith.constant 0 : i32
    return %c0_i32, %c0_i32_0 : i32, i32
  }
  func.func @transform_10(%arg0: i32) -> (i32, i32) {
    %c0_i32 = arith.constant 0 : i32
    %c0_i32_0 = arith.constant 0 : i32
    %c0_i32_1 = arith.constant 0 : i32
    return %c0_i32, %c0_i32_0 : i32, i32
  }
  func.func @transform_11(%arg0: i32) -> (i32, i32) {
    %c0_i32 = arith.constant 0 : i32
    %c0_i32_0 = arith.constant 0 : i32
    return %arg0, %c0_i32 : i32, i32
  }
}

</mosaic_0001>

<llo_original>
// kernel: tpu_custom_call.1
$region0: #{tpu_custom_call.1}
  #allocation0 [shape = 'u32[]', space=smem, size = 0x4, offset = 0x4, fixed_abs, tag = 'smem constant byte address 0x4 - core index']
  #allocation1 [shape = 'u32[72,128]{1,0:T(1,128)}', space=vmem, size = 0x9000, scoped, tag = 'internal scratch']
  %s0 = inlined_call_operand.vmem [shape: f32[1,1152,4], index: 0, kind: input, shape index: {}]
  %s1 = inlined_call_operand.vmem [shape: f32[12,32], index: 1, kind: input, shape index: {}]
  %s2 = inlined_call_operand.vmem [shape: f32[1,32], index: 2, kind: input, shape index: {}]
  %s3 = inlined_call_operand.vmem [shape: f32[96,64], index: 3, kind: input, shape index: {}]
  %s4 = inlined_call_operand.vmem [shape: f32[1,64], index: 4, kind: input, shape index: {}]
  %s5 = inlined_call_operand.vmem [shape: f32[192,128], index: 5, kind: input, shape index: {}]
  %s6 = inlined_call_operand.vmem [shape: f32[1,128], index: 6, kind: input, shape index: {}]
  %s7 = inlined_call_operand.vmem [shape: f32[768,128], index: 7, kind: input, shape index: {}]
  %s8 = inlined_call_operand.vmem [shape: f32[1,128], index: 8, kind: input, shape index: {}]
  %s9 = inlined_call_operand.vmem [shape: f32[128,128], index: 9, kind: input, shape index: {}]
  %s10 = inlined_call_operand.vmem [shape: f32[1,128], index: 10, kind: input, shape index: {}]
  %s11 = inlined_call_operand.hbm [shape: f32[24,128], index: 11, kind: output, shape index: {}]
  %s12 = sld [smem:[#allocation0]]
  $region54: #{tpu_custom_call.1} parent=0
    _
  %s14 = ssub.s32 1, %s12
  %s15 = scalar_select 0, %s14, %s12
  $region1: #{tpu_custom_call.1} parent=0
    #allocation2 [shape = 'u8[12288]{0}', space=vmem, size = 0x3000, scoped, tag = 'output window, operand 0, single buffered']
    #allocation3 [shape = 's32[1]{0}', space=sflag, size = 0x4, scoped, tag = 'scoped memory for tpu_custom_call.1']
    %16 = vsyncpa [#allocation3], 0
    // Predicated region
    $region2: #{tpu_custom_call.1} parent=1 // pred_check
      _
    $region3: #{tpu_custom_call.1} parent=1 // pred_check_branch
      %18 = sbr.rel (0) target = $region5
    $region4: #{tpu_custom_call.1} parent=1 // pred_region
      _
    $region5: #{tpu_custom_call.1} parent=1 // pred_fallthru
      _
    // Predicated region
    $region6: #{tpu_custom_call.1} parent=1 // pred_check
      _
    $region7: #{tpu_custom_call.1} parent=1 // pred_check_branch
      %20 = sbr.rel (0) target = $region9
    $region8: #{tpu_custom_call.1} parent=1 // pred_region
      _
    $region9: #{tpu_custom_call.1} parent=1 // pred_fallthru
      _
    // Predicated region
    $region10: #{tpu_custom_call.1} parent=1 // pred_check
      _
    $region11: #{tpu_custom_call.1} parent=1 // pred_check_branch
      %22 = sbr.rel (0) target = $region13
    $region12: #{tpu_custom_call.1} parent=1 // pred_region
      _
    $region13: #{tpu_custom_call.1} parent=1 // pred_fallthru
      _
    // Predicated region
    $region14: #{tpu_custom_call.1} parent=1 // pred_check
      _
    $region15: #{tpu_custom_call.1} parent=1 // pred_check_branch
      %24 = sbr.rel (0) target = $region17
    $region16: #{tpu_custom_call.1} parent=1 // pred_region
      _
    $region17: #{tpu_custom_call.1} parent=1 // pred_fallthru
      _
    // Predicated region
    $region18: #{tpu_custom_call.1} parent=1 // pred_check
      _
    $region19: #{tpu_custom_call.1} parent=1 // pred_check_branch
      %26 = sbr.rel (0) target = $region21
    $region20: #{tpu_custom_call.1} parent=1 // pred_region
      _
    $region21: #{tpu_custom_call.1} parent=1 // pred_fallthru
      _
    // Predicated region
    $region22: #{tpu_custom_call.1} parent=1 // pred_check
      _
    $region23: #{tpu_custom_call.1} parent=1 // pred_check_branch
      %28 = sbr.rel (0) target = $region25
    $region24: #{tpu_custom_call.1} parent=1 // pred_region
      _
    $region25: #{tpu_custom_call.1} parent=1 // pred_fallthru
      _
    // Predicated region
    $region26: #{tpu_custom_call.1} parent=1 // pred_check
      _
    $region27: #{tpu_custom_call.1} parent=1 // pred_check_branch
      %30 = sbr.rel (0) target = $region29
    $region28: #{tpu_custom_call.1} parent=1 // pred_region
      _
    $region29: #{tpu_custom_call.1} parent=1 // pred_fallthru
      _
    // Predicated region
    $region30: #{tpu_custom_call.1} parent=1 // pred_check
      _
    $region31: #{tpu_custom_call.1} parent=1 // pred_check_branch
      %32 = sbr.rel (0) target = $region33
    $region32: #{tpu_custom_call.1} parent=1 // pred_region
      _
    $region33: #{tpu_custom_call.1} parent=1 // pred_fallthru
      _
    // Predicated region
    $region34: #{tpu_custom_call.1} parent=1 // pred_check
      _
    $region35: #{tpu_custom_call.1} parent=1 // pred_check_branch
      %34 = sbr.rel (0) target = $region37
    $region36: #{tpu_custom_call.1} parent=1 // pred_region
      _
    $region37: #{tpu_custom_call.1} parent=1 // pred_fallthru
      _
    // Predicated region
    $region38: #{tpu_custom_call.1} parent=1 // pred_check
      _
    $region39: #{tpu_custom_call.1} parent=1 // pred_check_branch
      %36 = sbr.rel (0) target = $region41
    $region40: #{tpu_custom_call.1} parent=1 // pred_region
      _
    $region41: #{tpu_custom_call.1} parent=1 // pred_fallthru
      _
    // Predicated region
    $region42: #{tpu_custom_call.1} parent=1 // pred_check
      _
    $region43: #{tpu_custom_call.1} parent=1 // pred_check_branch
      %38 = sbr.rel (0) target = $region45
    $region44: #{tpu_custom_call.1} parent=1 // pred_region
      _
    $region45: #{tpu_custom_call.1} parent=1 // pred_fallthru
      _
    %v39 = vld [vmem:[%s0] sm:$0xff]
    %v40 = vld [vmem:[%s0 + $0x8] sm:$0xff]
    %v41 = vld [vmem:[%s0 + $0x10] sm:$0xff]
    %v42 = vld [vmem:[%s0 + $0x18] sm:$0xff]
    %v43 = vld [vmem:[%s0 + $0x20] sm:$0xff]
    %v44 = vld [vmem:[%s0 + $0x28] sm:$0xff]
    %v45 = vld [vmem:[%s0 + $0x30] sm:$0xff]
    %v46 = vld [vmem:[%s0 + $0x38] sm:$0xff]
    %v47 = vld [vmem:[%s0 + $0x40] sm:$0xff]
    %v48 = vld [vmem:[%s0 + $0x48] sm:$0xff]
    %v49 = vld [vmem:[%s0 + $0x50] sm:$0xff]
    %v50 = vld [vmem:[%s0 + $0x58] sm:$0xff]
    %v51 = vld [vmem:[%s0 + $0x60] sm:$0xff]
    %v52 = vld [vmem:[%s0 + $0x68] sm:$0xff]
    %v53 = vld [vmem:[%s0 + $0x70] sm:$0xff]
    %v54 = vld [vmem:[%s0 + $0x78] sm:$0xff]
    %v55 = vld [vmem:[%s0 + $0x80] sm:$0xff]
    %v56 = vld [vmem:[%s0 + $0x88] sm:$0xff]
    %v57 = vld [vmem:[%s0 + $0x90] sm:$0xff]
    %v58 = vld [vmem:[%s0 + $0x98] sm:$0xff]
    %v59 = vld [vmem:[%s0 + $0xa0] sm:$0xff]
    %v60 = vld [vmem:[%s0 + $0xa8] sm:$0xff]
    %v61 = vld [vmem:[%s0 + $0xb0] sm:$0xff]
    %v62 = vld [vmem:[%s0 + $0xb8] sm:$0xff]
    %v63 = vld [vmem:[%s0 + $0xc0] sm:$0xff]
    %v64 = vld [vmem:[%s0 + $0xc8] sm:$0xff]
    %v65 = vld [vmem:[%s0 + $0xd0] sm:$0xff]
    %v66 = vld [vmem:[%s0 + $0xd8] sm:$0xff]
    %v67 = vld [vmem:[%s0 + $0xe0] sm:$0xff]
    %v68 = vld [vmem:[%s0 + $0xe8] sm:$0xff]
    %v69 = vld [vmem:[%s0 + $0xf0] sm:$0xff]
    %v70 = vld [vmem:[%s0 + $0xf8] sm:$0xff]
    %v71 = vld [vmem:[%s0 + $0x100] sm:$0xff]
    %v72 = vld [vmem:[%s0 + $0x108] sm:$0xff]
    %v73 = vld [vmem:[%s0 + $0x110] sm:$0xff]
    %v74 = vld [vmem:[%s0 + $0x118] sm:$0xff]
    %v75 = vld [vmem:[%s0 + $0x120] sm:$0xff]
    %v76 = vld [vmem:[%s0 + $0x128] sm:$0xff]
    %v77 = vld [vmem:[%s0 + $0x130] sm:$0xff]
    %v78 = vld [vmem:[%s0 + $0x138] sm:$0xff]
    %v79 = vld [vmem:[%s0 + $0x140] sm:$0xff]
    %v80 = vld [vmem:[%s0 + $0x148] sm:$0xff]
    %v81 = vld [vmem:[%s0 + $0x150] sm:$0xff]
    %v82 = vld [vmem:[%s0 + $0x158] sm:$0xff]
    %v83 = vld [vmem:[%s0 + $0x160] sm:$0xff]
    %v84 = vld [vmem:[%s0 + $0x168] sm:$0xff]
    %v85 = vld [vmem:[%s0 + $0x170] sm:$0xff]
    %v86 = vld [vmem:[%s0 + $0x178] sm:$0xff]
    %v87 = vld [vmem:[%s0 + $0x180] sm:$0xff]
    %v88 = vld [vmem:[%s0 + $0x188] sm:$0xff]
    %v89 = vld [vmem:[%s0 + $0x190] sm:$0xff]
    %v90 = vld [vmem:[%s0 + $0x198] sm:$0xff]
    %v91 = vld [vmem:[%s0 + $0x1a0] sm:$0xff]
    %v92 = vld [vmem:[%s0 + $0x1a8] sm:$0xff]
    %v93 = vld [vmem:[%s0 + $0x1b0] sm:$0xff]
    %v94 = vld [vmem:[%s0 + $0x1b8] sm:$0xff]
    %v95 = vld [vmem:[%s0 + $0x1c0] sm:$0xff]
    %v96 = vld [vmem:[%s0 + $0x1c8] sm:$0xff]
    %v97 = vld [vmem:[%s0 + $0x1d0] sm:$0xff]
    %v98 = vld [vmem:[%s0 + $0x1d8] sm:$0xff]
    %v99 = vld [vmem:[%s0 + $0x1e0] sm:$0xff]
    %v100 = vld [vmem:[%s0 + $0x1e8] sm:$0xff]
    %v101 = vld [vmem:[%s0 + $0x1f0] sm:$0xff]
    %v102 = vld [vmem:[%s0 + $0x1f8] sm:$0xff]
    %v103 = vld [vmem:[%s0 + $0x200] sm:$0xff]
    %v104 = vld [vmem:[%s0 + $0x208] sm:$0xff]
    %v105 = vld [vmem:[%s0 + $0x210] sm:$0xff]
    %v106 = vld [vmem:[%s0 + $0x218] sm:$0xff]
    %v107 = vld [vmem:[%s0 + $0x220] sm:$0xff]
    %v108 = vld [vmem:[%s0 + $0x228] sm:$0xff]
    %v109 = vld [vmem:[%s0 + $0x230] sm:$0xff]
    %v110 = vld [vmem:[%s0 + $0x238] sm:$0xff]
    %v111 = vld [vmem:[%s0 + $0x240] sm:$0xff]
    %v112 = vld [vmem:[%s0 + $0x248] sm:$0xff]
    %v113 = vld [vmem:[%s0 + $0x250] sm:$0xff]
    %v114 = vld [vmem:[%s0 + $0x258] sm:$0xff]
    %v115 = vld [vmem:[%s0 + $0x260] sm:$0xff]
    %v116 = vld [vmem:[%s0 + $0x268] sm:$0xff]
    %v117 = vld [vmem:[%s0 + $0x270] sm:$0xff]
    %v118 = vld [vmem:[%s0 + $0x278] sm:$0xff]
    %v119 = vld [vmem:[%s0 + $0x280] sm:$0xff]
    %v120 = vld [vmem:[%s0 + $0x288] sm:$0xff]
    %v121 = vld [vmem:[%s0 + $0x290] sm:$0xff]
    %v122 = vld [vmem:[%s0 + $0x298] sm:$0xff]
    %v123 = vld [vmem:[%s0 + $0x2a0] sm:$0xff]
    %v124 = vld [vmem:[%s0 + $0x2a8] sm:$0xff]
    %v125 = vld [vmem:[%s0 + $0x2b0] sm:$0xff]
    %v126 = vld [vmem:[%s0 + $0x2b8] sm:$0xff]
    %v127 = vld [vmem:[%s0 + $0x2c0] sm:$0xff]
    %v128 = vld [vmem:[%s0 + $0x2c8] sm:$0xff]
    %v129 = vld [vmem:[%s0 + $0x2d0] sm:$0xff]
    %v130 = vld [vmem:[%s0 + $0x2d8] sm:$0xff]
    %v131 = vld [vmem:[%s0 + $0x2e0] sm:$0xff]
    %v132 = vld [vmem:[%s0 + $0x2e8] sm:$0xff]
    %v133 = vld [vmem:[%s0 + $0x2f0] sm:$0xff]
    %v134 = vld [vmem:[%s0 + $0x2f8] sm:$0xff]
    %v135 = vld [vmem:[%s0 + $0x300] sm:$0xff]
    %v136 = vld [vmem:[%s0 + $0x308] sm:$0xff]
    %v137 = vld [vmem:[%s0 + $0x310] sm:$0xff]
    %v138 = vld [vmem:[%s0 + $0x318] sm:$0xff]
    %v139 = vld [vmem:[%s0 + $0x320] sm:$0xff]
    %v140 = vld [vmem:[%s0 + $0x328] sm:$0xff]
    %v141 = vld [vmem:[%s0 + $0x330] sm:$0xff]
    %v142 = vld [vmem:[%s0 + $0x338] sm:$0xff]
    %v143 = vld [vmem:[%s0 + $0x340] sm:$0xff]
    %v144 = vld [vmem:[%s0 + $0x348] sm:$0xff]
    %v145 = vld [vmem:[%s0 + $0x350] sm:$0xff]
    %v146 = vld [vmem:[%s0 + $0x358] sm:$0xff]
    %v147 = vld [vmem:[%s0 + $0x360] sm:$0xff]
    %v148 = vld [vmem:[%s0 + $0x368] sm:$0xff]
    %v149 = vld [vmem:[%s0 + $0x370] sm:$0xff]
    %v150 = vld [vmem:[%s0 + $0x378] sm:$0xff]
    %v151 = vld [vmem:[%s0 + $0x380] sm:$0xff]
    %v152 = vld [vmem:[%s0 + $0x388] sm:$0xff]
    %v153 = vld [vmem:[%s0 + $0x390] sm:$0xff]
    %v154 = vld [vmem:[%s0 + $0x398] sm:$0xff]
    %v155 = vld [vmem:[%s0 + $0x3a0] sm:$0xff]
    %v156 = vld [vmem:[%s0 + $0x3a8] sm:$0xff]
    %v157 = vld [vmem:[%s0 + $0x3b0] sm:$0xff]
    %v158 = vld [vmem:[%s0 + $0x3b8] sm:$0xff]
    %v159 = vld [vmem:[%s0 + $0x3c0] sm:$0xff]
    %v160 = vld [vmem:[%s0 + $0x3c8] sm:$0xff]
    %v161 = vld [vmem:[%s0 + $0x3d0] sm:$0xff]
    %v162 = vld [vmem:[%s0 + $0x3d8] sm:$0xff]
    %v163 = vld [vmem:[%s0 + $0x3e0] sm:$0xff]
    %v164 = vld [vmem:[%s0 + $0x3e8] sm:$0xff]
    %v165 = vld [vmem:[%s0 + $0x3f0] sm:$0xff]
    %v166 = vld [vmem:[%s0 + $0x3f8] sm:$0xff]
    %v167 = vld [vmem:[%s0 + $0x400] sm:$0xff]
    %v168 = vld [vmem:[%s0 + $0x408] sm:$0xff]
    %v169 = vld [vmem:[%s0 + $0x410] sm:$0xff]
    %v170 = vld [vmem:[%s0 + $0x418] sm:$0xff]
    %v171 = vld [vmem:[%s0 + $0x420] sm:$0xff]
    %v172 = vld [vmem:[%s0 + $0x428] sm:$0xff]
    %v173 = vld [vmem:[%s0 + $0x430] sm:$0xff]
    %v174 = vld [vmem:[%s0 + $0x438] sm:$0xff]
    %v175 = vld [vmem:[%s0 + $0x440] sm:$0xff]
    %v176 = vld [vmem:[%s0 + $0x448] sm:$0xff]
    %v177 = vld [vmem:[%s0 + $0x450] sm:$0xff]
    %v178 = vld [vmem:[%s0 + $0x458] sm:$0xff]
    %v179 = vld [vmem:[%s0 + $0x460] sm:$0xff]
    %v180 = vld [vmem:[%s0 + $0x468] sm:$0xff]
    %v181 = vld [vmem:[%s0 + $0x470] sm:$0xff]
    %v182 = vld [vmem:[%s0 + $0x478] sm:$0xff]
    %327 = vrot.lane.b32.xlu0 %v39, 4
    %v328 = vpop.permute.xlu0 %327
    %329 = vrot.lane.b32.xlu0 %v40, 4
    %v330 = vpop.permute.xlu0 %329
    %331 = vrot.lane.b32.xlu0 %v41, 4
    %v332 = vpop.permute.xlu0 %331
    %333 = vrot.lane.b32.xlu0 %v42, 4
    %v334 = vpop.permute.xlu0 %333
    %335 = vrot.lane.b32.xlu0 %v43, 4
    %v336 = vpop.permute.xlu0 %335
    %337 = vrot.lane.b32.xlu0 %v44, 4
    %v338 = vpop.permute.xlu0 %337
    %339 = vrot.lane.b32.xlu0 %v45, 4
    %v340 = vpop.permute.xlu0 %339
    %341 = vrot.lane.b32.xlu0 %v46, 4
    %v342 = vpop.permute.xlu0 %341
    %343 = vrot.lane.b32.xlu0 %v47, 4
    %v344 = vpop.permute.xlu0 %343
    %345 = vrot.lane.b32.xlu0 %v48, 4
    %v346 = vpop.permute.xlu0 %345
    %347 = vrot.lane.b32.xlu0 %v49, 4
    %v348 = vpop.permute.xlu0 %347
    %349 = vrot.lane.b32.xlu0 %v50, 4
    %v350 = vpop.permute.xlu0 %349
    %351 = vrot.lane.b32.xlu0 %v51, 4
    %v352 = vpop.permute.xlu0 %351
    %353 = vrot.lane.b32.xlu0 %v52, 4
    %v354 = vpop.permute.xlu0 %353
    %355 = vrot.lane.b32.xlu0 %v53, 4
    %v356 = vpop.permute.xlu0 %355
    %357 = vrot.lane.b32.xlu0 %v54, 4
    %v358 = vpop.permute.xlu0 %357
    %359 = vrot.lane.b32.xlu0 %v55, 4
    %v360 = vpop.permute.xlu0 %359
    %361 = vrot.lane.b32.xlu0 %v56, 4
    %v362 = vpop.permute.xlu0 %361
    %363 = vrot.lane.b32.xlu0 %v57, 4
    %v364 = vpop.permute.xlu0 %363
    %365 = vrot.lane.b32.xlu0 %v58, 4
    %v366 = vpop.permute.xlu0 %365
    %367 = vrot.lane.b32.xlu0 %v59, 4
    %v368 = vpop.permute.xlu0 %367
    %369 = vrot.lane.b32.xlu0 %v60, 4
    %v370 = vpop.permute.xlu0 %369
    %371 = vrot.lane.b32.xlu0 %v61, 4
    %v372 = vpop.permute.xlu0 %371
    %373 = vrot.lane.b32.xlu0 %v62, 4
    %v374 = vpop.permute.xlu0 %373
    %375 = vrot.lane.b32.xlu0 %v63, 4
    %v376 = vpop.permute.xlu0 %375
    %377 = vrot.lane.b32.xlu0 %v64, 4
    %v378 = vpop.permute.xlu0 %377
    %379 = vrot.lane.b32.xlu0 %v65, 4
    %v380 = vpop.permute.xlu0 %379
    %381 = vrot.lane.b32.xlu0 %v66, 4
    %v382 = vpop.permute.xlu0 %381
    %383 = vrot.lane.b32.xlu0 %v67, 4
    %v384 = vpop.permute.xlu0 %383
    %385 = vrot.lane.b32.xlu0 %v68, 4
    %v386 = vpop.permute.xlu0 %385
    %387 = vrot.lane.b32.xlu0 %v69, 4
    %v388 = vpop.permute.xlu0 %387
    %389 = vrot.lane.b32.xlu0 %v70, 4
    %v390 = vpop.permute.xlu0 %389
    %391 = vrot.lane.b32.xlu0 %v71, 4
    %v392 = vpop.permute.xlu0 %391
    %393 = vrot.lane.b32.xlu0 %v72, 4
    %v394 = vpop.permute.xlu0 %393
    %395 = vrot.lane.b32.xlu0 %v73, 4
    %v396 = vpop.permute.xlu0 %395
    %397 = vrot.lane.b32.xlu0 %v74, 4
    %v398 = vpop.permute.xlu0 %397
    %399 = vrot.lane.b32.xlu0 %v75, 4
    %v400 = vpop.permute.xlu0 %399
    %401 = vrot.lane.b32.xlu0 %v76, 4
    %v402 = vpop.permute.xlu0 %401
    %403 = vrot.lane.b32.xlu0 %v77, 4
    %v404 = vpop.permute.xlu0 %403
    %405 = vrot.lane.b32.xlu0 %v78, 4
    %v406 = vpop.permute.xlu0 %405
    %407 = vrot.lane.b32.xlu0 %v79, 4
    %v408 = vpop.permute.xlu0 %407
    %409 = vrot.lane.b32.xlu0 %v80, 4
    %v410 = vpop.permute.xlu0 %409
    %411 = vrot.lane.b32.xlu0 %v81, 4
    %v412 = vpop.permute.xlu0 %411
    %413 = vrot.lane.b32.xlu0 %v82, 4
    %v414 = vpop.permute.xlu0 %413
    %415 = vrot.lane.b32.xlu0 %v83, 4
    %v416 = vpop.permute.xlu0 %415
    %417 = vrot.lane.b32.xlu0 %v84, 4
    %v418 = vpop.permute.xlu0 %417
    %419 = vrot.lane.b32.xlu0 %v85, 4
    %v420 = vpop.permute.xlu0 %419
    %421 = vrot.lane.b32.xlu0 %v86, 4
    %v422 = vpop.permute.xlu0 %421
    %423 = vrot.lane.b32.xlu0 %v87, 4
    %v424 = vpop.permute.xlu0 %423
    %425 = vrot.lane.b32.xlu0 %v88, 4
    %v426 = vpop.permute.xlu0 %425
    %427 = vrot.lane.b32.xlu0 %v89, 4
    %v428 = vpop.permute.xlu0 %427
    %429 = vrot.lane.b32.xlu0 %v90, 4
    %v430 = vpop.permute.xlu0 %429
    %431 = vrot.lane.b32.xlu0 %v91, 4
    %v432 = vpop.permute.xlu0 %431
    %433 = vrot.lane.b32.xlu0 %v92, 4
    %v434 = vpop.permute.xlu0 %433
    %435 = vrot.lane.b32.xlu0 %v93, 4
    %v436 = vpop.permute.xlu0 %435
    %437 = vrot.lane.b32.xlu0 %v94, 4
    %v438 = vpop.permute.xlu0 %437
    %439 = vrot.lane.b32.xlu0 %v95, 4
    %v440 = vpop.permute.xlu0 %439
    %441 = vrot.lane.b32.xlu0 %v96, 4
    %v442 = vpop.permute.xlu0 %441
    %443 = vrot.lane.b32.xlu0 %v97, 4
    %v444 = vpop.permute.xlu0 %443
    %445 = vrot.lane.b32.xlu0 %v98, 4
    %v446 = vpop.permute.xlu0 %445
    %447 = vrot.lane.b32.xlu0 %v99, 4
    %v448 = vpop.permute.xlu0 %447
    %449 = vrot.lane.b32.xlu0 %v100, 4
    %v450 = vpop.permute.xlu0 %449
    %451 = vrot.lane.b32.xlu0 %v101, 4
    %v452 = vpop.permute.xlu0 %451
    %453 = vrot.lane.b32.xlu0 %v102, 4
    %v454 = vpop.permute.xlu0 %453
    %455 = vrot.lane.b32.xlu0 %v103, 4
    %v456 = vpop.permute.xlu0 %455
    %457 = vrot.lane.b32.xlu0 %v104, 4
    %v458 = vpop.permute.xlu0 %457
    %459 = vrot.lane.b32.xlu0 %v105, 4
    %v460 = vpop.permute.xlu0 %459
    %461 = vrot.lane.b32.xlu0 %v106, 4
    %v462 = vpop.permute.xlu0 %461
    %463 = vrot.lane.b32.xlu0 %v107, 4
    %v464 = vpop.permute.xlu0 %463
    %465 = vrot.lane.b32.xlu0 %v108, 4
    %v466 = vpop.permute.xlu0 %465
    %467 = vrot.lane.b32.xlu0 %v109, 4
    %v468 = vpop.permute.xlu0 %467
    %469 = vrot.lane.b32.xlu0 %v110, 4
    %v470 = vpop.permute.xlu0 %469
    %471 = vrot.lane.b32.xlu0 %v111, 4
    %v472 = vpop.permute.xlu0 %471
    %473 = vrot.lane.b32.xlu0 %v112, 4
    %v474 = vpop.permute.xlu0 %473
    %475 = vrot.lane.b32.xlu0 %v113, 4
    %v476 = vpop.permute.xlu0 %475
    %477 = vrot.lane.b32.xlu0 %v114, 4
    %v478 = vpop.permute.xlu0 %477
    %479 = vrot.lane.b32.xlu0 %v115, 4
    %v480 = vpop.permute.xlu0 %479
    %481 = vrot.lane.b32.xlu0 %v116, 4
    %v482 = vpop.permute.xlu0 %481
    %483 = vrot.lane.b32.xlu0 %v117, 4
    %v484 = vpop.permute.xlu0 %483
    %485 = vrot.lane.b32.xlu0 %v118, 4
    %v486 = vpop.permute.xlu0 %485
    %487 = vrot.lane.b32.xlu0 %v119, 4
    %v488 = vpop.permute.xlu0 %487
    %489 = vrot.lane.b32.xlu0 %v120, 4
    %v490 = vpop.permute.xlu0 %489
    %491 = vrot.lane.b32.xlu0 %v121, 4
    %v492 = vpop.permute.xlu0 %491
    %493 = vrot.lane.b32.xlu0 %v122, 4
    %v494 = vpop.permute.xlu0 %493
    %495 = vrot.lane.b32.xlu0 %v123, 4
    %v496 = vpop.permute.xlu0 %495
    %497 = vrot.lane.b32.xlu0 %v124, 4
    %v498 = vpop.permute.xlu0 %497
    %499 = vrot.lane.b32.xlu0 %v125, 4
    %v500 = vpop.permute.xlu0 %499
    %501 = vrot.lane.b32.xlu0 %v126, 4
    %v502 = vpop.permute.xlu0 %501
    %503 = vrot.lane.b32.xlu0 %v127, 4
    %v504 = vpop.permute.xlu0 %503
    %505 = vrot.lane.b32.xlu0 %v128, 4
    %v506 = vpop.permute.xlu0 %505
    %507 = vrot.lane.b32.xlu0 %v129, 4
    %v508 = vpop.permute.xlu0 %507
    %509 = vrot.lane.b32.xlu0 %v130, 4
    %v510 = vpop.permute.xlu0 %509
    %511 = vrot.lane.b32.xlu0 %v131, 4
    %v512 = vpop.permute.xlu0 %511
    %513 = vrot.lane.b32.xlu0 %v132, 4
    %v514 = vpop.permute.xlu0 %513
    %515 = vrot.lane.b32.xlu0 %v133, 4
    %v516 = vpop.permute.xlu0 %515
    %517 = vrot.lane.b32.xlu0 %v134, 4
    %v518 = vpop.permute.xlu0 %517
    %519 = vrot.lane.b32.xlu0 %v135, 4
    %v520 = vpop.permute.xlu0 %519
    %521 = vrot.lane.b32.xlu0 %v136, 4
    %v522 = vpop.permute.xlu0 %521
    %523 = vrot.lane.b32.xlu0 %v137, 4
    %v524 = vpop.permute.xlu0 %523
    %525 = vrot.lane.b32.xlu0 %v138, 4
    %v526 = vpop.permute.xlu0 %525
    %527 = vrot.lane.b32.xlu0 %v139, 4
    %v528 = vpop.permute.xlu0 %527
    %529 = vrot.lane.b32.xlu0 %v140, 4
    %v530 = vpop.permute.xlu0 %529
    %531 = vrot.lane.b32.xlu0 %v141, 4
    %v532 = vpop.permute.xlu0 %531
    %533 = vrot.lane.b32.xlu0 %v142, 4
    %v534 = vpop.permute.xlu0 %533
    %535 = vrot.lane.b32.xlu0 %v143, 4
    %v536 = vpop.permute.xlu0 %535
    %537 = vrot.lane.b32.xlu0 %v144, 4
    %v538 = vpop.permute.xlu0 %537
    %539 = vrot.lane.b32.xlu0 %v145, 4
    %v540 = vpop.permute.xlu0 %539
    %541 = vrot.lane.b32.xlu0 %v146, 4
    %v542 = vpop.permute.xlu0 %541
    %543 = vrot.lane.b32.xlu0 %v147, 4
    %v544 = vpop.permute.xlu0 %543
    %545 = vrot.lane.b32.xlu0 %v148, 4
    %v546 = vpop.permute.xlu0 %545
    %547 = vrot.lane.b32.xlu0 %v149, 4
    %v548 = vpop.permute.xlu0 %547
    %549 = vrot.lane.b32.xlu0 %v150, 4
    %v550 = vpop.permute.xlu0 %549
    %551 = vrot.lane.b32.xlu0 %v151, 4
    %v552 = vpop.permute.xlu0 %551
    %553 = vrot.lane.b32.xlu0 %v152, 4
    %v554 = vpop.permute.xlu0 %553
    %555 = vrot.lane.b32.xlu0 %v153, 4
    %v556 = vpop.permute.xlu0 %555
    %557 = vrot.lane.b32.xlu0 %v154, 4
    %v558 = vpop.permute.xlu0 %557
    %559 = vrot.lane.b32.xlu0 %v155, 4
    %v560 = vpop.permute.xlu0 %559
    %561 = vrot.lane.b32.xlu0 %v156, 4
    %v562 = vpop.permute.xlu0 %561
    %563 = vrot.lane.b32.xlu0 %v157, 4
    %v564 = vpop.permute.xlu0 %563
    %565 = vrot.lane.b32.xlu0 %v158, 4
    %v566 = vpop.permute.xlu0 %565
    %567 = vrot.lane.b32.xlu0 %v159, 4
    %v568 = vpop.permute.xlu0 %567
    %569 = vrot.lane.b32.xlu0 %v160, 4
    %v570 = vpop.permute.xlu0 %569
    %571 = vrot.lane.b32.xlu0 %v161, 4
    %v572 = vpop.permute.xlu0 %571
    %573 = vrot.lane.b32.xlu0 %v162, 4
    %v574 = vpop.permute.xlu0 %573
    %575 = vrot.lane.b32.xlu0 %v163, 4
    %v576 = vpop.permute.xlu0 %575
    %577 = vrot.lane.b32.xlu0 %v164, 4
    %v578 = vpop.permute.xlu0 %577
    %579 = vrot.lane.b32.xlu0 %v165, 4
    %v580 = vpop.permute.xlu0 %579
    %581 = vrot.lane.b32.xlu0 %v166, 4
    %v582 = vpop.permute.xlu0 %581
    %583 = vrot.lane.b32.xlu0 %v167, 4
    %v584 = vpop.permute.xlu0 %583
    %585 = vrot.lane.b32.xlu0 %v168, 4
    %v586 = vpop.permute.xlu0 %585
    %587 = vrot.lane.b32.xlu0 %v169, 4
    %v588 = vpop.permute.xlu0 %587
    %589 = vrot.lane.b32.xlu0 %v170, 4
    %v590 = vpop.permute.xlu0 %589
    %591 = vrot.lane.b32.xlu0 %v171, 4
    %v592 = vpop.permute.xlu0 %591
    %593 = vrot.lane.b32.xlu0 %v172, 4
    %v594 = vpop.permute.xlu0 %593
    %595 = vrot.lane.b32.xlu0 %v173, 4
    %v596 = vpop.permute.xlu0 %595
    %597 = vrot.lane.b32.xlu0 %v174, 4
    %v598 = vpop.permute.xlu0 %597
    %599 = vrot.lane.b32.xlu0 %v175, 4
    %v600 = vpop.permute.xlu0 %599
    %601 = vrot.lane.b32.xlu0 %v176, 4
    %v602 = vpop.permute.xlu0 %601
    %603 = vrot.lane.b32.xlu0 %v177, 4
    %v604 = vpop.permute.xlu0 %603
    %605 = vrot.lane.b32.xlu0 %v178, 4
    %v606 = vpop.permute.xlu0 %605
    %607 = vrot.lane.b32.xlu0 %v179, 4
    %v608 = vpop.permute.xlu0 %607
    %609 = vrot.lane.b32.xlu0 %v180, 4
    %v610 = vpop.permute.xlu0 %609
    %611 = vrot.lane.b32.xlu0 %v181, 4
    %v612 = vpop.permute.xlu0 %611
    %613 = vrot.lane.b32.xlu0 %v182, 4
    %v614 = vpop.permute.xlu0 %613
    %760 = vrot.lane.b32.xlu0 %v42, 8
    %v761 = vpop.permute.xlu0 %760
    %762 = vrot.lane.b32.xlu0 %v43, 8
    %v763 = vpop.permute.xlu0 %762
    %764 = vrot.lane.b32.xlu0 %v44, 8
    %v765 = vpop.permute.xlu0 %764
    %766 = vrot.lane.b32.xlu0 %v45, 8
    %v767 = vpop.permute.xlu0 %766
    %768 = vrot.lane.b32.xlu0 %v46, 8
    %v769 = vpop.permute.xlu0 %768
    %770 = vrot.lane.b32.xlu0 %v47, 8
    %v771 = vpop.permute.xlu0 %770
    %772 = vrot.lane.b32.xlu0 %v48, 8
    %v773 = vpop.permute.xlu0 %772
    %774 = vrot.lane.b32.xlu0 %v49, 8
    %v775 = vpop.permute.xlu0 %774
    %776 = vrot.lane.b32.xlu0 %v50, 8
    %v777 = vpop.permute.xlu0 %776
    %778 = vrot.lane.b32.xlu0 %v51, 8
    %v779 = vpop.permute.xlu0 %778
    %780 = vrot.lane.b32.xlu0 %v52, 8
    %v781 = vpop.permute.xlu0 %780
    %782 = vrot.lane.b32.xlu0 %v53, 8
    %v783 = vpop.permute.xlu0 %782
    %784 = vrot.lane.b32.xlu0 %v54, 8
    %v785 = vpop.permute.xlu0 %784
    %786 = vrot.lane.b32.xlu0 %v55, 8
    %v787 = vpop.permute.xlu0 %786
    %788 = vrot.lane.b32.xlu0 %v56, 8
    %v789 = vpop.permute.xlu0 %788
    %790 = vrot.lane.b32.xlu0 %v57, 8
    %v791 = vpop.permute.xlu0 %790
    %792 = vrot.lane.b32.xlu0 %v58, 8
    %v793 = vpop.permute.xlu0 %792
    %794 = vrot.lane.b32.xlu0 %v59, 8
    %v795 = vpop.permute.xlu0 %794
    %796 = vrot.lane.b32.xlu0 %v60, 8
    %v797 = vpop.permute.xlu0 %796
    %798 = vrot.lane.b32.xlu0 %v61, 8
    %v799 = vpop.permute.xlu0 %798
    %800 = vrot.lane.b32.xlu0 %v62, 8
    %v801 = vpop.permute.xlu0 %800
    %802 = vrot.lane.b32.xlu0 %v63, 8
    %v803 = vpop.permute.xlu0 %802
    %804 = vrot.lane.b32.xlu0 %v64, 8
    %v805 = vpop.permute.xlu0 %804
    %806 = vrot.lane.b32.xlu0 %v65, 8
    %v807 = vpop.permute.xlu0 %806
    %808 = vrot.lane.b32.xlu0 %v66, 8
    %v809 = vpop.permute.xlu0 %808
    %810 = vrot.lane.b32.xlu0 %v67, 8
    %v811 = vpop.permute.xlu0 %810
    %812 = vrot.lane.b32.xlu0 %v68, 8
    %v813 = vpop.permute.xlu0 %812
    %814 = vrot.lane.b32.xlu0 %v69, 8
    %v815 = vpop.permute.xlu0 %814
    %816 = vrot.lane.b32.xlu0 %v70, 8
    %v817 = vpop.permute.xlu0 %816
    %818 = vrot.lane.b32.xlu0 %v71, 8
    %v819 = vpop.permute.xlu0 %818
    %820 = vrot.lane.b32.xlu0 %v72, 8
    %v821 = vpop.permute.xlu0 %820
    %822 = vrot.lane.b32.xlu0 %v73, 8
    %v823 = vpop.permute.xlu0 %822
    %824 = vrot.lane.b32.xlu0 %v74, 8
    %v825 = vpop.permute.xlu0 %824
    %826 = vrot.lane.b32.xlu0 %v75, 8
    %v827 = vpop.permute.xlu0 %826
    %828 = vrot.lane.b32.xlu0 %v76, 8
    %v829 = vpop.permute.xlu0 %828
    %830 = vrot.lane.b32.xlu0 %v77, 8
    %v831 = vpop.permute.xlu0 %830
    %832 = vrot.lane.b32.xlu0 %v78, 8
    %v833 = vpop.permute.xlu0 %832
    %834 = vrot.lane.b32.xlu0 %v79, 8
    %v835 = vpop.permute.xlu0 %834
    %836 = vrot.lane.b32.xlu0 %v80, 8
    %v837 = vpop.permute.xlu0 %836
    %838 = vrot.lane.b32.xlu0 %v81, 8
    %v839 = vpop.permute.xlu0 %838
    %840 = vrot.lane.b32.xlu0 %v82, 8
    %v841 = vpop.permute.xlu0 %840
    %842 = vrot.lane.b32.xlu0 %v83, 8
    %v843 = vpop.permute.xlu0 %842
    %844 = vrot.lane.b32.xlu0 %v84, 8
    %v845 = vpop.permute.xlu0 %844
    %846 = vrot.lane.b32.xlu0 %v85, 8
    %v847 = vpop.permute.xlu0 %846
    %848 = vrot.lane.b32.xlu0 %v86, 8
    %v849 = vpop.permute.xlu0 %848
    %850 = vrot.lane.b32.xlu0 %v87, 8
    %v851 = vpop.permute.xlu0 %850
    %852 = vrot.lane.b32.xlu0 %v88, 8
    %v853 = vpop.permute.xlu0 %852
    %854 = vrot.lane.b32.xlu0 %v89, 8
    %v855 = vpop.permute.xlu0 %854
    %856 = vrot.lane.b32.xlu0 %v90, 8
    %v857 = vpop.permute.xlu0 %856
    %858 = vrot.lane.b32.xlu0 %v91, 8
    %v859 = vpop.permute.xlu0 %858
    %860 = vrot.lane.b32.xlu0 %v92, 8
    %v861 = vpop.permute.xlu0 %860
    %862 = vrot.lane.b32.xlu0 %v93, 8
    %v863 = vpop.permute.xlu0 %862
    %864 = vrot.lane.b32.xlu0 %v94, 8
    %v865 = vpop.permute.xlu0 %864
    %866 = vrot.lane.b32.xlu0 %v95, 8
    %v867 = vpop.permute.xlu0 %866
    %868 = vrot.lane.b32.xlu0 %v96, 8
    %v869 = vpop.permute.xlu0 %868
    %870 = vrot.lane.b32.xlu0 %v97, 8
    %v871 = vpop.permute.xlu0 %870
    %872 = vrot.lane.b32.xlu0 %v98, 8
    %v873 = vpop.permute.xlu0 %872
    %874 = vrot.lane.b32.xlu0 %v99, 8
    %v875 = vpop.permute.xlu0 %874
    %876 = vrot.lane.b32.xlu0 %v100, 8
    %v877 = vpop.permute.xlu0 %876
    %878 = vrot.lane.b32.xlu0 %v101, 8
    %v879 = vpop.permute.xlu0 %878
    %880 = vrot.lane.b32.xlu0 %v102, 8
    %v881 = vpop.permute.xlu0 %880
    %882 = vrot.lane.b32.xlu0 %v103, 8
    %v883 = vpop.permute.xlu0 %882
    %884 = vrot.lane.b32.xlu0 %v104, 8
    %v885 = vpop.permute.xlu0 %884
    %886 = vrot.lane.b32.xlu0 %v105, 8
    %v887 = vpop.permute.xlu0 %886
    %888 = vrot.lane.b32.xlu0 %v106, 8
    %v889 = vpop.permute.xlu0 %888
    %890 = vrot.lane.b32.xlu0 %v107, 8
    %v891 = vpop.permute.xlu0 %890
    %892 = vrot.lane.b32.xlu0 %v108, 8
    %v893 = vpop.permute.xlu0 %892
    %894 = vrot.lane.b32.xlu0 %v109, 8
    %v895 = vpop.permute.xlu0 %894
    %896 = vrot.lane.b32.xlu0 %v110, 8
    %v897 = vpop.permute.xlu0 %896
    %898 = vrot.lane.b32.xlu0 %v111, 8
    %v899 = vpop.permute.xlu0 %898
    %900 = vrot.lane.b32.xlu0 %v112, 8
    %v901 = vpop.permute.xlu0 %900
    %902 = vrot.lane.b32.xlu0 %v113, 8
    %v903 = vpop.permute.xlu0 %902
    %904 = vrot.lane.b32.xlu0 %v114, 8
    %v905 = vpop.permute.xlu0 %904
    %906 = vrot.lane.b32.xlu0 %v115, 8
    %v907 = vpop.permute.xlu0 %906
    %908 = vrot.lane.b32.xlu0 %v116, 8
    %v909 = vpop.permute.xlu0 %908
    %910 = vrot.lane.b32.xlu0 %v117, 8
    %v911 = vpop.permute.xlu0 %910
    %912 = vrot.lane.b32.xlu0 %v118, 8
    %v913 = vpop.permute.xlu0 %912
    %914 = vrot.lane.b32.xlu0 %v119, 8
    %v915 = vpop.permute.xlu0 %914
    %916 = vrot.lane.b32.xlu0 %v120, 8
    %v917 = vpop.permute.xlu0 %916
    %918 = vrot.lane.b32.xlu0 %v121, 8
    %v919 = vpop.permute.xlu0 %918
    %920 = vrot.lane.b32.xlu0 %v122, 8
    %v921 = vpop.permute.xlu0 %920
    %922 = vrot.lane.b32.xlu0 %v123, 8
    %v923 = vpop.permute.xlu0 %922
    %924 = vrot.lane.b32.xlu0 %v124, 8
    %v925 = vpop.permute.xlu0 %924
    %926 = vrot.lane.b32.xlu0 %v125, 8
    %v927 = vpop.permute.xlu0 %926
    %928 = vrot.lane.b32.xlu0 %v126, 8
    %v929 = vpop.permute.xlu0 %928
    %930 = vrot.lane.b32.xlu0 %v127, 8
    %v931 = vpop.permute.xlu0 %930
    %932 = vrot.lane.b32.xlu0 %v128, 8
    %v933 = vpop.permute.xlu0 %932
    %934 = vrot.lane.b32.xlu0 %v129, 8
    %v935 = vpop.permute.xlu0 %934
    %936 = vrot.lane.b32.xlu0 %v130, 8
    %v937 = vpop.permute.xlu0 %936
    %938 = vrot.lane.b32.xlu0 %v131, 8
    %v939 = vpop.permute.xlu0 %938
    %940 = vrot.lane.b32.xlu0 %v132, 8
    %v941 = vpop.permute.xlu0 %940
    %942 = vrot.lane.b32.xlu0 %v133, 8
    %v943 = vpop.permute.xlu0 %942
    %944 = vrot.lane.b32.xlu0 %v134, 8
    %v945 = vpop.permute.xlu0 %944
    %946 = vrot.lane.b32.xlu0 %v135, 8
    %v947 = vpop.permute.xlu0 %946
    %948 = vrot.lane.b32.xlu0 %v136, 8
    %v949 = vpop.permute.xlu0 %948
    %950 = vrot.lane.b32.xlu0 %v137, 8
    %v951 = vpop.permute.xlu0 %950
    %952 = vrot.lane.b32.xlu0 %v138, 8
    %v953 = vpop.permute.xlu0 %952
    %954 = vrot.lane.b32.xlu0 %v139, 8
    %v955 = vpop.permute.xlu0 %954
    %956 = vrot.lane.b32.xlu0 %v140, 8
    %v957 = vpop.permute.xlu0 %956
    %958 = vrot.lane.b32.xlu0 %v141, 8
    %v959 = vpop.permute.xlu0 %958
    %960 = vrot.lane.b32.xlu0 %v142, 8
    %v961 = vpop.permute.xlu0 %960
    %962 = vrot.lane.b32.xlu0 %v143, 8
    %v963 = vpop.permute.xlu0 %962
    %964 = vrot.lane.b32.xlu0 %v144, 8
    %v965 = vpop.permute.xlu0 %964
    %966 = vrot.lane.b32.xlu0 %v145, 8
    %v967 = vpop.permute.xlu0 %966
    %968 = vrot.lane.b32.xlu0 %v146, 8
    %v969 = vpop.permute.xlu0 %968
    %970 = vrot.lane.b32.xlu0 %v147, 8
    %v971 = vpop.permute.xlu0 %970
    %972 = vrot.lane.b32.xlu0 %v148, 8
    %v973 = vpop.permute.xlu0 %972
    %974 = vrot.lane.b32.xlu0 %v149, 8
    %v975 = vpop.permute.xlu0 %974
    %976 = vrot.lane.b32.xlu0 %v150, 8
    %v977 = vpop.permute.xlu0 %976
    %978 = vrot.lane.b32.xlu0 %v151, 8
    %v979 = vpop.permute.xlu0 %978
    %980 = vrot.lane.b32.xlu0 %v152, 8
    %v981 = vpop.permute.xlu0 %980
    %982 = vrot.lane.b32.xlu0 %v153, 8
    %v983 = vpop.permute.xlu0 %982
    %984 = vrot.lane.b32.xlu0 %v154, 8
    %v985 = vpop.permute.xlu0 %984
    %986 = vrot.lane.b32.xlu0 %v155, 8
    %v987 = vpop.permute.xlu0 %986
    %988 = vrot.lane.b32.xlu0 %v156, 8
    %v989 = vpop.permute.xlu0 %988
    %990 = vrot.lane.b32.xlu0 %v157, 8
    %v991 = vpop.permute.xlu0 %990
    %992 = vrot.lane.b32.xlu0 %v158, 8
    %v993 = vpop.permute.xlu0 %992
    %994 = vrot.lane.b32.xlu0 %v159, 8
    %v995 = vpop.permute.xlu0 %994
    %996 = vrot.lane.b32.xlu0 %v160, 8
    %v997 = vpop.permute.xlu0 %996
    %998 = vrot.lane.b32.xlu0 %v161, 8
    %v999 = vpop.permute.xlu0 %998
    %1000 = vrot.lane.b32.xlu0 %v162, 8
    %v1001 = vpop.permute.xlu0 %1000
    %1002 = vrot.lane.b32.xlu0 %v163, 8
    %v1003 = vpop.permute.xlu0 %1002
    %1004 = vrot.lane.b32.xlu0 %v164, 8
    %v1005 = vpop.permute.xlu0 %1004
    %1006 = vrot.lane.b32.xlu0 %v165, 8
    %v1007 = vpop.permute.xlu0 %1006
    %1008 = vrot.lane.b32.xlu0 %v166, 8
    %v1009 = vpop.permute.xlu0 %1008
    %1010 = vrot.lane.b32.xlu0 %v167, 8
    %v1011 = vpop.permute.xlu0 %1010
    %1012 = vrot.lane.b32.xlu0 %v168, 8
    %v1013 = vpop.permute.xlu0 %1012
    %1014 = vrot.lane.b32.xlu0 %v169, 8
    %v1015 = vpop.permute.xlu0 %1014
    %1016 = vrot.lane.b32.xlu0 %v170, 8
    %v1017 = vpop.permute.xlu0 %1016
    %1018 = vrot.lane.b32.xlu0 %v171, 8
    %v1019 = vpop.permute.xlu0 %1018
    %1020 = vrot.lane.b32.xlu0 %v172, 8
    %v1021 = vpop.permute.xlu0 %1020
    %1022 = vrot.lane.b32.xlu0 %v173, 8
    %v1023 = vpop.permute.xlu0 %1022
    %1024 = vrot.lane.b32.xlu0 %v174, 8
    %v1025 = vpop.permute.xlu0 %1024
    %1026 = vrot.lane.b32.xlu0 %v175, 8
    %v1027 = vpop.permute.xlu0 %1026
    %1028 = vrot.lane.b32.xlu0 %v176, 8
    %v1029 = vpop.permute.xlu0 %1028
    %1030 = vrot.lane.b32.xlu0 %v177, 8
    %v1031 = vpop.permute.xlu0 %1030
    %1032 = vrot.lane.b32.xlu0 %v178, 8
    %v1033 = vpop.permute.xlu0 %1032
    %1034 = vrot.lane.b32.xlu0 %v179, 8
    %v1035 = vpop.permute.xlu0 %1034
    %1036 = vrot.lane.b32.xlu0 %v180, 8
    %v1037 = vpop.permute.xlu0 %1036
    %1038 = vrot.lane.b32.xlu0 %v181, 8
    %v1039 = vpop.permute.xlu0 %1038
    %1040 = vrot.lane.b32.xlu0 %v182, 8
    %v1041 = vpop.permute.xlu0 %1040
    %1042 = vrot.lane.b32.xlu0 0.0, 8
    %v1043 = vpop.permute.xlu0 %1042
    %vm1186 = vcmask 31744
    %v1187 = vsel %vm1186, 0.0, %v328
    %v1188 = vsel %vm1186, 0.0, %v330
    %v1189 = vsel %vm1186, 0.0, %v332
    %v1190 = vsel %vm1186, %v39, %v334
    %v1191 = vsel %vm1186, %v40, %v336
    %v1192 = vsel %vm1186, %v41, %v338
    %v1193 = vsel %vm1186, %v42, %v340
    %v1194 = vsel %vm1186, %v43, %v342
    %v1195 = vsel %vm1186, %v44, %v344
    %v1196 = vsel %vm1186, %v45, %v346
    %v1197 = vsel %vm1186, %v46, %v348
    %v1198 = vsel %vm1186, %v47, %v350
    %v1199 = vsel %vm1186, %v48, %v352
    %v1200 = vsel %vm1186, %v49, %v354
    %v1201 = vsel %vm1186, %v50, %v356
    %v1202 = vsel %vm1186, %v51, %v358
    %v1203 = vsel %vm1186, %v52, %v360
    %v1204 = vsel %vm1186, %v53, %v362
    %v1205 = vsel %vm1186, %v54, %v364
    %v1206 = vsel %vm1186, %v55, %v366
    %v1207 = vsel %vm1186, %v56, %v368
    %v1208 = vsel %vm1186, %v57, %v370
    %v1209 = vsel %vm1186, %v58, %v372
    %v1210 = vsel %vm1186, %v59, %v374
    %v1211 = vsel %vm1186, %v60, %v376
    %v1212 = vsel %vm1186, %v61, %v378
    %v1213 = vsel %vm1186, %v62, %v380
    %v1214 = vsel %vm1186, %v63, %v382
    %v1215 = vsel %vm1186, %v64, %v384
    %v1216 = vsel %vm1186, %v65, %v386
    %v1217 = vsel %vm1186, %v66, %v388
    %v1218 = vsel %vm1186, %v67, %v390
    %v1219 = vsel %vm1186, %v68, %v392
    %v1220 = vsel %vm1186, %v69, %v394
    %v1221 = vsel %vm1186, %v70, %v396
    %v1222 = vsel %vm1186, %v71, %v398
    %v1223 = vsel %vm1186, %v72, %v400
    %v1224 = vsel %vm1186, %v73, %v402
    %v1225 = vsel %vm1186, %v74, %v404
    %v1226 = vsel %vm1186, %v75, %v406
    %v1227 = vsel %vm1186, %v76, %v408
    %v1228 = vsel %vm1186, %v77, %v410
    %v1229 = vsel %vm1186, %v78, %v412
    %v1230 = vsel %vm1186, %v79, %v414
    %v1231 = vsel %vm1186, %v80, %v416
    %v1232 = vsel %vm1186, %v81, %v418
    %v1233 = vsel %vm1186, %v82, %v420
    %v1234 = vsel %vm1186, %v83, %v422
    %v1235 = vsel %vm1186, %v84, %v424
    %v1236 = vsel %vm1186, %v85, %v426
    %v1237 = vsel %vm1186, %v86, %v428
    %v1238 = vsel %vm1186, %v87, %v430
    %v1239 = vsel %vm1186, %v88, %v432
    %v1240 = vsel %vm1186, %v89, %v434
    %v1241 = vsel %vm1186, %v90, %v436
    %v1242 = vsel %vm1186, %v91, %v438
    %v1243 = vsel %vm1186, %v92, %v440
    %v1244 = vsel %vm1186, %v93, %v442
    %v1245 = vsel %vm1186, %v94, %v444
    %v1246 = vsel %vm1186, %v95, %v446
    %v1247 = vsel %vm1186, %v96, %v448
    %v1248 = vsel %vm1186, %v97, %v450
    %v1249 = vsel %vm1186, %v98, %v452
    %v1250 = vsel %vm1186, %v99, %v454
    %v1251 = vsel %vm1186, %v100, %v456
    %v1252 = vsel %vm1186, %v101, %v458
    %v1253 = vsel %vm1186, %v102, %v460
    %v1254 = vsel %vm1186, %v103, %v462
    %v1255 = vsel %vm1186, %v104, %v464
    %v1256 = vsel %vm1186, %v105, %v466
    %v1257 = vsel %vm1186, %v106, %v468
    %v1258 = vsel %vm1186, %v107, %v470
    %v1259 = vsel %vm1186, %v108, %v472
    %v1260 = vsel %vm1186, %v109, %v474
    %v1261 = vsel %vm1186, %v110, %v476
    %v1262 = vsel %vm1186, %v111, %v478
    %v1263 = vsel %vm1186, %v112, %v480
    %v1264 = vsel %vm1186, %v113, %v482
    %v1265 = vsel %vm1186, %v114, %v484
    %v1266 = vsel %vm1186, %v115, %v486
    %v1267 = vsel %vm1186, %v116, %v488
    %v1268 = vsel %vm1186, %v117, %v490
    %v1269 = vsel %vm1186, %v118, %v492
    %v1270 = vsel %vm1186, %v119, %v494
    %v1271 = vsel %vm1186, %v120, %v496
    %v1272 = vsel %vm1186, %v121, %v498
    %v1273 = vsel %vm1186, %v122, %v500
    %v1274 = vsel %vm1186, %v123, %v502
    %v1275 = vsel %vm1186, %v124, %v504
    %v1276 = vsel %vm1186, %v125, %v506
    %v1277 = vsel %vm1186, %v126, %v508
    %v1278 = vsel %vm1186, %v127, %v510
    %v1279 = vsel %vm1186, %v128, %v512
    %v1280 = vsel %vm1186, %v129, %v514
    %v1281 = vsel %vm1186, %v130, %v516
    %v1282 = vsel %vm1186, %v131, %v518
    %v1283 = vsel %vm1186, %v132, %v520
    %v1284 = vsel %vm1186, %v133, %v522
    %v1285 = vsel %vm1186, %v134, %v524
    %v1286 = vsel %vm1186, %v135, %v526
    %v1287 = vsel %vm1186, %v136, %v528
    %v1288 = vsel %vm1186, %v137, %v530
    %v1289 = vsel %vm1186, %v138, %v532
    %v1290 = vsel %vm1186, %v139, %v534
    %v1291 = vsel %vm1186, %v140, %v536
    %v1292 = vsel %vm1186, %v141, %v538
    %v1293 = vsel %vm1186, %v142, %v540
    %v1294 = vsel %vm1186, %v143, %v542
    %v1295 = vsel %vm1186, %v144, %v544
    %v1296 = vsel %vm1186, %v145, %v546
    %v1297 = vsel %vm1186, %v146, %v548
    %v1298 = vsel %vm1186, %v147, %v550
    %v1299 = vsel %vm1186, %v148, %v552
    %v1300 = vsel %vm1186, %v149, %v554
    %v1301 = vsel %vm1186, %v150, %v556
    %v1302 = vsel %vm1186, %v151, %v558
    %v1303 = vsel %vm1186, %v152, %v560
    %v1304 = vsel %vm1186, %v153, %v562
    %v1305 = vsel %vm1186, %v154, %v564
    %v1306 = vsel %vm1186, %v155, %v566
    %v1307 = vsel %vm1186, %v156, %v568
    %v1308 = vsel %vm1186, %v157, %v570
    %v1309 = vsel %vm1186, %v158, %v572
    %v1310 = vsel %vm1186, %v159, %v574
    %v1311 = vsel %vm1186, %v160, %v576
    %v1312 = vsel %vm1186, %v161, %v578
    %v1313 = vsel %vm1186, %v162, %v580
    %v1314 = vsel %vm1186, %v163, %v582
    %v1315 = vsel %vm1186, %v164, %v584
    %v1316 = vsel %vm1186, %v165, %v586
    %v1317 = vsel %vm1186, %v166, %v588
    %v1318 = vsel %vm1186, %v167, %v590
    %v1319 = vsel %vm1186, %v168, %v592
    %v1320 = vsel %vm1186, %v169, %v594
    %v1321 = vsel %vm1186, %v170, %v596
    %v1322 = vsel %vm1186, %v171, %v598
    %v1323 = vsel %vm1186, %v172, %v600
    %v1324 = vsel %vm1186, %v173, %v602
    %v1325 = vsel %vm1186, %v174, %v604
    %v1326 = vsel %vm1186, %v175, %v606
    %v1327 = vsel %vm1186, %v176, %v608
    %v1328 = vsel %vm1186, %v177, %v610
    %v1329 = vsel %vm1186, %v178, %v612
    %v1330 = vsel %vm1186, %v179, %v614
    %vm1331 = vcmask 64512
    %v1332 = vsel %vm1331, %v1187, %v761
    %v1333 = vsel %vm1331, %v1188, %v763
    %v1334 = vsel %vm1331, %v1189, %v765
    %v1335 = vsel %vm1331, %v1190, %v767
    %v1336 = vsel %vm1331, %v1191, %v769
    %v1337 = vsel %vm1331, %v1192, %v771
    %v1338 = vsel %vm1331, %v1193, %v773
    %v1339 = vsel %vm1331, %v1194, %v775
    %v1340 = vsel %vm1331, %v1195, %v777
    %v1341 = vsel %vm1331, %v1196, %v779
    %v1342 = vsel %vm1331, %v1197, %v781
    %v1343 = vsel %vm1331, %v1198, %v783
    %v1344 = vsel %vm1331, %v1199, %v785
    %v1345 = vsel %vm1331, %v1200, %v787
    %v1346 = vsel %vm1331, %v1201, %v789
    %v1347 = vsel %vm1331, %v1202, %v791
    %v1348 = vsel %vm1331, %v1203, %v793
    %v1349 = vsel %vm1331, %v1204, %v795
    %v1350 = vsel %vm1331, %v1205, %v797
    %v1351 = vsel %vm1331, %v1206, %v799
    %v1352 = vsel %vm1331, %v1207, %v801
    %v1353 = vsel %vm1331, %v1208, %v803
    %v1354 = vsel %vm1331, %v1209, %v805
    %v1355 = vsel %vm1331, %v1210, %v807
    %v1356 = vsel %vm1331, %v1211, %v809
    %v1357 = vsel %vm1331, %v1212, %v811
    %v1358 = vsel %vm1331, %v1213, %v813
    %v1359 = vsel %vm1331, %v1214, %v815
    %v1360 = vsel %vm1331, %v1215, %v817
    %v1361 = vsel %vm1331, %v1216, %v819
    %v1362 = vsel %vm1331, %v1217, %v821
    %v1363 = vsel %vm1331, %v1218, %v823
    %v1364 = vsel %vm1331, %v1219, %v825
    %v1365 = vsel %vm1331, %v1220, %v827
    %v1366 = vsel %vm1331, %v1221, %v829
    %v1367 = vsel %vm1331, %v1222, %v831
    %v1368 = vsel %vm1331, %v1223, %v833
    %v1369 = vsel %vm1331, %v1224, %v835
    %v1370 = vsel %vm1331, %v1225, %v837
    %v1371 = vsel %vm1331, %v1226, %v839
    %v1372 = vsel %vm1331, %v1227, %v841
    %v1373 = vsel %vm1331, %v1228, %v843
    %v1374 = vsel %vm1331, %v1229, %v845
    %v1375 = vsel %vm1331, %v1230, %v847
    %v1376 = vsel %vm1331, %v1231, %v849
    %v1377 = vsel %vm1331, %v1232, %v851
    %v1378 = vsel %vm1331, %v1233, %v853
    %v1379 = vsel %vm1331, %v1234, %v855
    %v1380 = vsel %vm1331, %v1235, %v857
    %v1381 = vsel %vm1331, %v1236, %v859
    %v1382 = vsel %vm1331, %v1237, %v861
    %v1383 = vsel %vm1331, %v1238, %v863
    %v1384 = vsel %vm1331, %v1239, %v865
    %v1385 = vsel %vm1331, %v1240, %v867
    %v1386 = vsel %vm1331, %v1241, %v869
    %v1387 = vsel %vm1331, %v1242, %v871
    %v1388 = vsel %vm1331, %v1243, %v873
    %v1389 = vsel %vm1331, %v1244, %v875
    %v1390 = vsel %vm1331, %v1245, %v877
    %v1391 = vsel %vm1331, %v1246, %v879
    %v1392 = vsel %vm1331, %v1247, %v881
    %v1393 = vsel %vm1331, %v1248, %v883
    %v1394 = vsel %vm1331, %v1249, %v885
    %v1395 = vsel %vm1331, %v1250, %v887
    %v1396 = vsel %vm1331, %v1251, %v889
    %v1397 = vsel %vm1331, %v1252, %v891
    %v1398 = vsel %vm1331, %v1253, %v893
    %v1399 = vsel %vm1331, %v1254, %v895
    %v1400 = vsel %vm1331, %v1255, %v897
    %v1401 = vsel %vm1331, %v1256, %v899
    %v1402 = vsel %vm1331, %v1257, %v901
    %v1403 = vsel %vm1331, %v1258, %v903
    %v1404 = vsel %vm1331, %v1259, %v905
    %v1405 = vsel %vm1331, %v1260, %v907
    %v1406 = vsel %vm1331, %v1261, %v909
    %v1407 = vsel %vm1331, %v1262, %v911
    %v1408 = vsel %vm1331, %v1263, %v913
    %v1409 = vsel %vm1331, %v1264, %v915
    %v1410 = vsel %vm1331, %v1265, %v917
    %v1411 = vsel %vm1331, %v1266, %v919
    %v1412 = vsel %vm1331, %v1267, %v921
    %v1413 = vsel %vm1331, %v1268, %v923
    %v1414 = vsel %vm1331, %v1269, %v925
    %v1415 = vsel %vm1331, %v1270, %v927
    %v1416 = vsel %vm1331, %v1271, %v929
    %v1417 = vsel %vm1331, %v1272, %v931
    %v1418 = vsel %vm1331, %v1273, %v933
    %v1419 = vsel %vm1331, %v1274, %v935
    %v1420 = vsel %vm1331, %v1275, %v937
    %v1421 = vsel %vm1331, %v1276, %v939
    %v1422 = vsel %vm1331, %v1277, %v941
    %v1423 = vsel %vm1331, %v1278, %v943
    %v1424 = vsel %vm1331, %v1279, %v945
    %v1425 = vsel %vm1331, %v1280, %v947
    %v1426 = vsel %vm1331, %v1281, %v949
    %v1427 = vsel %vm1331, %v1282, %v951
    %v1428 = vsel %vm1331, %v1283, %v953
    %v1429 = vsel %vm1331, %v1284, %v955
    %v1430 = vsel %vm1331, %v1285, %v957
    %v1431 = vsel %vm1331, %v1286, %v959
    %v1432 = vsel %vm1331, %v1287, %v961
    %v1433 = vsel %vm1331, %v1288, %v963
    %v1434 = vsel %vm1331, %v1289, %v965
    %v1435 = vsel %vm1331, %v1290, %v967
    %v1436 = vsel %vm1331, %v1291, %v969
    %v1437 = vsel %vm1331, %v1292, %v971
    %v1438 = vsel %vm1331, %v1293, %v973
    %v1439 = vsel %vm1331, %v1294, %v975
    %v1440 = vsel %vm1331, %v1295, %v977
    %v1441 = vsel %vm1331, %v1296, %v979
    %v1442 = vsel %vm1331, %v1297, %v981
    %v1443 = vsel %vm1331, %v1298, %v983
    %v1444 = vsel %vm1331, %v1299, %v985
    %v1445 = vsel %vm1331, %v1300, %v987
    %v1446 = vsel %vm1331, %v1301, %v989
    %v1447 = vsel %vm1331, %v1302, %v991
    %v1448 = vsel %vm1331, %v1303, %v993
    %v1449 = vsel %vm1331, %v1304, %v995
    %v1450 = vsel %vm1331, %v1305, %v997
    %v1451 = vsel %vm1331, %v1306, %v999
    %v1452 = vsel %vm1331, %v1307, %v1001
    %v1453 = vsel %vm1331, %v1308, %v1003
    %v1454 = vsel %vm1331, %v1309, %v1005
    %v1455 = vsel %vm1331, %v1310, %v1007
    %v1456 = vsel %vm1331, %v1311, %v1009
    %v1457 = vsel %vm1331, %v1312, %v1011
    %v1458 = vsel %vm1331, %v1313, %v1013
    %v1459 = vsel %vm1331, %v1314, %v1015
    %v1460 = vsel %vm1331, %v1315, %v1017
    %v1461 = vsel %vm1331, %v1316, %v1019
    %v1462 = vsel %vm1331, %v1317, %v1021
    %v1463 = vsel %vm1331, %v1318, %v1023
    %v1464 = vsel %vm1331, %v1319, %v1025
    %v1465 = vsel %vm1331, %v1320, %v1027
    %v1466 = vsel %vm1331, %v1321, %v1029
    %v1467 = vsel %vm1331, %v1322, %v1031
    %v1468 = vsel %vm1331, %v1323, %v1033
    %v1469 = vsel %vm1331, %v1324, %v1035
    %v1470 = vsel %vm1331, %v1325, %v1037
    %v1471 = vsel %vm1331, %v1326, %v1039
    %v1472 = vsel %vm1331, %v1327, %v1041
    %v1473 = vsel %vm1331, %v1328, %v1043
    %v1474 = vsel %vm1331, %v1329, %v1043
    %v1475 = vsel %vm1331, %v1330, %v1043
    %v1476 = vld [vmem:[%s1] sm:$0xff]
    %v1477 = vld [vmem:[%s1 + $0x8] sm:$0xf]
    %v1478 = vld [vmem:[%s2] sm:$0x1]
    %v1480 = vperm.slane %v1478, 0
    %vm1482 = vcmask 97280
    %v1484 = vsel %vm1482, %v1332, 0
    %v1487 = vsel %vm1482, %v1333, 0
    %v1490 = vsel %vm1482, %v1334, 0
    %v1493 = vsel %vm1482, %v1335, 0
    %v1496 = vsel %vm1482, %v1336, 0
    %v1499 = vsel %vm1482, %v1337, 0
    %v1502 = vsel %vm1482, %v1338, 0
    %v1505 = vsel %vm1482, %v1339, 0
    %v1508 = vsel %vm1482, %v1340, 0
    %v1511 = vsel %vm1482, %v1341, 0
    %v1514 = vsel %vm1482, %v1342, 0
    %v1517 = vsel %vm1482, %v1343, 0
    %v1520 = vsel %vm1482, %v1344, 0
    %v1523 = vsel %vm1482, %v1345, 0
    %v1526 = vsel %vm1482, %v1346, 0
    %v1529 = vsel %vm1482, %v1347, 0
    %v1532 = vsel %vm1482, %v1348, 0
    %v1535 = vsel %vm1482, %v1349, 0
    %v1538 = vsel %vm1482, %v1350, 0
    %v1541 = vsel %vm1482, %v1351, 0
    %v1544 = vsel %vm1482, %v1352, 0
    %v1547 = vsel %vm1482, %v1353, 0
    %v1550 = vsel %vm1482, %v1354, 0
    %v1553 = vsel %vm1482, %v1355, 0
    %v1556 = vsel %vm1482, %v1356, 0
    %v1559 = vsel %vm1482, %v1357, 0
    %v1562 = vsel %vm1482, %v1358, 0
    %v1565 = vsel %vm1482, %v1359, 0
    %v1568 = vsel %vm1482, %v1360, 0
    %v1571 = vsel %vm1482, %v1361, 0
    %v1574 = vsel %vm1482, %v1362, 0
    %v1577 = vsel %vm1482, %v1363, 0
    %v1580 = vsel %vm1482, %v1364, 0
    %v1583 = vsel %vm1482, %v1365, 0
    %v1586 = vsel %vm1482, %v1366, 0
    %v1589 = vsel %vm1482, %v1367, 0
    %v1592 = vsel %vm1482, %v1368, 0
    %v1595 = vsel %vm1482, %v1369, 0
    %v1598 = vsel %vm1482, %v1370, 0
    %v1601 = vsel %vm1482, %v1371, 0
    %v1604 = vsel %vm1482, %v1372, 0
    %v1607 = vsel %vm1482, %v1373, 0
    %v1610 = vsel %vm1482, %v1374, 0
    %v1613 = vsel %vm1482, %v1375, 0
    %v1616 = vsel %vm1482, %v1376, 0
    %v1619 = vsel %vm1482, %v1377, 0
    %v1622 = vsel %vm1482, %v1378, 0
    %v1625 = vsel %vm1482, %v1379, 0
    %v1628 = vsel %vm1482, %v1380, 0
    %v1631 = vsel %vm1482, %v1381, 0
    %v1634 = vsel %vm1482, %v1382, 0
    %v1637 = vsel %vm1482, %v1383, 0
    %v1640 = vsel %vm1482, %v1384, 0
    %v1643 = vsel %vm1482, %v1385, 0
    %v1646 = vsel %vm1482, %v1386, 0
    %v1649 = vsel %vm1482, %v1387, 0
    %v1652 = vsel %vm1482, %v1388, 0
    %v1655 = vsel %vm1482, %v1389, 0
    %v1658 = vsel %vm1482, %v1390, 0
    %v1661 = vsel %vm1482, %v1391, 0
    %v1664 = vsel %vm1482, %v1392, 0
    %v1667 = vsel %vm1482, %v1393, 0
    %v1670 = vsel %vm1482, %v1394, 0
    %v1673 = vsel %vm1482, %v1395, 0
    %v1676 = vsel %vm1482, %v1396, 0
    %v1679 = vsel %vm1482, %v1397, 0
    %v1682 = vsel %vm1482, %v1398, 0
    %v1685 = vsel %vm1482, %v1399, 0
    %v1688 = vsel %vm1482, %v1400, 0
    %v1691 = vsel %vm1482, %v1401, 0
    %v1694 = vsel %vm1482, %v1402, 0
    %v1697 = vsel %vm1482, %v1403, 0
    %v1700 = vsel %vm1482, %v1404, 0
    %v1703 = vsel %vm1482, %v1405, 0
    %v1706 = vsel %vm1482, %v1406, 0
    %v1709 = vsel %vm1482, %v1407, 0
    %v1712 = vsel %vm1482, %v1408, 0
    %v1715 = vsel %vm1482, %v1409, 0
    %v1718 = vsel %vm1482, %v1410, 0
    %v1721 = vsel %vm1482, %v1411, 0
    %v1724 = vsel %vm1482, %v1412, 0
    %v1727 = vsel %vm1482, %v1413, 0
    %v1730 = vsel %vm1482, %v1414, 0
    %v1733 = vsel %vm1482, %v1415, 0
    %v1736 = vsel %vm1482, %v1416, 0
    %v1739 = vsel %vm1482, %v1417, 0
    %v1742 = vsel %vm1482, %v1418, 0
    %v1745 = vsel %vm1482, %v1419, 0
    %v1748 = vsel %vm1482, %v1420, 0
    %v1751 = vsel %vm1482, %v1421, 0
    %v1754 = vsel %vm1482, %v1422, 0
    %v1757 = vsel %vm1482, %v1423, 0
    %v1760 = vsel %vm1482, %v1424, 0
    %v1763 = vsel %vm1482, %v1425, 0
    %v1766 = vsel %vm1482, %v1426, 0
    %v1769 = vsel %vm1482, %v1427, 0
    %v1772 = vsel %vm1482, %v1428, 0
    %v1775 = vsel %vm1482, %v1429, 0
    %v1778 = vsel %vm1482, %v1430, 0
    %v1781 = vsel %vm1482, %v1431, 0
    %v1784 = vsel %vm1482, %v1432, 0
    %v1787 = vsel %vm1482, %v1433, 0
    %v1790 = vsel %vm1482, %v1434, 0
    %v1793 = vsel %vm1482, %v1435, 0
    %v1796 = vsel %vm1482, %v1436, 0
    %v1799 = vsel %vm1482, %v1437, 0
    %v1802 = vsel %vm1482, %v1438, 0
    %v1805 = vsel %vm1482, %v1439, 0
    %v1808 = vsel %vm1482, %v1440, 0
    %v1811 = vsel %vm1482, %v1441, 0
    %v1814 = vsel %vm1482, %v1442, 0
    %v1817 = vsel %vm1482, %v1443, 0
    %v1820 = vsel %vm1482, %v1444, 0
    %v1823 = vsel %vm1482, %v1445, 0
    %v1826 = vsel %vm1482, %v1446, 0
    %v1829 = vsel %vm1482, %v1447, 0
    %v1832 = vsel %vm1482, %v1448, 0
    %v1835 = vsel %vm1482, %v1449, 0
    %v1838 = vsel %vm1482, %v1450, 0
    %v1841 = vsel %vm1482, %v1451, 0
    %v1844 = vsel %vm1482, %v1452, 0
    %v1847 = vsel %vm1482, %v1453, 0
    %v1850 = vsel %vm1482, %v1454, 0
    %v1853 = vsel %vm1482, %v1455, 0
    %v1856 = vsel %vm1482, %v1456, 0
    %v1859 = vsel %vm1482, %v1457, 0
    %v1862 = vsel %vm1482, %v1458, 0
    %v1865 = vsel %vm1482, %v1459, 0
    %v1868 = vsel %vm1482, %v1460, 0
    %v1871 = vsel %vm1482, %v1461, 0
    %v1874 = vsel %vm1482, %v1462, 0
    %v1877 = vsel %vm1482, %v1463, 0
    %v1880 = vsel %vm1482, %v1464, 0
    %v1883 = vsel %vm1482, %v1465, 0
    %v1886 = vsel %vm1482, %v1466, 0
    %v1889 = vsel %vm1482, %v1467, 0
    %v1892 = vsel %vm1482, %v1468, 0
    %v1895 = vsel %vm1482, %v1469, 0
    %v1898 = vsel %vm1482, %v1470, 0
    %v1901 = vsel %vm1482, %v1471, 0
    %v1904 = vsel %vm1482, %v1472, 0
    %v1907 = vsel %vm1482, %v1473, 0
    %v1910 = vsel %vm1482, %v1474, 0
    %v1913 = vsel %vm1482, %v1475, 0
    %vm1915 = vcmask 1043456
    %v1917 = vsel %vm1915, %v1477, 0
    %1919 = vmatpush.msra.mxu0 0.0
    %1920 = vmatpush.msra.mxu0 0.0
    %1921 = vmatpush.msra.mxu0 0.0
    %1922 = vmatpush.msra.mxu0 0.0
    %1923 = vmatpush.msra.mxu0 0.0
    %1924 = vmatpush.msra.mxu0 0.0
    %1925 = vmatpush.msra.mxu0 0.0
    %1926 = vmatpush.msra.mxu0 0.0
    %1927 = vmatpush.msra.mxu0 0.0
    %1928 = vmatpush.msra.mxu0 0.0
    %1929 = vmatpush.msra.mxu0 0.0
    %1930 = vmatpush.msra.mxu0 0.0
    %1931 = vmatpush.msra.mxu0 0.0
    %1932 = vmatpush.msra.mxu0 0.0
    %1933 = vmatpush.msra.mxu0 %v1917
    %1934 = vmatpush.msra.mxu0 %v1476
    %1935 = vmatmul.f32.gmra.mxu0 %v1484
    %v1936 = vpop.f32.mrf.mxu0
    %v1937 = vadd.f32 %v1480, %v1936
    %1938 = vmatmul.f32.gmra.mxu0 %v1487
    %v1939 = vpop.f32.mrf.mxu0
    %v1940 = vadd.f32 %v1480, %v1939
    %1941 = vmatmul.f32.gmra.mxu0 %v1490
    %v1942 = vpop.f32.mrf.mxu0
    %v1943 = vadd.f32 %v1480, %v1942
    %1944 = vmatmul.f32.gmra.mxu0 %v1493
    %v1945 = vpop.f32.mrf.mxu0
    %v1946 = vadd.f32 %v1480, %v1945
    %1947 = vmatmul.f32.gmra.mxu0 %v1496
    %v1948 = vpop.f32.mrf.mxu0
    %v1949 = vadd.f32 %v1480, %v1948
    %1950 = vmatmul.f32.gmra.mxu0 %v1499
    %v1951 = vpop.f32.mrf.mxu0
    %v1952 = vadd.f32 %v1480, %v1951
    %1953 = vmatmul.f32.gmra.mxu0 %v1502
    %v1954 = vpop.f32.mrf.mxu0
    %v1955 = vadd.f32 %v1480, %v1954
    %1956 = vmatmul.f32.gmra.mxu0 %v1505
    %v1957 = vpop.f32.mrf.mxu0
    %v1958 = vadd.f32 %v1480, %v1957
    %1959 = vmatmul.f32.gmra.mxu0 %v1508
    %v1960 = vpop.f32.mrf.mxu0
    %v1961 = vadd.f32 %v1480, %v1960
    %1962 = vmatmul.f32.gmra.mxu0 %v1511
    %v1963 = vpop.f32.mrf.mxu0
    %v1964 = vadd.f32 %v1480, %v1963
    %1965 = vmatmul.f32.gmra.mxu0 %v1514
    %v1966 = vpop.f32.mrf.mxu0
    %v1967 = vadd.f32 %v1480, %v1966
    %1968 = vmatmul.f32.gmra.mxu0 %v1517
    %v1969 = vpop.f32.mrf.mxu0
    %v1970 = vadd.f32 %v1480, %v1969
    %1971 = vmatmul.f32.gmra.mxu0 %v1520
    %v1972 = vpop.f32.mrf.mxu0
    %v1973 = vadd.f32 %v1480, %v1972
    %1974 = vmatmul.f32.gmra.mxu0 %v1523
    %v1975 = vpop.f32.mrf.mxu0
    %v1976 = vadd.f32 %v1480, %v1975
    %1977 = vmatmul.f32.gmra.mxu0 %v1526
    %v1978 = vpop.f32.mrf.mxu0
    %v1979 = vadd.f32 %v1480, %v1978
    %1980 = vmatmul.f32.gmra.mxu0 %v1529
    %v1981 = vpop.f32.mrf.mxu0
    %v1982 = vadd.f32 %v1480, %v1981
    %1983 = vmatmul.f32.gmra.mxu0 %v1532
    %v1984 = vpop.f32.mrf.mxu0
    %v1985 = vadd.f32 %v1480, %v1984
    %1986 = vmatmul.f32.gmra.mxu0 %v1535
    %v1987 = vpop.f32.mrf.mxu0
    %v1988 = vadd.f32 %v1480, %v1987
    %1989 = vmatmul.f32.gmra.mxu0 %v1538
    %v1990 = vpop.f32.mrf.mxu0
    %v1991 = vadd.f32 %v1480, %v1990
    %1992 = vmatmul.f32.gmra.mxu0 %v1541
    %v1993 = vpop.f32.mrf.mxu0
    %v1994 = vadd.f32 %v1480, %v1993
    %1995 = vmatmul.f32.gmra.mxu0 %v1544
    %v1996 = vpop.f32.mrf.mxu0
    %v1997 = vadd.f32 %v1480, %v1996
    %1998 = vmatmul.f32.gmra.mxu0 %v1547
    %v1999 = vpop.f32.mrf.mxu0
    %v2000 = vadd.f32 %v1480, %v1999
    %2001 = vmatmul.f32.gmra.mxu0 %v1550
    %v2002 = vpop.f32.mrf.mxu0
    %v2003 = vadd.f32 %v1480, %v2002
    %2004 = vmatmul.f32.gmra.mxu0 %v1553
    %v2005 = vpop.f32.mrf.mxu0
    %v2006 = vadd.f32 %v1480, %v2005
    %2007 = vmatmul.f32.gmra.mxu0 %v1556
    %v2008 = vpop.f32.mrf.mxu0
    %v2009 = vadd.f32 %v1480, %v2008
    %2010 = vmatmul.f32.gmra.mxu0 %v1559
    %v2011 = vpop.f32.mrf.mxu0
    %v2012 = vadd.f32 %v1480, %v2011
    %2013 = vmatmul.f32.gmra.mxu0 %v1562
    %v2014 = vpop.f32.mrf.mxu0
    %v2015 = vadd.f32 %v1480, %v2014
    %2016 = vmatmul.f32.gmra.mxu0 %v1565
    %v2017 = vpop.f32.mrf.mxu0
    %v2018 = vadd.f32 %v1480, %v2017
    %2019 = vmatmul.f32.gmra.mxu0 %v1568
    %v2020 = vpop.f32.mrf.mxu0
    %v2021 = vadd.f32 %v1480, %v2020
    %2022 = vmatmul.f32.gmra.mxu0 %v1571
    %v2023 = vpop.f32.mrf.mxu0
    %v2024 = vadd.f32 %v1480, %v2023
    %2025 = vmatmul.f32.gmra.mxu0 %v1574
    %v2026 = vpop.f32.mrf.mxu0
    %v2027 = vadd.f32 %v1480, %v2026
    %2028 = vmatmul.f32.gmra.mxu0 %v1577
    %v2029 = vpop.f32.mrf.mxu0
    %v2030 = vadd.f32 %v1480, %v2029
    %2031 = vmatmul.f32.gmra.mxu0 %v1580
    %v2032 = vpop.f32.mrf.mxu0
    %v2033 = vadd.f32 %v1480, %v2032
    %2034 = vmatmul.f32.gmra.mxu0 %v1583
    %v2035 = vpop.f32.mrf.mxu0
    %v2036 = vadd.f32 %v1480, %v2035
    %2037 = vmatmul.f32.gmra.mxu0 %v1586
    %v2038 = vpop.f32.mrf.mxu0
    %v2039 = vadd.f32 %v1480, %v2038
    %2040 = vmatmul.f32.gmra.mxu0 %v1589
    %v2041 = vpop.f32.mrf.mxu0
    %v2042 = vadd.f32 %v1480, %v2041
    %2043 = vmatmul.f32.gmra.mxu0 %v1592
    %v2044 = vpop.f32.mrf.mxu0
    %v2045 = vadd.f32 %v1480, %v2044
    %2046 = vmatmul.f32.gmra.mxu0 %v1595
    %v2047 = vpop.f32.mrf.mxu0
    %v2048 = vadd.f32 %v1480, %v2047
    %2049 = vmatmul.f32.gmra.mxu0 %v1598
    %v2050 = vpop.f32.mrf.mxu0
    %v2051 = vadd.f32 %v1480, %v2050
    %2052 = vmatmul.f32.gmra.mxu0 %v1601
    %v2053 = vpop.f32.mrf.mxu0
    %v2054 = vadd.f32 %v1480, %v2053
    %2055 = vmatmul.f32.gmra.mxu0 %v1604
    %v2056 = vpop.f32.mrf.mxu0
    %v2057 = vadd.f32 %v1480, %v2056
    %2058 = vmatmul.f32.gmra.mxu0 %v1607
    %v2059 = vpop.f32.mrf.mxu0
    %v2060 = vadd.f32 %v1480, %v2059
    %2061 = vmatmul.f32.gmra.mxu0 %v1610
    %v2062 = vpop.f32.mrf.mxu0
    %v2063 = vadd.f32 %v1480, %v2062
    %2064 = vmatmul.f32.gmra.mxu0 %v1613
    %v2065 = vpop.f32.mrf.mxu0
    %v2066 = vadd.f32 %v1480, %v2065
    %2067 = vmatmul.f32.gmra.mxu0 %v1616
    %v2068 = vpop.f32.mrf.mxu0
    %v2069 = vadd.f32 %v1480, %v2068
    %2070 = vmatmul.f32.gmra.mxu0 %v1619
    %v2071 = vpop.f32.mrf.mxu0
    %v2072 = vadd.f32 %v1480, %v2071
    %2073 = vmatmul.f32.gmra.mxu0 %v1622
    %v2074 = vpop.f32.mrf.mxu0
    %v2075 = vadd.f32 %v1480, %v2074
    %2076 = vmatmul.f32.gmra.mxu0 %v1625
    %v2077 = vpop.f32.mrf.mxu0
    %v2078 = vadd.f32 %v1480, %v2077
    %2079 = vmatmul.f32.gmra.mxu0 %v1628
    %v2080 = vpop.f32.mrf.mxu0
    %v2081 = vadd.f32 %v1480, %v2080
    %2082 = vmatmul.f32.gmra.mxu0 %v1631
    %v2083 = vpop.f32.mrf.mxu0
    %v2084 = vadd.f32 %v1480, %v2083
    %2085 = vmatmul.f32.gmra.mxu0 %v1634
    %v2086 = vpop.f32.mrf.mxu0
    %v2087 = vadd.f32 %v1480, %v2086
    %2088 = vmatmul.f32.gmra.mxu0 %v1637
    %v2089 = vpop.f32.mrf.mxu0
    %v2090 = vadd.f32 %v1480, %v2089
    %2091 = vmatmul.f32.gmra.mxu0 %v1640
    %v2092 = vpop.f32.mrf.mxu0
    %v2093 = vadd.f32 %v1480, %v2092
    %2094 = vmatmul.f32.gmra.mxu0 %v1643
    %v2095 = vpop.f32.mrf.mxu0
    %v2096 = vadd.f32 %v1480, %v2095
    %2097 = vmatmul.f32.gmra.mxu0 %v1646
    %v2098 = vpop.f32.mrf.mxu0
    %v2099 = vadd.f32 %v1480, %v2098
    %2100 = vmatmul.f32.gmra.mxu0 %v1649
    %v2101 = vpop.f32.mrf.mxu0
    %v2102 = vadd.f32 %v1480, %v2101
    %2103 = vmatmul.f32.gmra.mxu0 %v1652
    %v2104 = vpop.f32.mrf.mxu0
    %v2105 = vadd.f32 %v1480, %v2104
    %2106 = vmatmul.f32.gmra.mxu0 %v1655
    %v2107 = vpop.f32.mrf.mxu0
    %v2108 = vadd.f32 %v1480, %v2107
    %2109 = vmatmul.f32.gmra.mxu0 %v1658
    %v2110 = vpop.f32.mrf.mxu0
    %v2111 = vadd.f32 %v1480, %v2110
    %2112 = vmatmul.f32.gmra.mxu0 %v1661
    %v2113 = vpop.f32.mrf.mxu0
    %v2114 = vadd.f32 %v1480, %v2113
    %2115 = vmatmul.f32.gmra.mxu0 %v1664
    %v2116 = vpop.f32.mrf.mxu0
    %v2117 = vadd.f32 %v1480, %v2116
    %2118 = vmatmul.f32.gmra.mxu0 %v1667
    %v2119 = vpop.f32.mrf.mxu0
    %v2120 = vadd.f32 %v1480, %v2119
    %2121 = vmatmul.f32.gmra.mxu0 %v1670
    %v2122 = vpop.f32.mrf.mxu0
    %v2123 = vadd.f32 %v1480, %v2122
    %2124 = vmatmul.f32.gmra.mxu0 %v1673
    %v2125 = vpop.f32.mrf.mxu0
    %v2126 = vadd.f32 %v1480, %v2125
    %2127 = vmatmul.f32.gmra.mxu0 %v1676
    %v2128 = vpop.f32.mrf.mxu0
    %v2129 = vadd.f32 %v1480, %v2128
    %2130 = vmatmul.f32.gmra.mxu0 %v1679
    %v2131 = vpop.f32.mrf.mxu0
    %v2132 = vadd.f32 %v1480, %v2131
    %2133 = vmatmul.f32.gmra.mxu0 %v1682
    %v2134 = vpop.f32.mrf.mxu0
    %v2135 = vadd.f32 %v1480, %v2134
    %2136 = vmatmul.f32.gmra.mxu0 %v1685
    %v2137 = vpop.f32.mrf.mxu0
    %v2138 = vadd.f32 %v1480, %v2137
    %2139 = vmatmul.f32.gmra.mxu0 %v1688
    %v2140 = vpop.f32.mrf.mxu0
    %v2141 = vadd.f32 %v1480, %v2140
    %2142 = vmatmul.f32.gmra.mxu0 %v1691
    %v2143 = vpop.f32.mrf.mxu0
    %v2144 = vadd.f32 %v1480, %v2143
    %2145 = vmatmul.f32.gmra.mxu0 %v1694
    %v2146 = vpop.f32.mrf.mxu0
    %v2147 = vadd.f32 %v1480, %v2146
    %2148 = vmatmul.f32.gmra.mxu0 %v1697
    %v2149 = vpop.f32.mrf.mxu0
    %v2150 = vadd.f32 %v1480, %v2149
    %2151 = vmatmul.f32.gmra.mxu0 %v1700
    %v2152 = vpop.f32.mrf.mxu0
    %v2153 = vadd.f32 %v1480, %v2152
    %2154 = vmatmul.f32.gmra.mxu0 %v1703
    %v2155 = vpop.f32.mrf.mxu0
    %v2156 = vadd.f32 %v1480, %v2155
    %2157 = vmatmul.f32.gmra.mxu0 %v1706
    %v2158 = vpop.f32.mrf.mxu0
    %v2159 = vadd.f32 %v1480, %v2158
    %2160 = vmatmul.f32.gmra.mxu0 %v1709
    %v2161 = vpop.f32.mrf.mxu0
    %v2162 = vadd.f32 %v1480, %v2161
    %2163 = vmatmul.f32.gmra.mxu0 %v1712
    %v2164 = vpop.f32.mrf.mxu0
    %v2165 = vadd.f32 %v1480, %v2164
    %2166 = vmatmul.f32.gmra.mxu0 %v1715
    %v2167 = vpop.f32.mrf.mxu0
    %v2168 = vadd.f32 %v1480, %v2167
    %2169 = vmatmul.f32.gmra.mxu0 %v1718
    %v2170 = vpop.f32.mrf.mxu0
    %v2171 = vadd.f32 %v1480, %v2170
    %2172 = vmatmul.f32.gmra.mxu0 %v1721
    %v2173 = vpop.f32.mrf.mxu0
    %v2174 = vadd.f32 %v1480, %v2173
    %2175 = vmatmul.f32.gmra.mxu0 %v1724
    %v2176 = vpop.f32.mrf.mxu0
    %v2177 = vadd.f32 %v1480, %v2176
    %2178 = vmatmul.f32.gmra.mxu0 %v1727
    %v2179 = vpop.f32.mrf.mxu0
    %v2180 = vadd.f32 %v1480, %v2179
    %2181 = vmatmul.f32.gmra.mxu0 %v1730
    %v2182 = vpop.f32.mrf.mxu0
    %v2183 = vadd.f32 %v1480, %v2182
    %2184 = vmatmul.f32.gmra.mxu0 %v1733
    %v2185 = vpop.f32.mrf.mxu0
    %v2186 = vadd.f32 %v1480, %v2185
    %2187 = vmatmul.f32.gmra.mxu0 %v1736
    %v2188 = vpop.f32.mrf.mxu0
    %v2189 = vadd.f32 %v1480, %v2188
    %2190 = vmatmul.f32.gmra.mxu0 %v1739
    %v2191 = vpop.f32.mrf.mxu0
    %v2192 = vadd.f32 %v1480, %v2191
    %2193 = vmatmul.f32.gmra.mxu0 %v1742
    %v2194 = vpop.f32.mrf.mxu0
    %v2195 = vadd.f32 %v1480, %v2194
    %2196 = vmatmul.f32.gmra.mxu0 %v1745
    %v2197 = vpop.f32.mrf.mxu0
    %v2198 = vadd.f32 %v1480, %v2197
    %2199 = vmatmul.f32.gmra.mxu0 %v1748
    %v2200 = vpop.f32.mrf.mxu0
    %v2201 = vadd.f32 %v1480, %v2200
    %2202 = vmatmul.f32.gmra.mxu0 %v1751
    %v2203 = vpop.f32.mrf.mxu0
    %v2204 = vadd.f32 %v1480, %v2203
    %2205 = vmatmul.f32.gmra.mxu0 %v1754
    %v2206 = vpop.f32.mrf.mxu0
    %v2207 = vadd.f32 %v1480, %v2206
    %2208 = vmatmul.f32.gmra.mxu0 %v1757
    %v2209 = vpop.f32.mrf.mxu0
    %v2210 = vadd.f32 %v1480, %v2209
    %2211 = vmatmul.f32.gmra.mxu0 %v1760
    %v2212 = vpop.f32.mrf.mxu0
    %v2213 = vadd.f32 %v1480, %v2212
    %2214 = vmatmul.f32.gmra.mxu0 %v1763
    %v2215 = vpop.f32.mrf.mxu0
    %v2216 = vadd.f32 %v1480, %v2215
    %2217 = vmatmul.f32.gmra.mxu0 %v1766
    %v2218 = vpop.f32.mrf.mxu0
    %v2219 = vadd.f32 %v1480, %v2218
    %2220 = vmatmul.f32.gmra.mxu0 %v1769
    %v2221 = vpop.f32.mrf.mxu0
    %v2222 = vadd.f32 %v1480, %v2221
    %2223 = vmatmul.f32.gmra.mxu0 %v1772
    %v2224 = vpop.f32.mrf.mxu0
    %v2225 = vadd.f32 %v1480, %v2224
    %2226 = vmatmul.f32.gmra.mxu0 %v1775
    %v2227 = vpop.f32.mrf.mxu0
    %v2228 = vadd.f32 %v1480, %v2227
    %2229 = vmatmul.f32.gmra.mxu0 %v1778
    %v2230 = vpop.f32.mrf.mxu0
    %v2231 = vadd.f32 %v1480, %v2230
    %2232 = vmatmul.f32.gmra.mxu0 %v1781
    %v2233 = vpop.f32.mrf.mxu0
    %v2234 = vadd.f32 %v1480, %v2233
    %2235 = vmatmul.f32.gmra.mxu0 %v1784
    %v2236 = vpop.f32.mrf.mxu0
    %v2237 = vadd.f32 %v1480, %v2236
    %2238 = vmatmul.f32.gmra.mxu0 %v1787
    %v2239 = vpop.f32.mrf.mxu0
    %v2240 = vadd.f32 %v1480, %v2239
    %2241 = vmatmul.f32.gmra.mxu0 %v1790
    %v2242 = vpop.f32.mrf.mxu0
    %v2243 = vadd.f32 %v1480, %v2242
    %2244 = vmatmul.f32.gmra.mxu0 %v1793
    %v2245 = vpop.f32.mrf.mxu0
    %v2246 = vadd.f32 %v1480, %v2245
    %2247 = vmatmul.f32.gmra.mxu0 %v1796
    %v2248 = vpop.f32.mrf.mxu0
    %v2249 = vadd.f32 %v1480, %v2248
    %2250 = vmatmul.f32.gmra.mxu0 %v1799
    %v2251 = vpop.f32.mrf.mxu0
    %v2252 = vadd.f32 %v1480, %v2251
    %2253 = vmatmul.f32.gmra.mxu0 %v1802
    %v2254 = vpop.f32.mrf.mxu0
    %v2255 = vadd.f32 %v1480, %v2254
    %2256 = vmatmul.f32.gmra.mxu0 %v1805
    %v2257 = vpop.f32.mrf.mxu0
    %v2258 = vadd.f32 %v1480, %v2257
    %2259 = vmatmul.f32.gmra.mxu0 %v1808
    %v2260 = vpop.f32.mrf.mxu0
    %v2261 = vadd.f32 %v1480, %v2260
    %2262 = vmatmul.f32.gmra.mxu0 %v1811
    %v2263 = vpop.f32.mrf.mxu0
    %v2264 = vadd.f32 %v1480, %v2263
    %2265 = vmatmul.f32.gmra.mxu0 %v1814
    %v2266 = vpop.f32.mrf.mxu0
    %v2267 = vadd.f32 %v1480, %v2266
    %2268 = vmatmul.f32.gmra.mxu0 %v1817
    %v2269 = vpop.f32.mrf.mxu0
    %v2270 = vadd.f32 %v1480, %v2269
    %2271 = vmatmul.f32.gmra.mxu0 %v1820
    %v2272 = vpop.f32.mrf.mxu0
    %v2273 = vadd.f32 %v1480, %v2272
    %2274 = vmatmul.f32.gmra.mxu0 %v1823
    %v2275 = vpop.f32.mrf.mxu0
    %v2276 = vadd.f32 %v1480, %v2275
    %2277 = vmatmul.f32.gmra.mxu0 %v1826
    %v2278 = vpop.f32.mrf.mxu0
    %v2279 = vadd.f32 %v1480, %v2278
    %2280 = vmatmul.f32.gmra.mxu0 %v1829
    %v2281 = vpop.f32.mrf.mxu0
    %v2282 = vadd.f32 %v1480, %v2281
    %2283 = vmatmul.f32.gmra.mxu0 %v1832
    %v2284 = vpop.f32.mrf.mxu0
    %v2285 = vadd.f32 %v1480, %v2284
    %2286 = vmatmul.f32.gmra.mxu0 %v1835
    %v2287 = vpop.f32.mrf.mxu0
    %v2288 = vadd.f32 %v1480, %v2287
    %2289 = vmatmul.f32.gmra.mxu0 %v1838
    %v2290 = vpop.f32.mrf.mxu0
    %v2291 = vadd.f32 %v1480, %v2290
    %2292 = vmatmul.f32.gmra.mxu0 %v1841
    %v2293 = vpop.f32.mrf.mxu0
    %v2294 = vadd.f32 %v1480, %v2293
    %2295 = vmatmul.f32.gmra.mxu0 %v1844
    %v2296 = vpop.f32.mrf.mxu0
    %v2297 = vadd.f32 %v1480, %v2296
    %2298 = vmatmul.f32.gmra.mxu0 %v1847
    %v2299 = vpop.f32.mrf.mxu0
    %v2300 = vadd.f32 %v1480, %v2299
    %2301 = vmatmul.f32.gmra.mxu0 %v1850
    %v2302 = vpop.f32.mrf.mxu0
    %v2303 = vadd.f32 %v1480, %v2302
    %2304 = vmatmul.f32.gmra.mxu0 %v1853
    %v2305 = vpop.f32.mrf.mxu0
    %v2306 = vadd.f32 %v1480, %v2305
    %2307 = vmatmul.f32.gmra.mxu0 %v1856
    %v2308 = vpop.f32.mrf.mxu0
    %v2309 = vadd.f32 %v1480, %v2308
    %2310 = vmatmul.f32.gmra.mxu0 %v1859
    %v2311 = vpop.f32.mrf.mxu0
    %v2312 = vadd.f32 %v1480, %v2311
    %2313 = vmatmul.f32.gmra.mxu0 %v1862
    %v2314 = vpop.f32.mrf.mxu0
    %v2315 = vadd.f32 %v1480, %v2314
    %2316 = vmatmul.f32.gmra.mxu0 %v1865
    %v2317 = vpop.f32.mrf.mxu0
    %v2318 = vadd.f32 %v1480, %v2317
    %2319 = vmatmul.f32.gmra.mxu0 %v1868
    %v2320 = vpop.f32.mrf.mxu0
    %v2321 = vadd.f32 %v1480, %v2320
    %2322 = vmatmul.f32.gmra.mxu0 %v1871
    %v2323 = vpop.f32.mrf.mxu0
    %v2324 = vadd.f32 %v1480, %v2323
    %2325 = vmatmul.f32.gmra.mxu0 %v1874
    %v2326 = vpop.f32.mrf.mxu0
    %v2327 = vadd.f32 %v1480, %v2326
    %2328 = vmatmul.f32.gmra.mxu0 %v1877
    %v2329 = vpop.f32.mrf.mxu0
    %v2330 = vadd.f32 %v1480, %v2329
    %2331 = vmatmul.f32.gmra.mxu0 %v1880
    %v2332 = vpop.f32.mrf.mxu0
    %v2333 = vadd.f32 %v1480, %v2332
    %2334 = vmatmul.f32.gmra.mxu0 %v1883
    %v2335 = vpop.f32.mrf.mxu0
    %v2336 = vadd.f32 %v1480, %v2335
    %2337 = vmatmul.f32.gmra.mxu0 %v1886
    %v2338 = vpop.f32.mrf.mxu0
    %v2339 = vadd.f32 %v1480, %v2338
    %2340 = vmatmul.f32.gmra.mxu0 %v1889
    %v2341 = vpop.f32.mrf.mxu0
    %v2342 = vadd.f32 %v1480, %v2341
    %2343 = vmatmul.f32.gmra.mxu0 %v1892
    %v2344 = vpop.f32.mrf.mxu0
    %v2345 = vadd.f32 %v1480, %v2344
    %2346 = vmatmul.f32.gmra.mxu0 %v1895
    %v2347 = vpop.f32.mrf.mxu0
    %v2348 = vadd.f32 %v1480, %v2347
    %2349 = vmatmul.f32.gmra.mxu0 %v1898
    %v2350 = vpop.f32.mrf.mxu0
    %v2351 = vadd.f32 %v1480, %v2350
    %2352 = vmatmul.f32.gmra.mxu0 %v1901
    %v2353 = vpop.f32.mrf.mxu0
    %v2354 = vadd.f32 %v1480, %v2353
    %2355 = vmatmul.f32.gmra.mxu0 %v1904
    %v2356 = vpop.f32.mrf.mxu0
    %v2357 = vadd.f32 %v1480, %v2356
    %2358 = vmatmul.f32.gmra.mxu0 %v1907
    %v2359 = vpop.f32.mrf.mxu0
    %v2360 = vadd.f32 %v1480, %v2359
    %2361 = vmatmul.f32.gmra.mxu0 %v1910
    %v2362 = vpop.f32.mrf.mxu0
    %v2363 = vadd.f32 %v1480, %v2362
    %2364 = vmatmul.f32.gmra.mxu0 %v1913
    %v2365 = vpop.f32.mrf.mxu0
    %v2366 = vadd.f32 %v1480, %v2365
    %2367 = vdwg.mxu0
    %v2368 = vmax.f32 %v1937, 0.0
    %v2369 = vmax.f32 %v1940, 0.0
    %v2370 = vmax.f32 %v1943, 0.0
    %v2371 = vmax.f32 %v1946, 0.0
    %v2372 = vmax.f32 %v1949, 0.0
    %v2373 = vmax.f32 %v1952, 0.0
    %v2374 = vmax.f32 %v1955, 0.0
    %v2375 = vmax.f32 %v1958, 0.0
    %v2376 = vmax.f32 %v1961, 0.0
    %v2377 = vmax.f32 %v1964, 0.0
    %v2378 = vmax.f32 %v1967, 0.0
    %v2379 = vmax.f32 %v1970, 0.0
    %v2380 = vmax.f32 %v1973, 0.0
    %v2381 = vmax.f32 %v1976, 0.0
    %v2382 = vmax.f32 %v1979, 0.0
    %v2383 = vmax.f32 %v1982, 0.0
    %v2384 = vmax.f32 %v1985, 0.0
    %v2385 = vmax.f32 %v1988, 0.0
    %v2386 = vmax.f32 %v1991, 0.0
    %v2387 = vmax.f32 %v1994, 0.0
    %v2388 = vmax.f32 %v1997, 0.0
    %v2389 = vmax.f32 %v2000, 0.0
    %v2390 = vmax.f32 %v2003, 0.0
    %v2391 = vmax.f32 %v2006, 0.0
    %v2392 = vmax.f32 %v2009, 0.0
    %v2393 = vmax.f32 %v2012, 0.0
    %v2394 = vmax.f32 %v2015, 0.0
    %v2395 = vmax.f32 %v2018, 0.0
    %v2396 = vmax.f32 %v2021, 0.0
    %v2397 = vmax.f32 %v2024, 0.0
    %v2398 = vmax.f32 %v2027, 0.0
    %v2399 = vmax.f32 %v2030, 0.0
    %v2400 = vmax.f32 %v2033, 0.0
    %v2401 = vmax.f32 %v2036, 0.0
    %v2402 = vmax.f32 %v2039, 0.0
    %v2403 = vmax.f32 %v2042, 0.0
    %v2404 = vmax.f32 %v2045, 0.0
    %v2405 = vmax.f32 %v2048, 0.0
    %v2406 = vmax.f32 %v2051, 0.0
    %v2407 = vmax.f32 %v2054, 0.0
    %v2408 = vmax.f32 %v2057, 0.0
    %v2409 = vmax.f32 %v2060, 0.0
    %v2410 = vmax.f32 %v2063, 0.0
    %v2411 = vmax.f32 %v2066, 0.0
    %v2412 = vmax.f32 %v2069, 0.0
    %v2413 = vmax.f32 %v2072, 0.0
    %v2414 = vmax.f32 %v2075, 0.0
    %v2415 = vmax.f32 %v2078, 0.0
    %v2416 = vmax.f32 %v2081, 0.0
    %v2417 = vmax.f32 %v2084, 0.0
    %v2418 = vmax.f32 %v2087, 0.0
    %v2419 = vmax.f32 %v2090, 0.0
    %v2420 = vmax.f32 %v2093, 0.0
    %v2421 = vmax.f32 %v2096, 0.0
    %v2422 = vmax.f32 %v2099, 0.0
    %v2423 = vmax.f32 %v2102, 0.0
    %v2424 = vmax.f32 %v2105, 0.0
    %v2425 = vmax.f32 %v2108, 0.0
    %v2426 = vmax.f32 %v2111, 0.0
    %v2427 = vmax.f32 %v2114, 0.0
    %v2428 = vmax.f32 %v2117, 0.0
    %v2429 = vmax.f32 %v2120, 0.0
    %v2430 = vmax.f32 %v2123, 0.0
    %v2431 = vmax.f32 %v2126, 0.0
    %v2432 = vmax.f32 %v2129, 0.0
    %v2433 = vmax.f32 %v2132, 0.0
    %v2434 = vmax.f32 %v2135, 0.0
    %v2435 = vmax.f32 %v2138, 0.0
    %v2436 = vmax.f32 %v2141, 0.0
    %v2437 = vmax.f32 %v2144, 0.0
    %v2438 = vmax.f32 %v2147, 0.0
    %v2439 = vmax.f32 %v2150, 0.0
    %v2440 = vmax.f32 %v2153, 0.0
    %v2441 = vmax.f32 %v2156, 0.0
    %v2442 = vmax.f32 %v2159, 0.0
    %v2443 = vmax.f32 %v2162, 0.0
    %v2444 = vmax.f32 %v2165, 0.0
    %v2445 = vmax.f32 %v2168, 0.0
    %v2446 = vmax.f32 %v2171, 0.0
    %v2447 = vmax.f32 %v2174, 0.0
    %v2448 = vmax.f32 %v2177, 0.0
    %v2449 = vmax.f32 %v2180, 0.0
    %v2450 = vmax.f32 %v2183, 0.0
    %v2451 = vmax.f32 %v2186, 0.0
    %v2452 = vmax.f32 %v2189, 0.0
    %v2453 = vmax.f32 %v2192, 0.0
    %v2454 = vmax.f32 %v2195, 0.0
    %v2455 = vmax.f32 %v2198, 0.0
    %v2456 = vmax.f32 %v2201, 0.0
    %v2457 = vmax.f32 %v2204, 0.0
    %v2458 = vmax.f32 %v2207, 0.0
    %v2459 = vmax.f32 %v2210, 0.0
    %v2460 = vmax.f32 %v2213, 0.0
    %v2461 = vmax.f32 %v2216, 0.0
    %v2462 = vmax.f32 %v2219, 0.0
    %v2463 = vmax.f32 %v2222, 0.0
    %v2464 = vmax.f32 %v2225, 0.0
    %v2465 = vmax.f32 %v2228, 0.0
    %v2466 = vmax.f32 %v2231, 0.0
    %v2467 = vmax.f32 %v2234, 0.0
    %v2468 = vmax.f32 %v2237, 0.0
    %v2469 = vmax.f32 %v2240, 0.0
    %v2470 = vmax.f32 %v2243, 0.0
    %v2471 = vmax.f32 %v2246, 0.0
    %v2472 = vmax.f32 %v2249, 0.0
    %v2473 = vmax.f32 %v2252, 0.0
    %v2474 = vmax.f32 %v2255, 0.0
    %v2475 = vmax.f32 %v2258, 0.0
    %v2476 = vmax.f32 %v2261, 0.0
    %v2477 = vmax.f32 %v2264, 0.0
    %v2478 = vmax.f32 %v2267, 0.0
    %v2479 = vmax.f32 %v2270, 0.0
    %v2480 = vmax.f32 %v2273, 0.0
    %v2481 = vmax.f32 %v2276, 0.0
    %v2482 = vmax.f32 %v2279, 0.0
    %v2483 = vmax.f32 %v2282, 0.0
    %v2484 = vmax.f32 %v2285, 0.0
    %v2485 = vmax.f32 %v2288, 0.0
    %v2486 = vmax.f32 %v2291, 0.0
    %v2487 = vmax.f32 %v2294, 0.0
    %v2488 = vmax.f32 %v2297, 0.0
    %v2489 = vmax.f32 %v2300, 0.0
    %v2490 = vmax.f32 %v2303, 0.0
    %v2491 = vmax.f32 %v2306, 0.0
    %v2492 = vmax.f32 %v2309, 0.0
    %v2493 = vmax.f32 %v2312, 0.0
    %v2494 = vmax.f32 %v2315, 0.0
    %v2495 = vmax.f32 %v2318, 0.0
    %v2496 = vmax.f32 %v2321, 0.0
    %v2497 = vmax.f32 %v2324, 0.0
    %v2498 = vmax.f32 %v2327, 0.0
    %v2499 = vmax.f32 %v2330, 0.0
    %v2500 = vmax.f32 %v2333, 0.0
    %v2501 = vmax.f32 %v2336, 0.0
    %v2502 = vmax.f32 %v2339, 0.0
    %v2503 = vmax.f32 %v2342, 0.0
    %v2504 = vmax.f32 %v2345, 0.0
    %v2505 = vmax.f32 %v2348, 0.0
    %v2506 = vmax.f32 %v2351, 0.0
    %v2507 = vmax.f32 %v2354, 0.0
    %v2508 = vmax.f32 %v2357, 0.0
    %v2509 = vmax.f32 %v2360, 0.0
    %v2510 = vmax.f32 %v2363, 0.0
    %v2511 = vmax.f32 %v2366, 0.0
    %v2512 = vmax.f32 %v2368, %v2371
    %v2513 = vmax.f32 %v2369, %v2372
    %v2514 = vmax.f32 %v2370, %v2373
    %v2515 = vmax.f32 %v2374, %v2377
    %v2516 = vmax.f32 %v2375, %v2378
    %v2517 = vmax.f32 %v2376, %v2379
    %v2518 = vmax.f32 %v2380, %v2383
    %v2519 = vmax.f32 %v2381, %v2384
    %v2520 = vmax.f32 %v2382, %v2385
    %v2521 = vmax.f32 %v2386, %v2389
    %v2522 = vmax.f32 %v2387, %v2390
    %v2523 = vmax.f32 %v2388, %v2391
    %v2524 = vmax.f32 %v2392, %v2395
    %v2525 = vmax.f32 %v2393, %v2396
    %v2526 = vmax.f32 %v2394, %v2397
    %v2527 = vmax.f32 %v2398, %v2401
    %v2528 = vmax.f32 %v2399, %v2402
    %v2529 = vmax.f32 %v2400, %v2403
    %v2530 = vmax.f32 %v2404, %v2407
    %v2531 = vmax.f32 %v2405, %v2408
    %v2532 = vmax.f32 %v2406, %v2409
    %v2533 = vmax.f32 %v2410, %v2413
    %v2534 = vmax.f32 %v2411, %v2414
    %v2535 = vmax.f32 %v2412, %v2415
    %v2536 = vmax.f32 %v2416, %v2419
    %v2537 = vmax.f32 %v2417, %v2420
    %v2538 = vmax.f32 %v2418, %v2421
    %v2539 = vmax.f32 %v2422, %v2425
    %v2540 = vmax.f32 %v2423, %v2426
    %v2541 = vmax.f32 %v2424, %v2427
    %v2542 = vmax.f32 %v2428, %v2431
    %v2543 = vmax.f32 %v2429, %v2432
    %v2544 = vmax.f32 %v2430, %v2433
    %v2545 = vmax.f32 %v2434, %v2437
    %v2546 = vmax.f32 %v2435, %v2438
    %v2547 = vmax.f32 %v2436, %v2439
    %v2548 = vmax.f32 %v2440, %v2443
    %v2549 = vmax.f32 %v2441, %v2444
    %v2550 = vmax.f32 %v2442, %v2445
    %v2551 = vmax.f32 %v2446, %v2449
    %v2552 = vmax.f32 %v2447, %v2450
    %v2553 = vmax.f32 %v2448, %v2451
    %v2554 = vmax.f32 %v2452, %v2455
    %v2555 = vmax.f32 %v2453, %v2456
    %v2556 = vmax.f32 %v2454, %v2457
    %v2557 = vmax.f32 %v2458, %v2461
    %v2558 = vmax.f32 %v2459, %v2462
    %v2559 = vmax.f32 %v2460, %v2463
    %v2560 = vmax.f32 %v2464, %v2467
    %v2561 = vmax.f32 %v2465, %v2468
    %v2562 = vmax.f32 %v2466, %v2469
    %v2563 = vmax.f32 %v2470, %v2473
    %v2564 = vmax.f32 %v2471, %v2474
    %v2565 = vmax.f32 %v2472, %v2475
    %v2566 = vmax.f32 %v2476, %v2479
    %v2567 = vmax.f32 %v2477, %v2480
    %v2568 = vmax.f32 %v2478, %v2481
    %v2569 = vmax.f32 %v2482, %v2485
    %v2570 = vmax.f32 %v2483, %v2486
    %v2571 = vmax.f32 %v2484, %v2487
    %v2572 = vmax.f32 %v2488, %v2491
    %v2573 = vmax.f32 %v2489, %v2492
    %v2574 = vmax.f32 %v2490, %v2493
    %v2575 = vmax.f32 %v2494, %v2497
    %v2576 = vmax.f32 %v2495, %v2498
    %v2577 = vmax.f32 %v2496, %v2499
    %v2578 = vmax.f32 %v2500, %v2503
    %v2579 = vmax.f32 %v2501, %v2504
    %v2580 = vmax.f32 %v2502, %v2505
    %v2581 = vmax.f32 %v2506, %v2509
    %v2582 = vmax.f32 %v2507, %v2510
    %v2583 = vmax.f32 %v2508, %v2511
    %2656 = vrot.lane.b32.xlu0 %v2512, 32
    %v2657 = vpop.permute.xlu0 %2656
    %2658 = vrot.lane.b32.xlu0 %v2513, 32
    %v2659 = vpop.permute.xlu0 %2658
    %2660 = vrot.lane.b32.xlu0 %v2514, 32
    %v2661 = vpop.permute.xlu0 %2660
    %2662 = vrot.lane.b32.xlu0 %v2515, 32
    %v2663 = vpop.permute.xlu0 %2662
    %2664 = vrot.lane.b32.xlu0 %v2516, 32
    %v2665 = vpop.permute.xlu0 %2664
    %2666 = vrot.lane.b32.xlu0 %v2517, 32
    %v2667 = vpop.permute.xlu0 %2666
    %2668 = vrot.lane.b32.xlu0 %v2518, 32
    %v2669 = vpop.permute.xlu0 %2668
    %2670 = vrot.lane.b32.xlu0 %v2519, 32
    %v2671 = vpop.permute.xlu0 %2670
    %2672 = vrot.lane.b32.xlu0 %v2520, 32
    %v2673 = vpop.permute.xlu0 %2672
    %2674 = vrot.lane.b32.xlu0 %v2521, 32
    %v2675 = vpop.permute.xlu0 %2674
    %2676 = vrot.lane.b32.xlu0 %v2522, 32
    %v2677 = vpop.permute.xlu0 %2676
    %2678 = vrot.lane.b32.xlu0 %v2523, 32
    %v2679 = vpop.permute.xlu0 %2678
    %2680 = vrot.lane.b32.xlu0 %v2524, 32
    %v2681 = vpop.permute.xlu0 %2680
    %2682 = vrot.lane.b32.xlu0 %v2525, 32
    %v2683 = vpop.permute.xlu0 %2682
    %2684 = vrot.lane.b32.xlu0 %v2526, 32
    %v2685 = vpop.permute.xlu0 %2684
    %2686 = vrot.lane.b32.xlu0 %v2527, 32
    %v2687 = vpop.permute.xlu0 %2686
    %2688 = vrot.lane.b32.xlu0 %v2528, 32
    %v2689 = vpop.permute.xlu0 %2688
    %2690 = vrot.lane.b32.xlu0 %v2529, 32
    %v2691 = vpop.permute.xlu0 %2690
    %2692 = vrot.lane.b32.xlu0 %v2530, 32
    %v2693 = vpop.permute.xlu0 %2692
    %2694 = vrot.lane.b32.xlu0 %v2531, 32
    %v2695 = vpop.permute.xlu0 %2694
    %2696 = vrot.lane.b32.xlu0 %v2532, 32
    %v2697 = vpop.permute.xlu0 %2696
    %2698 = vrot.lane.b32.xlu0 %v2533, 32
    %v2699 = vpop.permute.xlu0 %2698
    %2700 = vrot.lane.b32.xlu0 %v2534, 32
    %v2701 = vpop.permute.xlu0 %2700
    %2702 = vrot.lane.b32.xlu0 %v2535, 32
    %v2703 = vpop.permute.xlu0 %2702
    %2704 = vrot.lane.b32.xlu0 %v2536, 32
    %v2705 = vpop.permute.xlu0 %2704
    %2706 = vrot.lane.b32.xlu0 %v2537, 32
    %v2707 = vpop.permute.xlu0 %2706
    %2708 = vrot.lane.b32.xlu0 %v2538, 32
    %v2709 = vpop.permute.xlu0 %2708
    %2710 = vrot.lane.b32.xlu0 %v2539, 32
    %v2711 = vpop.permute.xlu0 %2710
    %2712 = vrot.lane.b32.xlu0 %v2540, 32
    %v2713 = vpop.permute.xlu0 %2712
    %2714 = vrot.lane.b32.xlu0 %v2541, 32
    %v2715 = vpop.permute.xlu0 %2714
    %2716 = vrot.lane.b32.xlu0 %v2542, 32
    %v2717 = vpop.permute.xlu0 %2716
    %2718 = vrot.lane.b32.xlu0 %v2543, 32
    %v2719 = vpop.permute.xlu0 %2718
    %2720 = vrot.lane.b32.xlu0 %v2544, 32
    %v2721 = vpop.permute.xlu0 %2720
    %2722 = vrot.lane.b32.xlu0 %v2545, 32
    %v2723 = vpop.permute.xlu0 %2722
    %2724 = vrot.lane.b32.xlu0 %v2546, 32
    %v2725 = vpop.permute.xlu0 %2724
    %2726 = vrot.lane.b32.xlu0 %v2547, 32
    %v2727 = vpop.permute.xlu0 %2726
    %2728 = vrot.lane.b32.xlu0 %v2548, 32
    %v2729 = vpop.permute.xlu0 %2728
    %2730 = vrot.lane.b32.xlu0 %v2549, 32
    %v2731 = vpop.permute.xlu0 %2730
    %2732 = vrot.lane.b32.xlu0 %v2550, 32
    %v2733 = vpop.permute.xlu0 %2732
    %2734 = vrot.lane.b32.xlu0 %v2551, 32
    %v2735 = vpop.permute.xlu0 %2734
    %2736 = vrot.lane.b32.xlu0 %v2552, 32
    %v2737 = vpop.permute.xlu0 %2736
    %2738 = vrot.lane.b32.xlu0 %v2553, 32
    %v2739 = vpop.permute.xlu0 %2738
    %2740 = vrot.lane.b32.xlu0 %v2554, 32
    %v2741 = vpop.permute.xlu0 %2740
    %2742 = vrot.lane.b32.xlu0 %v2555, 32
    %v2743 = vpop.permute.xlu0 %2742
    %2744 = vrot.lane.b32.xlu0 %v2556, 32
    %v2745 = vpop.permute.xlu0 %2744
    %2746 = vrot.lane.b32.xlu0 %v2557, 32
    %v2747 = vpop.permute.xlu0 %2746
    %2748 = vrot.lane.b32.xlu0 %v2558, 32
    %v2749 = vpop.permute.xlu0 %2748
    %2750 = vrot.lane.b32.xlu0 %v2559, 32
    %v2751 = vpop.permute.xlu0 %2750
    %2752 = vrot.lane.b32.xlu0 %v2560, 32
    %v2753 = vpop.permute.xlu0 %2752
    %2754 = vrot.lane.b32.xlu0 %v2561, 32
    %v2755 = vpop.permute.xlu0 %2754
    %2756 = vrot.lane.b32.xlu0 %v2562, 32
    %v2757 = vpop.permute.xlu0 %2756
    %2758 = vrot.lane.b32.xlu0 %v2563, 32
    %v2759 = vpop.permute.xlu0 %2758
    %2760 = vrot.lane.b32.xlu0 %v2564, 32
    %v2761 = vpop.permute.xlu0 %2760
    %2762 = vrot.lane.b32.xlu0 %v2565, 32
    %v2763 = vpop.permute.xlu0 %2762
    %2764 = vrot.lane.b32.xlu0 %v2566, 32
    %v2765 = vpop.permute.xlu0 %2764
    %2766 = vrot.lane.b32.xlu0 %v2567, 32
    %v2767 = vpop.permute.xlu0 %2766
    %2768 = vrot.lane.b32.xlu0 %v2568, 32
    %v2769 = vpop.permute.xlu0 %2768
    %2770 = vrot.lane.b32.xlu0 %v2569, 32
    %v2771 = vpop.permute.xlu0 %2770
    %2772 = vrot.lane.b32.xlu0 %v2570, 32
    %v2773 = vpop.permute.xlu0 %2772
    %2774 = vrot.lane.b32.xlu0 %v2571, 32
    %v2775 = vpop.permute.xlu0 %2774
    %2776 = vrot.lane.b32.xlu0 %v2572, 32
    %v2777 = vpop.permute.xlu0 %2776
    %2778 = vrot.lane.b32.xlu0 %v2573, 32
    %v2779 = vpop.permute.xlu0 %2778
    %2780 = vrot.lane.b32.xlu0 %v2574, 32
    %v2781 = vpop.permute.xlu0 %2780
    %2782 = vrot.lane.b32.xlu0 %v2575, 32
    %v2783 = vpop.permute.xlu0 %2782
    %2784 = vrot.lane.b32.xlu0 %v2576, 32
    %v2785 = vpop.permute.xlu0 %2784
    %2786 = vrot.lane.b32.xlu0 %v2577, 32
    %v2787 = vpop.permute.xlu0 %2786
    %2788 = vrot.lane.b32.xlu0 %v2578, 32
    %v2789 = vpop.permute.xlu0 %2788
    %2790 = vrot.lane.b32.xlu0 %v2579, 32
    %v2791 = vpop.permute.xlu0 %2790
    %2792 = vrot.lane.b32.xlu0 %v2580, 32
    %v2793 = vpop.permute.xlu0 %2792
    %2794 = vrot.lane.b32.xlu0 %v2581, 32
    %v2795 = vpop.permute.xlu0 %2794
    %2796 = vrot.lane.b32.xlu0 %v2582, 32
    %v2797 = vpop.permute.xlu0 %2796
    %2798 = vrot.lane.b32.xlu0 %v2583, 32
    %v2799 = vpop.permute.xlu0 %2798
    %2872 = vrot.lane.b32.xlu0 %v2515, 64
    %v2873 = vpop.permute.xlu0 %2872
    %2874 = vrot.lane.b32.xlu0 %v2516, 64
    %v2875 = vpop.permute.xlu0 %2874
    %2876 = vrot.lane.b32.xlu0 %v2517, 64
    %v2877 = vpop.permute.xlu0 %2876
    %2878 = vrot.lane.b32.xlu0 %v2518, 64
    %v2879 = vpop.permute.xlu0 %2878
    %2880 = vrot.lane.b32.xlu0 %v2519, 64
    %v2881 = vpop.permute.xlu0 %2880
    %2882 = vrot.lane.b32.xlu0 %v2520, 64
    %v2883 = vpop.permute.xlu0 %2882
    %2884 = vrot.lane.b32.xlu0 %v2521, 64
    %v2885 = vpop.permute.xlu0 %2884
    %2886 = vrot.lane.b32.xlu0 %v2522, 64
    %v2887 = vpop.permute.xlu0 %2886
    %2888 = vrot.lane.b32.xlu0 %v2523, 64
    %v2889 = vpop.permute.xlu0 %2888
    %2890 = vrot.lane.b32.xlu0 %v2524, 64
    %v2891 = vpop.permute.xlu0 %2890
    %2892 = vrot.lane.b32.xlu0 %v2525, 64
    %v2893 = vpop.permute.xlu0 %2892
    %2894 = vrot.lane.b32.xlu0 %v2526, 64
    %v2895 = vpop.permute.xlu0 %2894
    %2896 = vrot.lane.b32.xlu0 %v2527, 64
    %v2897 = vpop.permute.xlu0 %2896
    %2898 = vrot.lane.b32.xlu0 %v2528, 64
    %v2899 = vpop.permute.xlu0 %2898
    %2900 = vrot.lane.b32.xlu0 %v2529, 64
    %v2901 = vpop.permute.xlu0 %2900
    %2902 = vrot.lane.b32.xlu0 %v2530, 64
    %v2903 = vpop.permute.xlu0 %2902
    %2904 = vrot.lane.b32.xlu0 %v2531, 64
    %v2905 = vpop.permute.xlu0 %2904
    %2906 = vrot.lane.b32.xlu0 %v2532, 64
    %v2907 = vpop.permute.xlu0 %2906
    %2908 = vrot.lane.b32.xlu0 %v2533, 64
    %v2909 = vpop.permute.xlu0 %2908
    %2910 = vrot.lane.b32.xlu0 %v2534, 64
    %v2911 = vpop.permute.xlu0 %2910
    %2912 = vrot.lane.b32.xlu0 %v2535, 64
    %v2913 = vpop.permute.xlu0 %2912
    %2914 = vrot.lane.b32.xlu0 %v2536, 64
    %v2915 = vpop.permute.xlu0 %2914
    %2916 = vrot.lane.b32.xlu0 %v2537, 64
    %v2917 = vpop.permute.xlu0 %2916
    %2918 = vrot.lane.b32.xlu0 %v2538, 64
    %v2919 = vpop.permute.xlu0 %2918
    %2920 = vrot.lane.b32.xlu0 %v2539, 64
    %v2921 = vpop.permute.xlu0 %2920
    %2922 = vrot.lane.b32.xlu0 %v2540, 64
    %v2923 = vpop.permute.xlu0 %2922
    %2924 = vrot.lane.b32.xlu0 %v2541, 64
    %v2925 = vpop.permute.xlu0 %2924
    %2926 = vrot.lane.b32.xlu0 %v2542, 64
    %v2927 = vpop.permute.xlu0 %2926
    %2928 = vrot.lane.b32.xlu0 %v2543, 64
    %v2929 = vpop.permute.xlu0 %2928
    %2930 = vrot.lane.b32.xlu0 %v2544, 64
    %v2931 = vpop.permute.xlu0 %2930
    %2932 = vrot.lane.b32.xlu0 %v2545, 64
    %v2933 = vpop.permute.xlu0 %2932
    %2934 = vrot.lane.b32.xlu0 %v2546, 64
    %v2935 = vpop.permute.xlu0 %2934
    %2936 = vrot.lane.b32.xlu0 %v2547, 64
    %v2937 = vpop.permute.xlu0 %2936
    %2938 = vrot.lane.b32.xlu0 %v2548, 64
    %v2939 = vpop.permute.xlu0 %2938
    %2940 = vrot.lane.b32.xlu0 %v2549, 64
    %v2941 = vpop.permute.xlu0 %2940
    %2942 = vrot.lane.b32.xlu0 %v2550, 64
    %v2943 = vpop.permute.xlu0 %2942
    %2944 = vrot.lane.b32.xlu0 %v2551, 64
    %v2945 = vpop.permute.xlu0 %2944
    %2946 = vrot.lane.b32.xlu0 %v2552, 64
    %v2947 = vpop.permute.xlu0 %2946
    %2948 = vrot.lane.b32.xlu0 %v2553, 64
    %v2949 = vpop.permute.xlu0 %2948
    %2950 = vrot.lane.b32.xlu0 %v2554, 64
    %v2951 = vpop.permute.xlu0 %2950
    %2952 = vrot.lane.b32.xlu0 %v2555, 64
    %v2953 = vpop.permute.xlu0 %2952
    %2954 = vrot.lane.b32.xlu0 %v2556, 64
    %v2955 = vpop.permute.xlu0 %2954
    %2956 = vrot.lane.b32.xlu0 %v2557, 64
    %v2957 = vpop.permute.xlu0 %2956
    %2958 = vrot.lane.b32.xlu0 %v2558, 64
    %v2959 = vpop.permute.xlu0 %2958
    %2960 = vrot.lane.b32.xlu0 %v2559, 64
    %v2961 = vpop.permute.xlu0 %2960
    %2962 = vrot.lane.b32.xlu0 %v2560, 64
    %v2963 = vpop.permute.xlu0 %2962
    %2964 = vrot.lane.b32.xlu0 %v2561, 64
    %v2965 = vpop.permute.xlu0 %2964
    %2966 = vrot.lane.b32.xlu0 %v2562, 64
    %v2967 = vpop.permute.xlu0 %2966
    %2968 = vrot.lane.b32.xlu0 %v2563, 64
    %v2969 = vpop.permute.xlu0 %2968
    %2970 = vrot.lane.b32.xlu0 %v2564, 64
    %v2971 = vpop.permute.xlu0 %2970
    %2972 = vrot.lane.b32.xlu0 %v2565, 64
    %v2973 = vpop.permute.xlu0 %2972
    %2974 = vrot.lane.b32.xlu0 %v2566, 64
    %v2975 = vpop.permute.xlu0 %2974
    %2976 = vrot.lane.b32.xlu0 %v2567, 64
    %v2977 = vpop.permute.xlu0 %2976
    %2978 = vrot.lane.b32.xlu0 %v2568, 64
    %v2979 = vpop.permute.xlu0 %2978
    %2980 = vrot.lane.b32.xlu0 %v2569, 64
    %v2981 = vpop.permute.xlu0 %2980
    %2982 = vrot.lane.b32.xlu0 %v2570, 64
    %v2983 = vpop.permute.xlu0 %2982
    %2984 = vrot.lane.b32.xlu0 %v2571, 64
    %v2985 = vpop.permute.xlu0 %2984
    %2986 = vrot.lane.b32.xlu0 %v2572, 64
    %v2987 = vpop.permute.xlu0 %2986
    %2988 = vrot.lane.b32.xlu0 %v2573, 64
    %v2989 = vpop.permute.xlu0 %2988
    %2990 = vrot.lane.b32.xlu0 %v2574, 64
    %v2991 = vpop.permute.xlu0 %2990
    %2992 = vrot.lane.b32.xlu0 %v2575, 64
    %v2993 = vpop.permute.xlu0 %2992
    %2994 = vrot.lane.b32.xlu0 %v2576, 64
    %v2995 = vpop.permute.xlu0 %2994
    %2996 = vrot.lane.b32.xlu0 %v2577, 64
    %v2997 = vpop.permute.xlu0 %2996
    %2998 = vrot.lane.b32.xlu0 %v2578, 64
    %v2999 = vpop.permute.xlu0 %2998
    %3000 = vrot.lane.b32.xlu0 %v2579, 64
    %v3001 = vpop.permute.xlu0 %3000
    %3002 = vrot.lane.b32.xlu0 %v2580, 64
    %v3003 = vpop.permute.xlu0 %3002
    %3004 = vrot.lane.b32.xlu0 %v2581, 64
    %v3005 = vpop.permute.xlu0 %3004
    %3006 = vrot.lane.b32.xlu0 %v2582, 64
    %v3007 = vpop.permute.xlu0 %3006
    %3008 = vrot.lane.b32.xlu0 %v2583, 64
    %v3009 = vpop.permute.xlu0 %3008
    %3010 = vrot.lane.b32.xlu0 0.0, 64
    %v3011 = vpop.permute.xlu0 %3010
    %vm3082 = vcmask 261120
    %v3083 = vsel %vm3082, 0.0, %v2657
    %v3084 = vsel %vm3082, 0.0, %v2659
    %v3085 = vsel %vm3082, 0.0, %v2661
    %v3086 = vsel %vm3082, %v2512, %v2663
    %v3087 = vsel %vm3082, %v2513, %v2665
    %v3088 = vsel %vm3082, %v2514, %v2667
    %v3089 = vsel %vm3082, %v2515, %v2669
    %v3090 = vsel %vm3082, %v2516, %v2671
    %v3091 = vsel %vm3082, %v2517, %v2673
    %v3092 = vsel %vm3082, %v2518, %v2675
    %v3093 = vsel %vm3082, %v2519, %v2677
    %v3094 = vsel %vm3082, %v2520, %v2679
    %v3095 = vsel %vm3082, %v2521, %v2681
    %v3096 = vsel %vm3082, %v2522, %v2683
    %v3097 = vsel %vm3082, %v2523, %v2685
    %v3098 = vsel %vm3082, %v2524, %v2687
    %v3099 = vsel %vm3082, %v2525, %v2689
    %v3100 = vsel %vm3082, %v2526, %v2691
    %v3101 = vsel %vm3082, %v2527, %v2693
    %v3102 = vsel %vm3082, %v2528, %v2695
    %v3103 = vsel %vm3082, %v2529, %v2697
    %v3104 = vsel %vm3082, %v2530, %v2699
    %v3105 = vsel %vm3082, %v2531, %v2701
    %v3106 = vsel %vm3082, %v2532, %v2703
    %v3107 = vsel %vm3082, %v2533, %v2705
    %v3108 = vsel %vm3082, %v2534, %v2707
    %v3109 = vsel %vm3082, %v2535, %v2709
    %v3110 = vsel %vm3082, %v2536, %v2711
    %v3111 = vsel %vm3082, %v2537, %v2713
    %v3112 = vsel %vm3082, %v2538, %v2715
    %v3113 = vsel %vm3082, %v2539, %v2717
    %v3114 = vsel %vm3082, %v2540, %v2719
    %v3115 = vsel %vm3082, %v2541, %v2721
    %v3116 = vsel %vm3082, %v2542, %v2723
    %v3117 = vsel %vm3082, %v2543, %v2725
    %v3118 = vsel %vm3082, %v2544, %v2727
    %v3119 = vsel %vm3082, %v2545, %v2729
    %v3120 = vsel %vm3082, %v2546, %v2731
    %v3121 = vsel %vm3082, %v2547, %v2733
    %v3122 = vsel %vm3082, %v2548, %v2735
    %v3123 = vsel %vm3082, %v2549, %v2737
    %v3124 = vsel %vm3082, %v2550, %v2739
    %v3125 = vsel %vm3082, %v2551, %v2741
    %v3126 = vsel %vm3082, %v2552, %v2743
    %v3127 = vsel %vm3082, %v2553, %v2745
    %v3128 = vsel %vm3082, %v2554, %v2747
    %v3129 = vsel %vm3082, %v2555, %v2749
    %v3130 = vsel %vm3082, %v2556, %v2751
    %v3131 = vsel %vm3082, %v2557, %v2753
    %v3132 = vsel %vm3082, %v2558, %v2755
    %v3133 = vsel %vm3082, %v2559, %v2757
    %v3134 = vsel %vm3082, %v2560, %v2759
    %v3135 = vsel %vm3082, %v2561, %v2761
    %v3136 = vsel %vm3082, %v2562, %v2763
    %v3137 = vsel %vm3082, %v2563, %v2765
    %v3138 = vsel %vm3082, %v2564, %v2767
    %v3139 = vsel %vm3082, %v2565, %v2769
    %v3140 = vsel %vm3082, %v2566, %v2771
    %v3141 = vsel %vm3082, %v2567, %v2773
    %v3142 = vsel %vm3082, %v2568, %v2775
    %v3143 = vsel %vm3082, %v2569, %v2777
    %v3144 = vsel %vm3082, %v2570, %v2779
    %v3145 = vsel %vm3082, %v2571, %v2781
    %v3146 = vsel %vm3082, %v2572, %v2783
    %v3147 = vsel %vm3082, %v2573, %v2785
    %v3148 = vsel %vm3082, %v2574, %v2787
    %v3149 = vsel %vm3082, %v2575, %v2789
    %v3150 = vsel %vm3082, %v2576, %v2791
    %v3151 = vsel %vm3082, %v2577, %v2793
    %v3152 = vsel %vm3082, %v2578, %v2795
    %v3153 = vsel %vm3082, %v2579, %v2797
    %v3154 = vsel %vm3082, %v2580, %v2799
    %vm3155 = vcmask 523264
    %v3156 = vsel %vm3155, %v3083, %v2873
    %v3157 = vsel %vm3155, %v3084, %v2875
    %v3158 = vsel %vm3155, %v3085, %v2877
    %v3159 = vsel %vm3155, %v3086, %v2879
    %v3160 = vsel %vm3155, %v3087, %v2881
    %v3161 = vsel %vm3155, %v3088, %v2883
    %v3162 = vsel %vm3155, %v3089, %v2885
    %v3163 = vsel %vm3155, %v3090, %v2887
    %v3164 = vsel %vm3155, %v3091, %v2889
    %v3165 = vsel %vm3155, %v3092, %v2891
    %v3166 = vsel %vm3155, %v3093, %v2893
    %v3167 = vsel %vm3155, %v3094, %v2895
    %v3168 = vsel %vm3155, %v3095, %v2897
    %v3169 = vsel %vm3155, %v3096, %v2899
    %v3170 = vsel %vm3155, %v3097, %v2901
    %v3171 = vsel %vm3155, %v3098, %v2903
    %v3172 = vsel %vm3155, %v3099, %v2905
    %v3173 = vsel %vm3155, %v3100, %v2907
    %v3174 = vsel %vm3155, %v3101, %v2909
    %v3175 = vsel %vm3155, %v3102, %v2911
    %v3176 = vsel %vm3155, %v3103, %v2913
    %v3177 = vsel %vm3155, %v3104, %v2915
    %v3178 = vsel %vm3155, %v3105, %v2917
    %v3179 = vsel %vm3155, %v3106, %v2919
    %v3180 = vsel %vm3155, %v3107, %v2921
    %v3181 = vsel %vm3155, %v3108, %v2923
    %v3182 = vsel %vm3155, %v3109, %v2925
    %v3183 = vsel %vm3155, %v3110, %v2927
    %v3184 = vsel %vm3155, %v3111, %v2929
    %v3185 = vsel %vm3155, %v3112, %v2931
    %v3186 = vsel %vm3155, %v3113, %v2933
    %v3187 = vsel %vm3155, %v3114, %v2935
    %v3188 = vsel %vm3155, %v3115, %v2937
    %v3189 = vsel %vm3155, %v3116, %v2939
    %v3190 = vsel %vm3155, %v3117, %v2941
    %v3191 = vsel %vm3155, %v3118, %v2943
    %v3192 = vsel %vm3155, %v3119, %v2945
    %v3193 = vsel %vm3155, %v3120, %v2947
    %v3194 = vsel %vm3155, %v3121, %v2949
    %v3195 = vsel %vm3155, %v3122, %v2951
    %v3196 = vsel %vm3155, %v3123, %v2953
    %v3197 = vsel %vm3155, %v3124, %v2955
    %v3198 = vsel %vm3155, %v3125, %v2957
    %v3199 = vsel %vm3155, %v3126, %v2959
    %v3200 = vsel %vm3155, %v3127, %v2961
    %v3201 = vsel %vm3155, %v3128, %v2963
    %v3202 = vsel %vm3155, %v3129, %v2965
    %v3203 = vsel %vm3155, %v3130, %v2967
    %v3204 = vsel %vm3155, %v3131, %v2969
    %v3205 = vsel %vm3155, %v3132, %v2971
    %v3206 = vsel %vm3155, %v3133, %v2973
    %v3207 = vsel %vm3155, %v3134, %v2975
    %v3208 = vsel %vm3155, %v3135, %v2977
    %v3209 = vsel %vm3155, %v3136, %v2979
    %v3210 = vsel %vm3155, %v3137, %v2981
    %v3211 = vsel %vm3155, %v3138, %v2983
    %v3212 = vsel %vm3155, %v3139, %v2985
    %v3213 = vsel %vm3155, %v3140, %v2987
    %v3214 = vsel %vm3155, %v3141, %v2989
    %v3215 = vsel %vm3155, %v3142, %v2991
    %v3216 = vsel %vm3155, %v3143, %v2993
    %v3217 = vsel %vm3155, %v3144, %v2995
    %v3218 = vsel %vm3155, %v3145, %v2997
    %v3219 = vsel %vm3155, %v3146, %v2999
    %v3220 = vsel %vm3155, %v3147, %v3001
    %v3221 = vsel %vm3155, %v3148, %v3003
    %v3222 = vsel %vm3155, %v3149, %v3005
    %v3223 = vsel %vm3155, %v3150, %v3007
    %v3224 = vsel %vm3155, %v3151, %v3009
    %v3225 = vsel %vm3155, %v3152, %v3011
    %v3226 = vsel %vm3155, %v3153, %v3011
    %v3227 = vsel %vm3155, %v3154, %v3011
    %v3228 = vld [vmem:[%s3] sm:$0xff]
    %v3229 = vld [vmem:[%s3 + $0x8] sm:$0xff]
    %v3230 = vld [vmem:[%s3 + $0x10] sm:$0xff]
    %v3231 = vld [vmem:[%s3 + $0x18] sm:$0xff]
    %v3232 = vld [vmem:[%s3 + $0x20] sm:$0xff]
    %v3233 = vld [vmem:[%s3 + $0x28] sm:$0xff]
    %v3234 = vld [vmem:[%s3 + $0x30] sm:$0xff]
    %v3235 = vld [vmem:[%s3 + $0x38] sm:$0xff]
    %v3236 = vld [vmem:[%s3 + $0x40] sm:$0xff]
    %v3237 = vld [vmem:[%s3 + $0x48] sm:$0xff]
    %v3238 = vld [vmem:[%s3 + $0x50] sm:$0xff]
    %v3239 = vld [vmem:[%s3 + $0x58] sm:$0xff]
    %v3240 = vld [vmem:[%s4] sm:$0x1]
    %v3242 = vperm.slane %v3240, 0
    %vm3244 = vcmask 785408
    %v3246 = vsel %vm3244, %v3156, 0
    %v3249 = vsel %vm3244, %v3157, 0
    %v3252 = vsel %vm3244, %v3158, 0
    %v3255 = vsel %vm3244, %v3159, 0
    %v3258 = vsel %vm3244, %v3160, 0
    %v3261 = vsel %vm3244, %v3161, 0
    %v3264 = vsel %vm3244, %v3162, 0
    %v3267 = vsel %vm3244, %v3163, 0
    %v3270 = vsel %vm3244, %v3164, 0
    %v3273 = vsel %vm3244, %v3165, 0
    %v3276 = vsel %vm3244, %v3166, 0
    %v3279 = vsel %vm3244, %v3167, 0
    %v3282 = vsel %vm3244, %v3168, 0
    %v3285 = vsel %vm3244, %v3169, 0
    %v3288 = vsel %vm3244, %v3170, 0
    %v3291 = vsel %vm3244, %v3171, 0
    %v3294 = vsel %vm3244, %v3172, 0
    %v3297 = vsel %vm3244, %v3173, 0
    %v3300 = vsel %vm3244, %v3174, 0
    %v3303 = vsel %vm3244, %v3175, 0
    %v3306 = vsel %vm3244, %v3176, 0
    %v3309 = vsel %vm3244, %v3177, 0
    %v3312 = vsel %vm3244, %v3178, 0
    %v3315 = vsel %vm3244, %v3179, 0
    %v3318 = vsel %vm3244, %v3180, 0
    %v3321 = vsel %vm3244, %v3181, 0
    %v3324 = vsel %vm3244, %v3182, 0
    %v3327 = vsel %vm3244, %v3183, 0
    %v3330 = vsel %vm3244, %v3184, 0
    %v3333 = vsel %vm3244, %v3185, 0
    %v3336 = vsel %vm3244, %v3186, 0
    %v3339 = vsel %vm3244, %v3187, 0
    %v3342 = vsel %vm3244, %v3188, 0
    %v3345 = vsel %vm3244, %v3189, 0
    %v3348 = vsel %vm3244, %v3190, 0
    %v3351 = vsel %vm3244, %v3191, 0
    %v3354 = vsel %vm3244, %v3192, 0
    %v3357 = vsel %vm3244, %v3193, 0
    %v3360 = vsel %vm3244, %v3194, 0
    %v3363 = vsel %vm3244, %v3195, 0
    %v3366 = vsel %vm3244, %v3196, 0
    %v3369 = vsel %vm3244, %v3197, 0
    %v3372 = vsel %vm3244, %v3198, 0
    %v3375 = vsel %vm3244, %v3199, 0
    %v3378 = vsel %vm3244, %v3200, 0
    %v3381 = vsel %vm3244, %v3201, 0
    %v3384 = vsel %vm3244, %v3202, 0
    %v3387 = vsel %vm3244, %v3203, 0
    %v3390 = vsel %vm3244, %v3204, 0
    %v3393 = vsel %vm3244, %v3205, 0
    %v3396 = vsel %vm3244, %v3206, 0
    %v3399 = vsel %vm3244, %v3207, 0
    %v3402 = vsel %vm3244, %v3208, 0
    %v3405 = vsel %vm3244, %v3209, 0
    %v3408 = vsel %vm3244, %v3210, 0
    %v3411 = vsel %vm3244, %v3211, 0
    %v3414 = vsel %vm3244, %v3212, 0
    %v3417 = vsel %vm3244, %v3213, 0
    %v3420 = vsel %vm3244, %v3214, 0
    %v3423 = vsel %vm3244, %v3215, 0
    %v3426 = vsel %vm3244, %v3216, 0
    %v3429 = vsel %vm3244, %v3217, 0
    %v3432 = vsel %vm3244, %v3218, 0
    %v3435 = vsel %vm3244, %v3219, 0
    %v3438 = vsel %vm3244, %v3220, 0
    %v3441 = vsel %vm3244, %v3221, 0
    %v3444 = vsel %vm3244, %v3222, 0
    %v3447 = vsel %vm3244, %v3223, 0
    %v3450 = vsel %vm3244, %v3224, 0
    %v3453 = vsel %vm3244, %v3225, 0
    %v3456 = vsel %vm3244, %v3226, 0
    %v3459 = vsel %vm3244, %v3227, 0
    %3461 = vmatpush.msra.mxu0 0.0
    %3462 = vmatpush.msra.mxu0 0.0
    %3463 = vmatpush.msra.mxu0 0.0
    %3464 = vmatpush.msra.mxu0 0.0
    %3465 = vmatpush.msra.mxu0 %v3239
    %3466 = vmatpush.msra.mxu0 %v3238
    %3467 = vmatpush.msra.mxu0 %v3237
    %3468 = vmatpush.msra.mxu0 %v3236
    %3469 = vmatpush.msra.mxu0 %v3235
    %3470 = vmatpush.msra.mxu0 %v3234
    %3471 = vmatpush.msra.mxu0 %v3233
    %3472 = vmatpush.msra.mxu0 %v3232
    %3473 = vmatpush.msra.mxu0 %v3231
    %3474 = vmatpush.msra.mxu0 %v3230
    %3475 = vmatpush.msra.mxu0 %v3229
    %3476 = vmatpush.msra.mxu0 %v3228
    %3477 = vmatmul.f32.gmra.mxu0 %v3246
    %v3478 = vpop.f32.mrf.mxu0
    %v3479 = vadd.f32 %v3242, %v3478
    %3480 = vmatmul.f32.gmra.mxu0 %v3249
    %v3481 = vpop.f32.mrf.mxu0
    %v3482 = vadd.f32 %v3242, %v3481
    %3483 = vmatmul.f32.gmra.mxu0 %v3252
    %v3484 = vpop.f32.mrf.mxu0
    %v3485 = vadd.f32 %v3242, %v3484
    %3486 = vmatmul.f32.gmra.mxu0 %v3255
    %v3487 = vpop.f32.mrf.mxu0
    %v3488 = vadd.f32 %v3242, %v3487
    %3489 = vmatmul.f32.gmra.mxu0 %v3258
    %v3490 = vpop.f32.mrf.mxu0
    %v3491 = vadd.f32 %v3242, %v3490
    %3492 = vmatmul.f32.gmra.mxu0 %v3261
    %v3493 = vpop.f32.mrf.mxu0
    %v3494 = vadd.f32 %v3242, %v3493
    %3495 = vmatmul.f32.gmra.mxu0 %v3264
    %v3496 = vpop.f32.mrf.mxu0
    %v3497 = vadd.f32 %v3242, %v3496
    %3498 = vmatmul.f32.gmra.mxu0 %v3267
    %v3499 = vpop.f32.mrf.mxu0
    %v3500 = vadd.f32 %v3242, %v3499
    %3501 = vmatmul.f32.gmra.mxu0 %v3270
    %v3502 = vpop.f32.mrf.mxu0
    %v3503 = vadd.f32 %v3242, %v3502
    %3504 = vmatmul.f32.gmra.mxu0 %v3273
    %v3505 = vpop.f32.mrf.mxu0
    %v3506 = vadd.f32 %v3242, %v3505
    %3507 = vmatmul.f32.gmra.mxu0 %v3276
    %v3508 = vpop.f32.mrf.mxu0
    %v3509 = vadd.f32 %v3242, %v3508
    %3510 = vmatmul.f32.gmra.mxu0 %v3279
    %v3511 = vpop.f32.mrf.mxu0
    %v3512 = vadd.f32 %v3242, %v3511
    %3513 = vmatmul.f32.gmra.mxu0 %v3282
    %v3514 = vpop.f32.mrf.mxu0
    %v3515 = vadd.f32 %v3242, %v3514
    %3516 = vmatmul.f32.gmra.mxu0 %v3285
    %v3517 = vpop.f32.mrf.mxu0
    %v3518 = vadd.f32 %v3242, %v3517
    %3519 = vmatmul.f32.gmra.mxu0 %v3288
    %v3520 = vpop.f32.mrf.mxu0
    %v3521 = vadd.f32 %v3242, %v3520
    %3522 = vmatmul.f32.gmra.mxu0 %v3291
    %v3523 = vpop.f32.mrf.mxu0
    %v3524 = vadd.f32 %v3242, %v3523
    %3525 = vmatmul.f32.gmra.mxu0 %v3294
    %v3526 = vpop.f32.mrf.mxu0
    %v3527 = vadd.f32 %v3242, %v3526
    %3528 = vmatmul.f32.gmra.mxu0 %v3297
    %v3529 = vpop.f32.mrf.mxu0
    %v3530 = vadd.f32 %v3242, %v3529
    %3531 = vmatmul.f32.gmra.mxu0 %v3300
    %v3532 = vpop.f32.mrf.mxu0
    %v3533 = vadd.f32 %v3242, %v3532
    %3534 = vmatmul.f32.gmra.mxu0 %v3303
    %v3535 = vpop.f32.mrf.mxu0
    %v3536 = vadd.f32 %v3242, %v3535
    %3537 = vmatmul.f32.gmra.mxu0 %v3306
    %v3538 = vpop.f32.mrf.mxu0
    %v3539 = vadd.f32 %v3242, %v3538
    %3540 = vmatmul.f32.gmra.mxu0 %v3309
    %v3541 = vpop.f32.mrf.mxu0
    %v3542 = vadd.f32 %v3242, %v3541
    %3543 = vmatmul.f32.gmra.mxu0 %v3312
    %v3544 = vpop.f32.mrf.mxu0
    %v3545 = vadd.f32 %v3242, %v3544
    %3546 = vmatmul.f32.gmra.mxu0 %v3315
    %v3547 = vpop.f32.mrf.mxu0
    %v3548 = vadd.f32 %v3242, %v3547
    %3549 = vmatmul.f32.gmra.mxu0 %v3318
    %v3550 = vpop.f32.mrf.mxu0
    %v3551 = vadd.f32 %v3242, %v3550
    %3552 = vmatmul.f32.gmra.mxu0 %v3321
    %v3553 = vpop.f32.mrf.mxu0
    %v3554 = vadd.f32 %v3242, %v3553
    %3555 = vmatmul.f32.gmra.mxu0 %v3324
    %v3556 = vpop.f32.mrf.mxu0
    %v3557 = vadd.f32 %v3242, %v3556
    %3558 = vmatmul.f32.gmra.mxu0 %v3327
    %v3559 = vpop.f32.mrf.mxu0
    %v3560 = vadd.f32 %v3242, %v3559
    %3561 = vmatmul.f32.gmra.mxu0 %v3330
    %v3562 = vpop.f32.mrf.mxu0
    %v3563 = vadd.f32 %v3242, %v3562
    %3564 = vmatmul.f32.gmra.mxu0 %v3333
    %v3565 = vpop.f32.mrf.mxu0
    %v3566 = vadd.f32 %v3242, %v3565
    %3567 = vmatmul.f32.gmra.mxu0 %v3336
    %v3568 = vpop.f32.mrf.mxu0
    %v3569 = vadd.f32 %v3242, %v3568
    %3570 = vmatmul.f32.gmra.mxu0 %v3339
    %v3571 = vpop.f32.mrf.mxu0
    %v3572 = vadd.f32 %v3242, %v3571
    %3573 = vmatmul.f32.gmra.mxu0 %v3342
    %v3574 = vpop.f32.mrf.mxu0
    %v3575 = vadd.f32 %v3242, %v3574
    %3576 = vmatmul.f32.gmra.mxu0 %v3345
    %v3577 = vpop.f32.mrf.mxu0
    %v3578 = vadd.f32 %v3242, %v3577
    %3579 = vmatmul.f32.gmra.mxu0 %v3348
    %v3580 = vpop.f32.mrf.mxu0
    %v3581 = vadd.f32 %v3242, %v3580
    %3582 = vmatmul.f32.gmra.mxu0 %v3351
    %v3583 = vpop.f32.mrf.mxu0
    %v3584 = vadd.f32 %v3242, %v3583
    %3585 = vmatmul.f32.gmra.mxu0 %v3354
    %v3586 = vpop.f32.mrf.mxu0
    %v3587 = vadd.f32 %v3242, %v3586
    %3588 = vmatmul.f32.gmra.mxu0 %v3357
    %v3589 = vpop.f32.mrf.mxu0
    %v3590 = vadd.f32 %v3242, %v3589
    %3591 = vmatmul.f32.gmra.mxu0 %v3360
    %v3592 = vpop.f32.mrf.mxu0
    %v3593 = vadd.f32 %v3242, %v3592
    %3594 = vmatmul.f32.gmra.mxu0 %v3363
    %v3595 = vpop.f32.mrf.mxu0
    %v3596 = vadd.f32 %v3242, %v3595
    %3597 = vmatmul.f32.gmra.mxu0 %v3366
    %v3598 = vpop.f32.mrf.mxu0
    %v3599 = vadd.f32 %v3242, %v3598
    %3600 = vmatmul.f32.gmra.mxu0 %v3369
    %v3601 = vpop.f32.mrf.mxu0
    %v3602 = vadd.f32 %v3242, %v3601
    %3603 = vmatmul.f32.gmra.mxu0 %v3372
    %v3604 = vpop.f32.mrf.mxu0
    %v3605 = vadd.f32 %v3242, %v3604
    %3606 = vmatmul.f32.gmra.mxu0 %v3375
    %v3607 = vpop.f32.mrf.mxu0
    %v3608 = vadd.f32 %v3242, %v3607
    %3609 = vmatmul.f32.gmra.mxu0 %v3378
    %v3610 = vpop.f32.mrf.mxu0
    %v3611 = vadd.f32 %v3242, %v3610
    %3612 = vmatmul.f32.gmra.mxu0 %v3381
    %v3613 = vpop.f32.mrf.mxu0
    %v3614 = vadd.f32 %v3242, %v3613
    %3615 = vmatmul.f32.gmra.mxu0 %v3384
    %v3616 = vpop.f32.mrf.mxu0
    %v3617 = vadd.f32 %v3242, %v3616
    %3618 = vmatmul.f32.gmra.mxu0 %v3387
    %v3619 = vpop.f32.mrf.mxu0
    %v3620 = vadd.f32 %v3242, %v3619
    %3621 = vmatmul.f32.gmra.mxu0 %v3390
    %v3622 = vpop.f32.mrf.mxu0
    %v3623 = vadd.f32 %v3242, %v3622
    %3624 = vmatmul.f32.gmra.mxu0 %v3393
    %v3625 = vpop.f32.mrf.mxu0
    %v3626 = vadd.f32 %v3242, %v3625
    %3627 = vmatmul.f32.gmra.mxu0 %v3396
    %v3628 = vpop.f32.mrf.mxu0
    %v3629 = vadd.f32 %v3242, %v3628
    %3630 = vmatmul.f32.gmra.mxu0 %v3399
    %v3631 = vpop.f32.mrf.mxu0
    %v3632 = vadd.f32 %v3242, %v3631
    %3633 = vmatmul.f32.gmra.mxu0 %v3402
    %v3634 = vpop.f32.mrf.mxu0
    %v3635 = vadd.f32 %v3242, %v3634
    %3636 = vmatmul.f32.gmra.mxu0 %v3405
    %v3637 = vpop.f32.mrf.mxu0
    %v3638 = vadd.f32 %v3242, %v3637
    %3639 = vmatmul.f32.gmra.mxu0 %v3408
    %v3640 = vpop.f32.mrf.mxu0
    %v3641 = vadd.f32 %v3242, %v3640
    %3642 = vmatmul.f32.gmra.mxu0 %v3411
    %v3643 = vpop.f32.mrf.mxu0
    %v3644 = vadd.f32 %v3242, %v3643
    %3645 = vmatmul.f32.gmra.mxu0 %v3414
    %v3646 = vpop.f32.mrf.mxu0
    %v3647 = vadd.f32 %v3242, %v3646
    %3648 = vmatmul.f32.gmra.mxu0 %v3417
    %v3649 = vpop.f32.mrf.mxu0
    %v3650 = vadd.f32 %v3242, %v3649
    %3651 = vmatmul.f32.gmra.mxu0 %v3420
    %v3652 = vpop.f32.mrf.mxu0
    %v3653 = vadd.f32 %v3242, %v3652
    %3654 = vmatmul.f32.gmra.mxu0 %v3423
    %v3655 = vpop.f32.mrf.mxu0
    %v3656 = vadd.f32 %v3242, %v3655
    %3657 = vmatmul.f32.gmra.mxu0 %v3426
    %v3658 = vpop.f32.mrf.mxu0
    %v3659 = vadd.f32 %v3242, %v3658
    %3660 = vmatmul.f32.gmra.mxu0 %v3429
    %v3661 = vpop.f32.mrf.mxu0
    %v3662 = vadd.f32 %v3242, %v3661
    %3663 = vmatmul.f32.gmra.mxu0 %v3432
    %v3664 = vpop.f32.mrf.mxu0
    %v3665 = vadd.f32 %v3242, %v3664
    %3666 = vmatmul.f32.gmra.mxu0 %v3435
    %v3667 = vpop.f32.mrf.mxu0
    %v3668 = vadd.f32 %v3242, %v3667
    %3669 = vmatmul.f32.gmra.mxu0 %v3438
    %v3670 = vpop.f32.mrf.mxu0
    %v3671 = vadd.f32 %v3242, %v3670
    %3672 = vmatmul.f32.gmra.mxu0 %v3441
    %v3673 = vpop.f32.mrf.mxu0
    %v3674 = vadd.f32 %v3242, %v3673
    %3675 = vmatmul.f32.gmra.mxu0 %v3444
    %v3676 = vpop.f32.mrf.mxu0
    %v3677 = vadd.f32 %v3242, %v3676
    %3678 = vmatmul.f32.gmra.mxu0 %v3447
    %v3679 = vpop.f32.mrf.mxu0
    %v3680 = vadd.f32 %v3242, %v3679
    %3681 = vmatmul.f32.gmra.mxu0 %v3450
    %v3682 = vpop.f32.mrf.mxu0
    %v3683 = vadd.f32 %v3242, %v3682
    %3684 = vmatmul.f32.gmra.mxu0 %v3453
    %v3685 = vpop.f32.mrf.mxu0
    %v3686 = vadd.f32 %v3242, %v3685
    %3687 = vmatmul.f32.gmra.mxu0 %v3456
    %v3688 = vpop.f32.mrf.mxu0
    %v3689 = vadd.f32 %v3242, %v3688
    %3690 = vmatmul.f32.gmra.mxu0 %v3459
    %v3691 = vpop.f32.mrf.mxu0
    %v3692 = vadd.f32 %v3242, %v3691
    %3693 = vdwg.mxu0
    %v3694 = vmax.f32 %v3479, 0.0
    %v3695 = vmax.f32 %v3482, 0.0
    %v3696 = vmax.f32 %v3485, 0.0
    %v3697 = vmax.f32 %v3488, 0.0
    %v3698 = vmax.f32 %v3491, 0.0
    %v3699 = vmax.f32 %v3494, 0.0
    %v3700 = vmax.f32 %v3497, 0.0
    %v3701 = vmax.f32 %v3500, 0.0
    %v3702 = vmax.f32 %v3503, 0.0
    %v3703 = vmax.f32 %v3506, 0.0
    %v3704 = vmax.f32 %v3509, 0.0
    %v3705 = vmax.f32 %v3512, 0.0
    %v3706 = vmax.f32 %v3515, 0.0
    %v3707 = vmax.f32 %v3518, 0.0
    %v3708 = vmax.f32 %v3521, 0.0
    %v3709 = vmax.f32 %v3524, 0.0
    %v3710 = vmax.f32 %v3527, 0.0
    %v3711 = vmax.f32 %v3530, 0.0
    %v3712 = vmax.f32 %v3533, 0.0
    %v3713 = vmax.f32 %v3536, 0.0
    %v3714 = vmax.f32 %v3539, 0.0
    %v3715 = vmax.f32 %v3542, 0.0
    %v3716 = vmax.f32 %v3545, 0.0
    %v3717 = vmax.f32 %v3548, 0.0
    %v3718 = vmax.f32 %v3551, 0.0
    %v3719 = vmax.f32 %v3554, 0.0
    %v3720 = vmax.f32 %v3557, 0.0
    %v3721 = vmax.f32 %v3560, 0.0
    %v3722 = vmax.f32 %v3563, 0.0
    %v3723 = vmax.f32 %v3566, 0.0
    %v3724 = vmax.f32 %v3569, 0.0
    %v3725 = vmax.f32 %v3572, 0.0
    %v3726 = vmax.f32 %v3575, 0.0
    %v3727 = vmax.f32 %v3578, 0.0
    %v3728 = vmax.f32 %v3581, 0.0
    %v3729 = vmax.f32 %v3584, 0.0
    %v3730 = vmax.f32 %v3587, 0.0
    %v3731 = vmax.f32 %v3590, 0.0
    %v3732 = vmax.f32 %v3593, 0.0
    %v3733 = vmax.f32 %v3596, 0.0
    %v3734 = vmax.f32 %v3599, 0.0
    %v3735 = vmax.f32 %v3602, 0.0
    %v3736 = vmax.f32 %v3605, 0.0
    %v3737 = vmax.f32 %v3608, 0.0
    %v3738 = vmax.f32 %v3611, 0.0
    %v3739 = vmax.f32 %v3614, 0.0
    %v3740 = vmax.f32 %v3617, 0.0
    %v3741 = vmax.f32 %v3620, 0.0
    %v3742 = vmax.f32 %v3623, 0.0
    %v3743 = vmax.f32 %v3626, 0.0
    %v3744 = vmax.f32 %v3629, 0.0
    %v3745 = vmax.f32 %v3632, 0.0
    %v3746 = vmax.f32 %v3635, 0.0
    %v3747 = vmax.f32 %v3638, 0.0
    %v3748 = vmax.f32 %v3641, 0.0
    %v3749 = vmax.f32 %v3644, 0.0
    %v3750 = vmax.f32 %v3647, 0.0
    %v3751 = vmax.f32 %v3650, 0.0
    %v3752 = vmax.f32 %v3653, 0.0
    %v3753 = vmax.f32 %v3656, 0.0
    %v3754 = vmax.f32 %v3659, 0.0
    %v3755 = vmax.f32 %v3662, 0.0
    %v3756 = vmax.f32 %v3665, 0.0
    %v3757 = vmax.f32 %v3668, 0.0
    %v3758 = vmax.f32 %v3671, 0.0
    %v3759 = vmax.f32 %v3674, 0.0
    %v3760 = vmax.f32 %v3677, 0.0
    %v3761 = vmax.f32 %v3680, 0.0
    %v3762 = vmax.f32 %v3683, 0.0
    %v3763 = vmax.f32 %v3686, 0.0
    %v3764 = vmax.f32 %v3689, 0.0
    %v3765 = vmax.f32 %v3692, 0.0
    %v3766 = vmax.f32 %v3694, %v3697
    %v3767 = vmax.f32 %v3695, %v3698
    %v3768 = vmax.f32 %v3696, %v3699
    %v3769 = vmax.f32 %v3700, %v3703
    %v3770 = vmax.f32 %v3701, %v3704
    %v3771 = vmax.f32 %v3702, %v3705
    %v3772 = vmax.f32 %v3706, %v3709
    %v3773 = vmax.f32 %v3707, %v3710
    %v3774 = vmax.f32 %v3708, %v3711
    %v3775 = vmax.f32 %v3712, %v3715
    %v3776 = vmax.f32 %v3713, %v3716
    %v3777 = vmax.f32 %v3714, %v3717
    %v3778 = vmax.f32 %v3718, %v3721
    %v3779 = vmax.f32 %v3719, %v3722
    %v3780 = vmax.f32 %v3720, %v3723
    %v3781 = vmax.f32 %v3724, %v3727
    %v3782 = vmax.f32 %v3725, %v3728
    %v3783 = vmax.f32 %v3726, %v3729
    %v3784 = vmax.f32 %v3730, %v3733
    %v3785 = vmax.f32 %v3731, %v3734
    %v3786 = vmax.f32 %v3732, %v3735
    %v3787 = vmax.f32 %v3736, %v3739
    %v3788 = vmax.f32 %v3737, %v3740
    %v3789 = vmax.f32 %v3738, %v3741
    %v3790 = vmax.f32 %v3742, %v3745
    %v3791 = vmax.f32 %v3743, %v3746
    %v3792 = vmax.f32 %v3744, %v3747
    %v3793 = vmax.f32 %v3748, %v3751
    %v3794 = vmax.f32 %v3749, %v3752
    %v3795 = vmax.f32 %v3750, %v3753
    %v3796 = vmax.f32 %v3754, %v3757
    %v3797 = vmax.f32 %v3755, %v3758
    %v3798 = vmax.f32 %v3756, %v3759
    %v3799 = vmax.f32 %v3760, %v3763
    %v3800 = vmax.f32 %v3761, %v3764
    %v3801 = vmax.f32 %v3762, %v3765
    %3838 = vrot.lane.b32.xlu0 %v3766, 64
    %v3839 = vpop.permute.xlu0 %3838
    %3840 = vrot.lane.b32.xlu0 %v3767, 64
    %v3841 = vpop.permute.xlu0 %3840
    %3842 = vrot.lane.b32.xlu0 %v3768, 64
    %v3843 = vpop.permute.xlu0 %3842
    %3844 = vrot.lane.b32.xlu0 %v3769, 64
    %v3845 = vpop.permute.xlu0 %3844
    %3846 = vrot.lane.b32.xlu0 %v3770, 64
    %v3847 = vpop.permute.xlu0 %3846
    %3848 = vrot.lane.b32.xlu0 %v3771, 64
    %v3849 = vpop.permute.xlu0 %3848
    %3850 = vrot.lane.b32.xlu0 %v3772, 64
    %v3851 = vpop.permute.xlu0 %3850
    %3852 = vrot.lane.b32.xlu0 %v3773, 64
    %v3853 = vpop.permute.xlu0 %3852
    %3854 = vrot.lane.b32.xlu0 %v3774, 64
    %v3855 = vpop.permute.xlu0 %3854
    %3856 = vrot.lane.b32.xlu0 %v3775, 64
    %v3857 = vpop.permute.xlu0 %3856
    %3858 = vrot.lane.b32.xlu0 %v3776, 64
    %v3859 = vpop.permute.xlu0 %3858
    %3860 = vrot.lane.b32.xlu0 %v3777, 64
    %v3861 = vpop.permute.xlu0 %3860
    %3862 = vrot.lane.b32.xlu0 %v3778, 64
    %v3863 = vpop.permute.xlu0 %3862
    %3864 = vrot.lane.b32.xlu0 %v3779, 64
    %v3865 = vpop.permute.xlu0 %3864
    %3866 = vrot.lane.b32.xlu0 %v3780, 64
    %v3867 = vpop.permute.xlu0 %3866
    %3868 = vrot.lane.b32.xlu0 %v3781, 64
    %v3869 = vpop.permute.xlu0 %3868
    %3870 = vrot.lane.b32.xlu0 %v3782, 64
    %v3871 = vpop.permute.xlu0 %3870
    %3872 = vrot.lane.b32.xlu0 %v3783, 64
    %v3873 = vpop.permute.xlu0 %3872
    %3874 = vrot.lane.b32.xlu0 %v3784, 64
    %v3875 = vpop.permute.xlu0 %3874
    %3876 = vrot.lane.b32.xlu0 %v3785, 64
    %v3877 = vpop.permute.xlu0 %3876
    %3878 = vrot.lane.b32.xlu0 %v3786, 64
    %v3879 = vpop.permute.xlu0 %3878
    %3880 = vrot.lane.b32.xlu0 %v3787, 64
    %v3881 = vpop.permute.xlu0 %3880
    %3882 = vrot.lane.b32.xlu0 %v3788, 64
    %v3883 = vpop.permute.xlu0 %3882
    %3884 = vrot.lane.b32.xlu0 %v3789, 64
    %v3885 = vpop.permute.xlu0 %3884
    %3886 = vrot.lane.b32.xlu0 %v3790, 64
    %v3887 = vpop.permute.xlu0 %3886
    %3888 = vrot.lane.b32.xlu0 %v3791, 64
    %v3889 = vpop.permute.xlu0 %3888
    %3890 = vrot.lane.b32.xlu0 %v3792, 64
    %v3891 = vpop.permute.xlu0 %3890
    %3892 = vrot.lane.b32.xlu0 %v3793, 64
    %v3893 = vpop.permute.xlu0 %3892
    %3894 = vrot.lane.b32.xlu0 %v3794, 64
    %v3895 = vpop.permute.xlu0 %3894
    %3896 = vrot.lane.b32.xlu0 %v3795, 64
    %v3897 = vpop.permute.xlu0 %3896
    %3898 = vrot.lane.b32.xlu0 %v3796, 64
    %v3899 = vpop.permute.xlu0 %3898
    %3900 = vrot.lane.b32.xlu0 %v3797, 64
    %v3901 = vpop.permute.xlu0 %3900
    %3902 = vrot.lane.b32.xlu0 %v3798, 64
    %v3903 = vpop.permute.xlu0 %3902
    %3904 = vrot.lane.b32.xlu0 %v3799, 64
    %v3905 = vpop.permute.xlu0 %3904
    %3906 = vrot.lane.b32.xlu0 %v3800, 64
    %v3907 = vpop.permute.xlu0 %3906
    %3908 = vrot.lane.b32.xlu0 %v3801, 64
    %v3909 = vpop.permute.xlu0 %3908
    %v3946 = vsel %vm3155, 0.0, %v3839
    %v3947 = vsel %vm3155, 0.0, %v3841
    %v3948 = vsel %vm3155, 0.0, %v3843
    %v3949 = vsel %vm3155, %v3766, %v3845
    %v3950 = vsel %vm3155, %v3767, %v3847
    %v3951 = vsel %vm3155, %v3768, %v3849
    %v3952 = vsel %vm3155, %v3769, %v3851
    %v3953 = vsel %vm3155, %v3770, %v3853
    %v3954 = vsel %vm3155, %v3771, %v3855
    %v3955 = vsel %vm3155, %v3772, %v3857
    %v3956 = vsel %vm3155, %v3773, %v3859
    %v3957 = vsel %vm3155, %v3774, %v3861
    %v3958 = vsel %vm3155, %v3775, %v3863
    %v3959 = vsel %vm3155, %v3776, %v3865
    %v3960 = vsel %vm3155, %v3777, %v3867
    %v3961 = vsel %vm3155, %v3778, %v3869
    %v3962 = vsel %vm3155, %v3779, %v3871
    %v3963 = vsel %vm3155, %v3780, %v3873
    %v3964 = vsel %vm3155, %v3781, %v3875
    %v3965 = vsel %vm3155, %v3782, %v3877
    %v3966 = vsel %vm3155, %v3783, %v3879
    %v3967 = vsel %vm3155, %v3784, %v3881
    %v3968 = vsel %vm3155, %v3785, %v3883
    %v3969 = vsel %vm3155, %v3786, %v3885
    %v3970 = vsel %vm3155, %v3787, %v3887
    %v3971 = vsel %vm3155, %v3788, %v3889
    %v3972 = vsel %vm3155, %v3789, %v3891
    %v3973 = vsel %vm3155, %v3790, %v3893
    %v3974 = vsel %vm3155, %v3791, %v3895
    %v3975 = vsel %vm3155, %v3792, %v3897
    %v3976 = vsel %vm3155, %v3793, %v3899
    %v3977 = vsel %vm3155, %v3794, %v3901
    %v3978 = vsel %vm3155, %v3795, %v3903
    %v3979 = vsel %vm3155, %v3796, %v3905
    %v3980 = vsel %vm3155, %v3797, %v3907
    %v3981 = vsel %vm3155, %v3798, %v3909
    %v3982 = vld [vmem:[%s5] sm:$0xff]
    %v3983 = vld [vmem:[%s5 + $0x8] sm:$0xff]
    %v3984 = vld [vmem:[%s5 + $0x10] sm:$0xff]
    %v3985 = vld [vmem:[%s5 + $0x18] sm:$0xff]
    %v3986 = vld [vmem:[%s5 + $0x20] sm:$0xff]
    %v3987 = vld [vmem:[%s5 + $0x28] sm:$0xff]
    %v3988 = vld [vmem:[%s5 + $0x30] sm:$0xff]
    %v3989 = vld [vmem:[%s5 + $0x38] sm:$0xff]
    %v3990 = vld [vmem:[%s5 + $0x40] sm:$0xff]
    %v3991 = vld [vmem:[%s5 + $0x48] sm:$0xff]
    %v3992 = vld [vmem:[%s5 + $0x50] sm:$0xff]
    %v3993 = vld [vmem:[%s5 + $0x58] sm:$0xff]
    %v3994 = vld [vmem:[%s5 + $0x60] sm:$0xff]
    %v3995 = vld [vmem:[%s5 + $0x68] sm:$0xff]
    %v3996 = vld [vmem:[%s5 + $0x70] sm:$0xff]
    %v3997 = vld [vmem:[%s5 + $0x78] sm:$0xff]
    %v3998 = vld [vmem:[%s5 + $0x80] sm:$0xff]
    %v3999 = vld [vmem:[%s5 + $0x88] sm:$0xff]
    %v4000 = vld [vmem:[%s5 + $0x90] sm:$0xff]
    %v4001 = vld [vmem:[%s5 + $0x98] sm:$0xff]
    %v4002 = vld [vmem:[%s5 + $0xa0] sm:$0xff]
    %v4003 = vld [vmem:[%s5 + $0xa8] sm:$0xff]
    %v4004 = vld [vmem:[%s5 + $0xb0] sm:$0xff]
    %v4005 = vld [vmem:[%s5 + $0xb8] sm:$0xff]
    %v4006 = vld [vmem:[%s6] sm:$0x1]
    %v4008 = vperm.slane %v4006, 0
    %v4010 = vsel %vm3155, %v3769, 0
    %v4012 = vsel %vm3155, %v3770, 0
    %v4014 = vsel %vm3155, %v3771, 0
    %v4016 = vsel %vm3155, %v3772, 0
    %v4018 = vsel %vm3155, %v3773, 0
    %v4020 = vsel %vm3155, %v3774, 0
    %v4022 = vsel %vm3155, %v3775, 0
    %v4024 = vsel %vm3155, %v3776, 0
    %v4026 = vsel %vm3155, %v3777, 0
    %v4028 = vsel %vm3155, %v3778, 0
    %v4030 = vsel %vm3155, %v3779, 0
    %v4032 = vsel %vm3155, %v3780, 0
    %v4034 = vsel %vm3155, %v3781, 0
    %v4036 = vsel %vm3155, %v3782, 0
    %v4038 = vsel %vm3155, %v3783, 0
    %v4040 = vsel %vm3155, %v3784, 0
    %v4042 = vsel %vm3155, %v3785, 0
    %v4044 = vsel %vm3155, %v3786, 0
    %v4046 = vsel %vm3155, %v3787, 0
    %v4048 = vsel %vm3155, %v3788, 0
    %v4050 = vsel %vm3155, %v3789, 0
    %v4052 = vsel %vm3155, %v3790, 0
    %v4054 = vsel %vm3155, %v3791, 0
    %v4056 = vsel %vm3155, %v3792, 0
    %v4058 = vsel %vm3155, %v3793, 0
    %v4060 = vsel %vm3155, %v3794, 0
    %v4062 = vsel %vm3155, %v3795, 0
    %v4064 = vsel %vm3155, %v3796, 0
    %v4066 = vsel %vm3155, %v3797, 0
    %v4068 = vsel %vm3155, %v3798, 0
    %v4070 = vsel %vm3155, %v3799, 0
    %v4072 = vsel %vm3155, %v3800, 0
    %v4074 = vsel %vm3155, %v3801, 0
    %v4076 = vsel %vm3155, 0.0, 0
    %4078 = vmatpush.msra.mxu0 %v3997
    %4079 = vmatpush.msra.mxu0 %v3996
    %4080 = vmatpush.msra.mxu0 %v3995
    %4081 = vmatpush.msra.mxu0 %v3994
    %4082 = vmatpush.msra.mxu0 %v3993
    %4083 = vmatpush.msra.mxu0 %v3992
    %4084 = vmatpush.msra.mxu0 %v3991
    %4085 = vmatpush.msra.mxu0 %v3990
    %4086 = vmatpush.msra.mxu0 %v3989
    %4087 = vmatpush.msra.mxu0 %v3988
    %4088 = vmatpush.msra.mxu0 %v3987
    %4089 = vmatpush.msra.mxu0 %v3986
    %4090 = vmatpush.msra.mxu0 %v3985
    %4091 = vmatpush.msra.mxu0 %v3984
    %4092 = vmatpush.msra.mxu0 %v3983
    %4093 = vmatpush.msra.mxu0 %v3982
    %4094 = vmatmul.f32.gmra.mxu0 %v3946
    %v4095 = vpop.f32.mrf.mxu0
    %v4096 = vadd.f32 %v4008, %v4095
    %4097 = vmatmul.f32.gmra.mxu0 %v3947
    %v4098 = vpop.f32.mrf.mxu0
    %v4099 = vadd.f32 %v4008, %v4098
    %4100 = vmatmul.f32.gmra.mxu0 %v3948
    %v4101 = vpop.f32.mrf.mxu0
    %v4102 = vadd.f32 %v4008, %v4101
    %4103 = vmatmul.f32.gmra.mxu0 %v3949
    %v4104 = vpop.f32.mrf.mxu0
    %v4105 = vadd.f32 %v4008, %v4104
    %4106 = vmatmul.f32.gmra.mxu0 %v3950
    %v4107 = vpop.f32.mrf.mxu0
    %v4108 = vadd.f32 %v4008, %v4107
    %4109 = vmatmul.f32.gmra.mxu0 %v3951
    %v4110 = vpop.f32.mrf.mxu0
    %v4111 = vadd.f32 %v4008, %v4110
    %4112 = vmatmul.f32.gmra.mxu0 %v3952
    %v4113 = vpop.f32.mrf.mxu0
    %v4114 = vadd.f32 %v4008, %v4113
    %4115 = vmatmul.f32.gmra.mxu0 %v3953
    %v4116 = vpop.f32.mrf.mxu0
    %v4117 = vadd.f32 %v4008, %v4116
    %4118 = vmatmul.f32.gmra.mxu0 %v3954
    %v4119 = vpop.f32.mrf.mxu0
    %v4120 = vadd.f32 %v4008, %v4119
    %4121 = vmatmul.f32.gmra.mxu0 %v3955
    %v4122 = vpop.f32.mrf.mxu0
    %v4123 = vadd.f32 %v4008, %v4122
    %4124 = vmatmul.f32.gmra.mxu0 %v3956
    %v4125 = vpop.f32.mrf.mxu0
    %v4126 = vadd.f32 %v4008, %v4125
    %4127 = vmatmul.f32.gmra.mxu0 %v3957
    %v4128 = vpop.f32.mrf.mxu0
    %v4129 = vadd.f32 %v4008, %v4128
    %4130 = vmatmul.f32.gmra.mxu0 %v3958
    %v4131 = vpop.f32.mrf.mxu0
    %v4132 = vadd.f32 %v4008, %v4131
    %4133 = vmatmul.f32.gmra.mxu0 %v3959
    %v4134 = vpop.f32.mrf.mxu0
    %v4135 = vadd.f32 %v4008, %v4134
    %4136 = vmatmul.f32.gmra.mxu0 %v3960
    %v4137 = vpop.f32.mrf.mxu0
    %v4138 = vadd.f32 %v4008, %v4137
    %4139 = vmatmul.f32.gmra.mxu0 %v3961
    %v4140 = vpop.f32.mrf.mxu0
    %v4141 = vadd.f32 %v4008, %v4140
    %4142 = vmatmul.f32.gmra.mxu0 %v3962
    %v4143 = vpop.f32.mrf.mxu0
    %v4144 = vadd.f32 %v4008, %v4143
    %4145 = vmatmul.f32.gmra.mxu0 %v3963
    %v4146 = vpop.f32.mrf.mxu0
    %v4147 = vadd.f32 %v4008, %v4146
    %4148 = vmatmul.f32.gmra.mxu0 %v3964
    %v4149 = vpop.f32.mrf.mxu0
    %v4150 = vadd.f32 %v4008, %v4149
    %4151 = vmatmul.f32.gmra.mxu0 %v3965
    %v4152 = vpop.f32.mrf.mxu0
    %v4153 = vadd.f32 %v4008, %v4152
    %4154 = vmatmul.f32.gmra.mxu0 %v3966
    %v4155 = vpop.f32.mrf.mxu0
    %v4156 = vadd.f32 %v4008, %v4155
    %4157 = vmatmul.f32.gmra.mxu0 %v3967
    %v4158 = vpop.f32.mrf.mxu0
    %v4159 = vadd.f32 %v4008, %v4158
    %4160 = vmatmul.f32.gmra.mxu0 %v3968
    %v4161 = vpop.f32.mrf.mxu0
    %v4162 = vadd.f32 %v4008, %v4161
    %4163 = vmatmul.f32.gmra.mxu0 %v3969
    %v4164 = vpop.f32.mrf.mxu0
    %v4165 = vadd.f32 %v4008, %v4164
    %4166 = vmatmul.f32.gmra.mxu0 %v3970
    %v4167 = vpop.f32.mrf.mxu0
    %v4168 = vadd.f32 %v4008, %v4167
    %4169 = vmatmul.f32.gmra.mxu0 %v3971
    %v4170 = vpop.f32.mrf.mxu0
    %v4171 = vadd.f32 %v4008, %v4170
    %4172 = vmatmul.f32.gmra.mxu0 %v3972
    %v4173 = vpop.f32.mrf.mxu0
    %v4174 = vadd.f32 %v4008, %v4173
    %4175 = vmatmul.f32.gmra.mxu0 %v3973
    %v4176 = vpop.f32.mrf.mxu0
    %v4177 = vadd.f32 %v4008, %v4176
    %4178 = vmatmul.f32.gmra.mxu0 %v3974
    %v4179 = vpop.f32.mrf.mxu0
    %v4180 = vadd.f32 %v4008, %v4179
    %4181 = vmatmul.f32.gmra.mxu0 %v3975
    %v4182 = vpop.f32.mrf.mxu0
    %v4183 = vadd.f32 %v4008, %v4182
    %4184 = vmatmul.f32.gmra.mxu0 %v3976
    %v4185 = vpop.f32.mrf.mxu0
    %v4186 = vadd.f32 %v4008, %v4185
    %4187 = vmatmul.f32.gmra.mxu0 %v3977
    %v4188 = vpop.f32.mrf.mxu0
    %v4189 = vadd.f32 %v4008, %v4188
    %4190 = vmatmul.f32.gmra.mxu0 %v3978
    %v4191 = vpop.f32.mrf.mxu0
    %v4192 = vadd.f32 %v4008, %v4191
    %4193 = vmatmul.f32.gmra.mxu0 %v3979
    %v4194 = vpop.f32.mrf.mxu0
    %v4195 = vadd.f32 %v4008, %v4194
    %4196 = vmatmul.f32.gmra.mxu0 %v3980
    %v4197 = vpop.f32.mrf.mxu0
    %v4198 = vadd.f32 %v4008, %v4197
    %4199 = vmatmul.f32.gmra.mxu0 %v3981
    %v4200 = vpop.f32.mrf.mxu0
    %v4201 = vadd.f32 %v4008, %v4200
    %4202 = vdwg.mxu0
    %4203 = vmatpush.msra.mxu0 0.0
    %4204 = vmatpush.msra.mxu0 0.0
    %4205 = vmatpush.msra.mxu0 0.0
    %4206 = vmatpush.msra.mxu0 0.0
    %4207 = vmatpush.msra.mxu0 0.0
    %4208 = vmatpush.msra.mxu0 0.0
    %4209 = vmatpush.msra.mxu0 0.0
    %4210 = vmatpush.msra.mxu0 0.0
    %4211 = vmatpush.msra.mxu0 %v4005
    %4212 = vmatpush.msra.mxu0 %v4004
    %4213 = vmatpush.msra.mxu0 %v4003
    %4214 = vmatpush.msra.mxu0 %v4002
    %4215 = vmatpush.msra.mxu0 %v4001
    %4216 = vmatpush.msra.mxu0 %v4000
    %4217 = vmatpush.msra.mxu0 %v3999
    %4218 = vmatpush.msra.mxu0 %v3998
    %4219 = vmatmul.f32.gmra.mxu0 %v4010
    %v4220 = vpop.f32.mrf.mxu0
    %v4221 = vadd.f32 %v4096, %v4220
    %4222 = vmatmul.f32.gmra.mxu0 %v4012
    %v4223 = vpop.f32.mrf.mxu0
    %v4224 = vadd.f32 %v4099, %v4223
    %4225 = vmatmul.f32.gmra.mxu0 %v4014
    %v4226 = vpop.f32.mrf.mxu0
    %v4227 = vadd.f32 %v4102, %v4226
    %4228 = vmatmul.f32.gmra.mxu0 %v4016
    %v4229 = vpop.f32.mrf.mxu0
    %v4230 = vadd.f32 %v4105, %v4229
    %4231 = vmatmul.f32.gmra.mxu0 %v4018
    %v4232 = vpop.f32.mrf.mxu0
    %v4233 = vadd.f32 %v4108, %v4232
    %4234 = vmatmul.f32.gmra.mxu0 %v4020
    %v4235 = vpop.f32.mrf.mxu0
    %v4236 = vadd.f32 %v4111, %v4235
    %4237 = vmatmul.f32.gmra.mxu0 %v4022
    %v4238 = vpop.f32.mrf.mxu0
    %v4239 = vadd.f32 %v4114, %v4238
    %4240 = vmatmul.f32.gmra.mxu0 %v4024
    %v4241 = vpop.f32.mrf.mxu0
    %v4242 = vadd.f32 %v4117, %v4241
    %4243 = vmatmul.f32.gmra.mxu0 %v4026
    %v4244 = vpop.f32.mrf.mxu0
    %v4245 = vadd.f32 %v4120, %v4244
    %4246 = vmatmul.f32.gmra.mxu0 %v4028
    %v4247 = vpop.f32.mrf.mxu0
    %v4248 = vadd.f32 %v4123, %v4247
    %4249 = vmatmul.f32.gmra.mxu0 %v4030
    %v4250 = vpop.f32.mrf.mxu0
    %v4251 = vadd.f32 %v4126, %v4250
    %4252 = vmatmul.f32.gmra.mxu0 %v4032
    %v4253 = vpop.f32.mrf.mxu0
    %v4254 = vadd.f32 %v4129, %v4253
    %4255 = vmatmul.f32.gmra.mxu0 %v4034
    %v4256 = vpop.f32.mrf.mxu0
    %v4257 = vadd.f32 %v4132, %v4256
    %4258 = vmatmul.f32.gmra.mxu0 %v4036
    %v4259 = vpop.f32.mrf.mxu0
    %v4260 = vadd.f32 %v4135, %v4259
    %4261 = vmatmul.f32.gmra.mxu0 %v4038
    %v4262 = vpop.f32.mrf.mxu0
    %v4263 = vadd.f32 %v4138, %v4262
    %4264 = vmatmul.f32.gmra.mxu0 %v4040
    %v4265 = vpop.f32.mrf.mxu0
    %v4266 = vadd.f32 %v4141, %v4265
    %4267 = vmatmul.f32.gmra.mxu0 %v4042
    %v4268 = vpop.f32.mrf.mxu0
    %v4269 = vadd.f32 %v4144, %v4268
    %4270 = vmatmul.f32.gmra.mxu0 %v4044
    %v4271 = vpop.f32.mrf.mxu0
    %v4272 = vadd.f32 %v4147, %v4271
    %4273 = vmatmul.f32.gmra.mxu0 %v4046
    %v4274 = vpop.f32.mrf.mxu0
    %v4275 = vadd.f32 %v4150, %v4274
    %4276 = vmatmul.f32.gmra.mxu0 %v4048
    %v4277 = vpop.f32.mrf.mxu0
    %v4278 = vadd.f32 %v4153, %v4277
    %4279 = vmatmul.f32.gmra.mxu0 %v4050
    %v4280 = vpop.f32.mrf.mxu0
    %v4281 = vadd.f32 %v4156, %v4280
    %4282 = vmatmul.f32.gmra.mxu0 %v4052
    %v4283 = vpop.f32.mrf.mxu0
    %v4284 = vadd.f32 %v4159, %v4283
    %4285 = vmatmul.f32.gmra.mxu0 %v4054
    %v4286 = vpop.f32.mrf.mxu0
    %v4287 = vadd.f32 %v4162, %v4286
    %4288 = vmatmul.f32.gmra.mxu0 %v4056
    %v4289 = vpop.f32.mrf.mxu0
    %v4290 = vadd.f32 %v4165, %v4289
    %4291 = vmatmul.f32.gmra.mxu0 %v4058
    %v4292 = vpop.f32.mrf.mxu0
    %v4293 = vadd.f32 %v4168, %v4292
    %4294 = vmatmul.f32.gmra.mxu0 %v4060
    %v4295 = vpop.f32.mrf.mxu0
    %v4296 = vadd.f32 %v4171, %v4295
    %4297 = vmatmul.f32.gmra.mxu0 %v4062
    %v4298 = vpop.f32.mrf.mxu0
    %v4299 = vadd.f32 %v4174, %v4298
    %4300 = vmatmul.f32.gmra.mxu0 %v4064
    %v4301 = vpop.f32.mrf.mxu0
    %v4302 = vadd.f32 %v4177, %v4301
    %4303 = vmatmul.f32.gmra.mxu0 %v4066
    %v4304 = vpop.f32.mrf.mxu0
    %v4305 = vadd.f32 %v4180, %v4304
    %4306 = vmatmul.f32.gmra.mxu0 %v4068
    %v4307 = vpop.f32.mrf.mxu0
    %v4308 = vadd.f32 %v4183, %v4307
    %4309 = vmatmul.f32.gmra.mxu0 %v4070
    %v4310 = vpop.f32.mrf.mxu0
    %v4311 = vadd.f32 %v4186, %v4310
    %4312 = vmatmul.f32.gmra.mxu0 %v4072
    %v4313 = vpop.f32.mrf.mxu0
    %v4314 = vadd.f32 %v4189, %v4313
    %4315 = vmatmul.f32.gmra.mxu0 %v4074
    %v4316 = vpop.f32.mrf.mxu0
    %v4317 = vadd.f32 %v4192, %v4316
    %4318 = vmatmul.f32.gmra.mxu0 %v4076
    %v4319 = vpop.f32.mrf.mxu0
    %v4320 = vadd.f32 %v4195, %v4319
    %4321 = vmatmul.f32.gmra.mxu0 %v4076
    %v4322 = vpop.f32.mrf.mxu0
    %v4323 = vadd.f32 %v4198, %v4322
    %4324 = vmatmul.f32.gmra.mxu0 %v4076
    %v4325 = vpop.f32.mrf.mxu0
    %v4326 = vadd.f32 %v4201, %v4325
    %4327 = vdwg.mxu0
    %v4328 = vmax.f32 %v4221, 0.0
    %v4329 = vmax.f32 %v4224, 0.0
    %v4330 = vmax.f32 %v4227, 0.0
    %v4331 = vmax.f32 %v4230, 0.0
    %v4332 = vmax.f32 %v4233, 0.0
    %v4333 = vmax.f32 %v4236, 0.0
    %v4334 = vmax.f32 %v4239, 0.0
    %v4335 = vmax.f32 %v4242, 0.0
    %v4336 = vmax.f32 %v4245, 0.0
    %v4337 = vmax.f32 %v4248, 0.0
    %v4338 = vmax.f32 %v4251, 0.0
    %v4339 = vmax.f32 %v4254, 0.0
    %v4340 = vmax.f32 %v4257, 0.0
    %v4341 = vmax.f32 %v4260, 0.0
    %v4342 = vmax.f32 %v4263, 0.0
    %v4343 = vmax.f32 %v4266, 0.0
    %v4344 = vmax.f32 %v4269, 0.0
    %v4345 = vmax.f32 %v4272, 0.0
    %v4346 = vmax.f32 %v4275, 0.0
    %v4347 = vmax.f32 %v4278, 0.0
    %v4348 = vmax.f32 %v4281, 0.0
    %v4349 = vmax.f32 %v4284, 0.0
    %v4350 = vmax.f32 %v4287, 0.0
    %v4351 = vmax.f32 %v4290, 0.0
    %v4352 = vmax.f32 %v4293, 0.0
    %v4353 = vmax.f32 %v4296, 0.0
    %v4354 = vmax.f32 %v4299, 0.0
    %v4355 = vmax.f32 %v4302, 0.0
    %v4356 = vmax.f32 %v4305, 0.0
    %v4357 = vmax.f32 %v4308, 0.0
    %v4358 = vmax.f32 %v4311, 0.0
    %v4359 = vmax.f32 %v4314, 0.0
    %v4360 = vmax.f32 %v4317, 0.0
    %v4361 = vmax.f32 %v4320, 0.0
    %v4362 = vmax.f32 %v4323, 0.0
    %v4363 = vmax.f32 %v4326, 0.0
    %v4364 = vmax.f32 %v4328, %v4331
    %v4365 = vmax.f32 %v4329, %v4332
    %v4366 = vmax.f32 %v4330, %v4333
    %v4367 = vmax.f32 %v4334, %v4337
    %v4368 = vmax.f32 %v4335, %v4338
    %v4369 = vmax.f32 %v4336, %v4339
    %v4370 = vmax.f32 %v4340, %v4343
    %v4371 = vmax.f32 %v4341, %v4344
    %v4372 = vmax.f32 %v4342, %v4345
    %v4373 = vmax.f32 %v4346, %v4349
    %v4374 = vmax.f32 %v4347, %v4350
    %v4375 = vmax.f32 %v4348, %v4351
    %v4376 = vmax.f32 %v4352, %v4355
    %v4377 = vmax.f32 %v4353, %v4356
    %v4378 = vmax.f32 %v4354, %v4357
    %v4379 = vmax.f32 %v4358, %v4361
    %v4380 = vmax.f32 %v4359, %v4362
    %v4381 = vmax.f32 %v4360, %v4363
    %v4382 = vld [vmem:[%s7] sm:$0xff]
    %v4383 = vld [vmem:[%s7 + $0x8] sm:$0xff]
    %v4384 = vld [vmem:[%s7 + $0x10] sm:$0xff]
    %v4385 = vld [vmem:[%s7 + $0x18] sm:$0xff]
    %v4386 = vld [vmem:[%s7 + $0x20] sm:$0xff]
    %v4387 = vld [vmem:[%s7 + $0x28] sm:$0xff]
    %v4388 = vld [vmem:[%s7 + $0x30] sm:$0xff]
    %v4389 = vld [vmem:[%s7 + $0x38] sm:$0xff]
    %v4390 = vld [vmem:[%s7 + $0x40] sm:$0xff]
    %v4391 = vld [vmem:[%s7 + $0x48] sm:$0xff]
    %v4392 = vld [vmem:[%s7 + $0x50] sm:$0xff]
    %v4393 = vld [vmem:[%s7 + $0x58] sm:$0xff]
    %v4394 = vld [vmem:[%s7 + $0x60] sm:$0xff]
    %v4395 = vld [vmem:[%s7 + $0x68] sm:$0xff]
    %v4396 = vld [vmem:[%s7 + $0x70] sm:$0xff]
    %v4397 = vld [vmem:[%s7 + $0x78] sm:$0xff]
    %v4398 = vld [vmem:[%s7 + $0x80] sm:$0xff]
    %v4399 = vld [vmem:[%s7 + $0x88] sm:$0xff]
    %v4400 = vld [vmem:[%s7 + $0x90] sm:$0xff]
    %v4401 = vld [vmem:[%s7 + $0x98] sm:$0xff]
    %v4402 = vld [vmem:[%s7 + $0xa0] sm:$0xff]
    %v4403 = vld [vmem:[%s7 + $0xa8] sm:$0xff]
    %v4404 = vld [vmem:[%s7 + $0xb0] sm:$0xff]
    %v4405 = vld [vmem:[%s7 + $0xb8] sm:$0xff]
    %v4406 = vld [vmem:[%s7 + $0xc0] sm:$0xff]
    %v4407 = vld [vmem:[%s7 + $0xc8] sm:$0xff]
    %v4408 = vld [vmem:[%s7 + $0xd0] sm:$0xff]
    %v4409 = vld [vmem:[%s7 + $0xd8] sm:$0xff]
    %v4410 = vld [vmem:[%s7 + $0xe0] sm:$0xff]
    %v4411 = vld [vmem:[%s7 + $0xe8] sm:$0xff]
    %v4412 = vld [vmem:[%s7 + $0xf0] sm:$0xff]
    %v4413 = vld [vmem:[%s7 + $0xf8] sm:$0xff]
    %4414 = vmatpush.msra.mxu0 %v4413
    %4415 = vmatpush.msra.mxu0 %v4412
    %4416 = vmatpush.msra.mxu0 %v4411
    %4417 = vmatpush.msra.mxu0 %v4410
    %4418 = vmatpush.msra.mxu0 %v4409
    %4419 = vmatpush.msra.mxu0 %v4408
    %4420 = vmatpush.msra.mxu0 %v4407
    %4421 = vmatpush.msra.mxu0 %v4406
    %4422 = vmatpush.msra.mxu0 %v4405
    %4423 = vmatpush.msra.mxu0 %v4404
    %4424 = vmatpush.msra.mxu0 %v4403
    %4425 = vmatpush.msra.mxu0 %v4402
    %4426 = vmatpush.msra.mxu0 %v4401
    %4427 = vmatpush.msra.mxu0 %v4400
    %4428 = vmatpush.msra.mxu0 %v4399
    %4429 = vmatpush.msra.mxu0 %v4398
    %4430 = vmatmul.f32.gmra.mxu0 %v4367
    %v4431 = vpop.f32.mrf.mxu0
    %v4432 = vadd.f32 0.0, %v4431
    %4433 = vmatmul.f32.gmra.mxu0 %v4368
    %v4434 = vpop.f32.mrf.mxu0
    %v4435 = vadd.f32 0.0, %v4434
    %4436 = vmatmul.f32.gmra.mxu0 %v4369
    %v4437 = vpop.f32.mrf.mxu0
    %v4438 = vadd.f32 0.0, %v4437
    %4439 = vdwg.mxu0
    %4440 = vmatpush.msra.mxu0 %v4397
    %4441 = vmatpush.msra.mxu0 %v4396
    %4442 = vmatpush.msra.mxu0 %v4395
    %4443 = vmatpush.msra.mxu0 %v4394
    %4444 = vmatpush.msra.mxu0 %v4393
    %4445 = vmatpush.msra.mxu0 %v4392
    %4446 = vmatpush.msra.mxu0 %v4391
    %4447 = vmatpush.msra.mxu0 %v4390
    %4448 = vmatpush.msra.mxu0 %v4389
    %4449 = vmatpush.msra.mxu0 %v4388
    %4450 = vmatpush.msra.mxu0 %v4387
    %4451 = vmatpush.msra.mxu0 %v4386
    %4452 = vmatpush.msra.mxu0 %v4385
    %4453 = vmatpush.msra.mxu0 %v4384
    %4454 = vmatpush.msra.mxu0 %v4383
    %4455 = vmatpush.msra.mxu0 %v4382
    %4456 = vmatmul.f32.gmra.mxu0 %v4364
    %v4457 = vpop.f32.mrf.mxu0
    %v4458 = vadd.f32 %v4432, %v4457
    %4459 = vmatmul.f32.gmra.mxu0 %v4365
    %v4460 = vpop.f32.mrf.mxu0
    %v4461 = vadd.f32 %v4435, %v4460
    %4462 = vmatmul.f32.gmra.mxu0 %v4366
    %v4463 = vpop.f32.mrf.mxu0
    %v4464 = vadd.f32 %v4438, %v4463
    %4465 = vdwg.mxu0
    %v4466 = vld [vmem:[%s7 + $0x100] sm:$0xff]
    %v4467 = vld [vmem:[%s7 + $0x108] sm:$0xff]
    %v4468 = vld [vmem:[%s7 + $0x110] sm:$0xff]
    %v4469 = vld [vmem:[%s7 + $0x118] sm:$0xff]
    %v4470 = vld [vmem:[%s7 + $0x120] sm:$0xff]
    %v4471 = vld [vmem:[%s7 + $0x128] sm:$0xff]
    %v4472 = vld [vmem:[%s7 + $0x130] sm:$0xff]
    %v4473 = vld [vmem:[%s7 + $0x138] sm:$0xff]
    %v4474 = vld [vmem:[%s7 + $0x140] sm:$0xff]
    %v4475 = vld [vmem:[%s7 + $0x148] sm:$0xff]
    %v4476 = vld [vmem:[%s7 + $0x150] sm:$0xff]
    %v4477 = vld [vmem:[%s7 + $0x158] sm:$0xff]
    %v4478 = vld [vmem:[%s7 + $0x160] sm:$0xff]
    %v4479 = vld [vmem:[%s7 + $0x168] sm:$0xff]
    %v4480 = vld [vmem:[%s7 + $0x170] sm:$0xff]
    %v4481 = vld [vmem:[%s7 + $0x178] sm:$0xff]
    %4482 = vmatpush.msra.mxu0 %v4481
    %4483 = vmatpush.msra.mxu0 %v4480
    %4484 = vmatpush.msra.mxu0 %v4479
    %4485 = vmatpush.msra.mxu0 %v4478
    %4486 = vmatpush.msra.mxu0 %v4477
    %4487 = vmatpush.msra.mxu0 %v4476
    %4488 = vmatpush.msra.mxu0 %v4475
    %4489 = vmatpush.msra.mxu0 %v4474
    %4490 = vmatpush.msra.mxu0 %v4473
    %4491 = vmatpush.msra.mxu0 %v4472
    %4492 = vmatpush.msra.mxu0 %v4471
    %4493 = vmatpush.msra.mxu0 %v4470
    %4494 = vmatpush.msra.mxu0 %v4469
    %4495 = vmatpush.msra.mxu0 %v4468
    %4496 = vmatpush.msra.mxu0 %v4467
    %4497 = vmatpush.msra.mxu0 %v4466
    %4498 = vmatmul.f32.gmra.mxu0 %v4370
    %v4499 = vpop.f32.mrf.mxu0
    %v4500 = vadd.f32 0.0, %v4499
    %4501 = vmatmul.f32.gmra.mxu0 %v4371
    %v4502 = vpop.f32.mrf.mxu0
    %v4503 = vadd.f32 0.0, %v4502
    %4504 = vmatmul.f32.gmra.mxu0 %v4372
    %v4505 = vpop.f32.mrf.mxu0
    %v4506 = vadd.f32 0.0, %v4505
    %4507 = vdwg.mxu0
    %v4508 = vadd.f32 %v4458, %v4500
    %v4509 = vadd.f32 %v4461, %v4503
    %v4510 = vadd.f32 %v4464, %v4506
    %v4511 = vld [vmem:[%s7 + $0x180] sm:$0xff]
    %v4512 = vld [vmem:[%s7 + $0x188] sm:$0xff]
    %v4513 = vld [vmem:[%s7 + $0x190] sm:$0xff]
    %v4514 = vld [vmem:[%s7 + $0x198] sm:$0xff]
    %v4515 = vld [vmem:[%s7 + $0x1a0] sm:$0xff]
    %v4516 = vld [vmem:[%s7 + $0x1a8] sm:$0xff]
    %v4517 = vld [vmem:[%s7 + $0x1b0] sm:$0xff]
    %v4518 = vld [vmem:[%s7 + $0x1b8] sm:$0xff]
    %v4519 = vld [vmem:[%s7 + $0x1c0] sm:$0xff]
    %v4520 = vld [vmem:[%s7 + $0x1c8] sm:$0xff]
    %v4521 = vld [vmem:[%s7 + $0x1d0] sm:$0xff]
    %v4522 = vld [vmem:[%s7 + $0x1d8] sm:$0xff]
    %v4523 = vld [vmem:[%s7 + $0x1e0] sm:$0xff]
    %v4524 = vld [vmem:[%s7 + $0x1e8] sm:$0xff]
    %v4525 = vld [vmem:[%s7 + $0x1f0] sm:$0xff]
    %v4526 = vld [vmem:[%s7 + $0x1f8] sm:$0xff]
    %4527 = vmatpush.msra.mxu0 %v4526
    %4528 = vmatpush.msra.mxu0 %v4525
    %4529 = vmatpush.msra.mxu0 %v4524
    %4530 = vmatpush.msra.mxu0 %v4523
    %4531 = vmatpush.msra.mxu0 %v4522
    %4532 = vmatpush.msra.mxu0 %v4521
    %4533 = vmatpush.msra.mxu0 %v4520
    %4534 = vmatpush.msra.mxu0 %v4519
    %4535 = vmatpush.msra.mxu0 %v4518
    %4536 = vmatpush.msra.mxu0 %v4517
    %4537 = vmatpush.msra.mxu0 %v4516
    %4538 = vmatpush.msra.mxu0 %v4515
    %4539 = vmatpush.msra.mxu0 %v4514
    %4540 = vmatpush.msra.mxu0 %v4513
    %4541 = vmatpush.msra.mxu0 %v4512
    %4542 = vmatpush.msra.mxu0 %v4511
    %4543 = vmatmul.f32.gmra.mxu0 %v4373
    %v4544 = vpop.f32.mrf.mxu0
    %v4545 = vadd.f32 0.0, %v4544
    %4546 = vmatmul.f32.gmra.mxu0 %v4374
    %v4547 = vpop.f32.mrf.mxu0
    %v4548 = vadd.f32 0.0, %v4547
    %4549 = vmatmul.f32.gmra.mxu0 %v4375
    %v4550 = vpop.f32.mrf.mxu0
    %v4551 = vadd.f32 0.0, %v4550
    %4552 = vdwg.mxu0
    %v4553 = vadd.f32 %v4508, %v4545
    %v4554 = vadd.f32 %v4509, %v4548
    %v4555 = vadd.f32 %v4510, %v4551
    %v4556 = vld [vmem:[%s7 + $0x200] sm:$0xff]
    %v4557 = vld [vmem:[%s7 + $0x208] sm:$0xff]
    %v4558 = vld [vmem:[%s7 + $0x210] sm:$0xff]
    %v4559 = vld [vmem:[%s7 + $0x218] sm:$0xff]
    %v4560 = vld [vmem:[%s7 + $0x220] sm:$0xff]
    %v4561 = vld [vmem:[%s7 + $0x228] sm:$0xff]
    %v4562 = vld [vmem:[%s7 + $0x230] sm:$0xff]
    %v4563 = vld [vmem:[%s7 + $0x238] sm:$0xff]
    %v4564 = vld [vmem:[%s7 + $0x240] sm:$0xff]
    %v4565 = vld [vmem:[%s7 + $0x248] sm:$0xff]
    %v4566 = vld [vmem:[%s7 + $0x250] sm:$0xff]
    %v4567 = vld [vmem:[%s7 + $0x258] sm:$0xff]
    %v4568 = vld [vmem:[%s7 + $0x260] sm:$0xff]
    %v4569 = vld [vmem:[%s7 + $0x268] sm:$0xff]
    %v4570 = vld [vmem:[%s7 + $0x270] sm:$0xff]
    %v4571 = vld [vmem:[%s7 + $0x278] sm:$0xff]
    %4572 = vmatpush.msra.mxu0 %v4571
    %4573 = vmatpush.msra.mxu0 %v4570
    %4574 = vmatpush.msra.mxu0 %v4569
    %4575 = vmatpush.msra.mxu0 %v4568
    %4576 = vmatpush.msra.mxu0 %v4567
    %4577 = vmatpush.msra.mxu0 %v4566
    %4578 = vmatpush.msra.mxu0 %v4565
    %4579 = vmatpush.msra.mxu0 %v4564
    %4580 = vmatpush.msra.mxu0 %v4563
    %4581 = vmatpush.msra.mxu0 %v4562
    %4582 = vmatpush.msra.mxu0 %v4561
    %4583 = vmatpush.msra.mxu0 %v4560
    %4584 = vmatpush.msra.mxu0 %v4559
    %4585 = vmatpush.msra.mxu0 %v4558
    %4586 = vmatpush.msra.mxu0 %v4557
    %4587 = vmatpush.msra.mxu0 %v4556
    %4588 = vmatmul.f32.gmra.mxu0 %v4376
    %v4589 = vpop.f32.mrf.mxu0
    %v4590 = vadd.f32 0.0, %v4589
    %4591 = vmatmul.f32.gmra.mxu0 %v4377
    %v4592 = vpop.f32.mrf.mxu0
    %v4593 = vadd.f32 0.0, %v4592
    %4594 = vmatmul.f32.gmra.mxu0 %v4378
    %v4595 = vpop.f32.mrf.mxu0
    %v4596 = vadd.f32 0.0, %v4595
    %4597 = vdwg.mxu0
    %v4598 = vadd.f32 %v4553, %v4590
    %v4599 = vadd.f32 %v4554, %v4593
    %v4600 = vadd.f32 %v4555, %v4596
    %v4601 = vld [vmem:[%s7 + $0x280] sm:$0xff]
    %v4602 = vld [vmem:[%s7 + $0x288] sm:$0xff]
    %v4603 = vld [vmem:[%s7 + $0x290] sm:$0xff]
    %v4604 = vld [vmem:[%s7 + $0x298] sm:$0xff]
    %v4605 = vld [vmem:[%s7 + $0x2a0] sm:$0xff]
    %v4606 = vld [vmem:[%s7 + $0x2a8] sm:$0xff]
    %v4607 = vld [vmem:[%s7 + $0x2b0] sm:$0xff]
    %v4608 = vld [vmem:[%s7 + $0x2b8] sm:$0xff]
    %v4609 = vld [vmem:[%s7 + $0x2c0] sm:$0xff]
    %v4610 = vld [vmem:[%s7 + $0x2c8] sm:$0xff]
    %v4611 = vld [vmem:[%s7 + $0x2d0] sm:$0xff]
    %v4612 = vld [vmem:[%s7 + $0x2d8] sm:$0xff]
    %v4613 = vld [vmem:[%s7 + $0x2e0] sm:$0xff]
    %v4614 = vld [vmem:[%s7 + $0x2e8] sm:$0xff]
    %v4615 = vld [vmem:[%s7 + $0x2f0] sm:$0xff]
    %v4616 = vld [vmem:[%s7 + $0x2f8] sm:$0xff]
    %4617 = vmatpush.msra.mxu0 %v4616
    %4618 = vmatpush.msra.mxu0 %v4615
    %4619 = vmatpush.msra.mxu0 %v4614
    %4620 = vmatpush.msra.mxu0 %v4613
    %4621 = vmatpush.msra.mxu0 %v4612
    %4622 = vmatpush.msra.mxu0 %v4611
    %4623 = vmatpush.msra.mxu0 %v4610
    %4624 = vmatpush.msra.mxu0 %v4609
    %4625 = vmatpush.msra.mxu0 %v4608
    %4626 = vmatpush.msra.mxu0 %v4607
    %4627 = vmatpush.msra.mxu0 %v4606
    %4628 = vmatpush.msra.mxu0 %v4605
    %4629 = vmatpush.msra.mxu0 %v4604
    %4630 = vmatpush.msra.mxu0 %v4603
    %4631 = vmatpush.msra.mxu0 %v4602
    %4632 = vmatpush.msra.mxu0 %v4601
    %4633 = vmatmul.f32.gmra.mxu0 %v4379
    %v4634 = vpop.f32.mrf.mxu0
    %v4635 = vadd.f32 0.0, %v4634
    %4636 = vmatmul.f32.gmra.mxu0 %v4380
    %v4637 = vpop.f32.mrf.mxu0
    %v4638 = vadd.f32 0.0, %v4637
    %4639 = vmatmul.f32.gmra.mxu0 %v4381
    %v4640 = vpop.f32.mrf.mxu0
    %v4641 = vadd.f32 0.0, %v4640
    %4642 = vdwg.mxu0
    %v4643 = vadd.f32 %v4598, %v4635
    %v4644 = vadd.f32 %v4599, %v4638
    %v4645 = vadd.f32 %v4600, %v4641
    %v4646 = vld [vmem:[%s8] sm:$0x1]
    %v4648 = vperm.slane %v4646, 0
    %v4650 = vadd.f32 %v4643, %v4648
    %v4651 = vadd.f32 %v4644, %v4648
    %v4652 = vadd.f32 %v4645, %v4648
    %v4653 = vmax.f32 %v4650, 0.0
    %v4654 = vmax.f32 %v4651, 0.0
    %v4655 = vmax.f32 %v4652, 0.0
    %v4656 = vld [vmem:[%s9] sm:$0xff]
    %v4657 = vld [vmem:[%s9 + $0x8] sm:$0xff]
    %v4658 = vld [vmem:[%s9 + $0x10] sm:$0xff]
    %v4659 = vld [vmem:[%s9 + $0x18] sm:$0xff]
    %v4660 = vld [vmem:[%s9 + $0x20] sm:$0xff]
    %v4661 = vld [vmem:[%s9 + $0x28] sm:$0xff]
    %v4662 = vld [vmem:[%s9 + $0x30] sm:$0xff]
    %v4663 = vld [vmem:[%s9 + $0x38] sm:$0xff]
    %v4664 = vld [vmem:[%s9 + $0x40] sm:$0xff]
    %v4665 = vld [vmem:[%s9 + $0x48] sm:$0xff]
    %v4666 = vld [vmem:[%s9 + $0x50] sm:$0xff]
    %v4667 = vld [vmem:[%s9 + $0x58] sm:$0xff]
    %v4668 = vld [vmem:[%s9 + $0x60] sm:$0xff]
    %v4669 = vld [vmem:[%s9 + $0x68] sm:$0xff]
    %v4670 = vld [vmem:[%s9 + $0x70] sm:$0xff]
    %v4671 = vld [vmem:[%s9 + $0x78] sm:$0xff]
    %v4672 = vld [vmem:[%s10] sm:$0x1]
    %v4674 = vperm.slane %v4672, 0
    %4676 = vmatpush.msra.mxu0 %v4671
    %4677 = vmatpush.msra.mxu0 %v4670
    %4678 = vmatpush.msra.mxu0 %v4669
    %4679 = vmatpush.msra.mxu0 %v4668
    %4680 = vmatpush.msra.mxu0 %v4667
    %4681 = vmatpush.msra.mxu0 %v4666
    %4682 = vmatpush.msra.mxu0 %v4665
    %4683 = vmatpush.msra.mxu0 %v4664
    %4684 = vmatpush.msra.mxu0 %v4663
    %4685 = vmatpush.msra.mxu0 %v4662
    %4686 = vmatpush.msra.mxu0 %v4661
    %4687 = vmatpush.msra.mxu0 %v4660
    %4688 = vmatpush.msra.mxu0 %v4659
    %4689 = vmatpush.msra.mxu0 %v4658
    %4690 = vmatpush.msra.mxu0 %v4657
    %4691 = vmatpush.msra.mxu0 %v4656
    %4692 = vmatmul.f32.gmra.mxu0 %v4653
    %v4693 = vpop.f32.mrf.mxu0
    %v4694 = vadd.f32 %v4674, %v4693
    %4695 = vmatmul.f32.gmra.mxu0 %v4654
    %v4696 = vpop.f32.mrf.mxu0
    %v4697 = vadd.f32 %v4674, %v4696
    %4698 = vmatmul.f32.gmra.mxu0 %v4655
    %v4699 = vpop.f32.mrf.mxu0
    %v4700 = vadd.f32 %v4674, %v4699
    %4701 = vdwg.mxu0
    %4702 = vst [vmem:[#allocation2] sm:$0xff] %v4694
    %4703 = vst [vmem:[#allocation2 + $0x8] sm:$0xff] %v4697
    %4704 = vst [vmem:[#allocation2 + $0x10] sm:$0xff] %v4700
    // Predicated region
    $region46: #{tpu_custom_call.1} parent=1 // pred_check
      _
    $region47: #{tpu_custom_call.1} parent=1 // pred_check_branch
      %4706 = sbr.rel (0) target = $region49
    $region48: #{tpu_custom_call.1} parent=1 // pred_region
      %4708 = vsyncadd [#allocation3], 0
      %s4709 = sshll.u32 [#allocation2], 4
      %s4710 = int_to_ptr.vmem [resolvable:$true] %s4709
      %s4711 = sshll.u32 %s11, 4
      %s4712 = int_to_ptr.hbm [resolvable:$true] %s4711
      %4717 = dma.vmem_to_hbm [thread:$0]  %s4710, 384, %s4712, [#allocation3], 128, 128, 8
    $region49: #{tpu_custom_call.1} parent=1 // pred_fallthru
      _
    // Predicated region
    $region50: #{tpu_custom_call.1} parent=1 // pred_check
      _
    $region51: #{tpu_custom_call.1} parent=1 // pred_check_branch
      %4719 = sbr.rel (0) target = $region53
    $region52: #{tpu_custom_call.1} parent=1 // pred_region
      %4721 = dma.done [#allocation3], 384
    $region53: #{tpu_custom_call.1} parent=1 // pred_fallthru
      _
    %4722 = vsyncpa [#allocation3], 1

</llo_original>
